<compile_context>
chip_gen: v7x
topology: tpu7x:2x2x1
jax: 0.10.0
libtpu: 0.0.40
codegen_flags: <defaults>
</compile_context>

<pallas_src>
import jax
import jax.numpy as jnp
from jax.experimental import pallas as pl
from jax.experimental.pallas import tpu as pltpu

EPS = 1e-6


def _rmsnorm(x, g):
    # torch RMSNorm: x * rsqrt(mean(x^2, -1) + eps) * weight   (all f32 here)
    ms = jnp.mean(x * x, axis=-1, keepdims=True)
    return x * jax.lax.rsqrt(ms + EPS) * g


def _sigmoid(x):
    return 1.0 / (1.0 + jnp.exp(-x))


def _make_fused_kernel(B, S, H, hd):
    N = B * S
    D = H * hd

    def kernel(x_ref, mask_ref,
               wq_ref, wk_ref, wv_ref, wo_ref, bo_ref,
               w1_ref, b1_ref, w2_ref, b2_ref, w3_ref, b3_ref,
               g1_ref, g2_ref,
               gf_ref, wout_ref, bout_ref,
               o_ref, h_ref):
        layer = pl.program_id(0)
        last = pl.num_programs(0) - 1

        # Load embeddings into the resident VMEM activation slab once.
        @pl.when(layer == 0)
        def _():
            h_ref[...] = x_ref[...]

        x = h_ref[...]                                   # (N, D) f32

        # ---------------- pre-norm + multi-head attention ----------------
        xn = _rmsnorm(x, g1_ref[0])
        xnb = xn.astype(jnp.bfloat16)
        mask = mask_ref[...]                             # (S, S) additive causal bias

        att_out = jnp.zeros((N, D), jnp.float32)
        for h in range(H):                               # static unroll over heads
            # per-head projections (1/sqrt(hd) already folded into Wq)
            q = jnp.dot(xnb, wq_ref[0, h], preferred_element_type=jnp.float32)
            k = jnp.dot(xnb, wk_ref[0, h], preferred_element_type=jnp.float32)
            v = jnp.dot(xnb, wv_ref[0, h], preferred_element_type=jnp.float32)
            qh = q.reshape(B, S, hd).astype(jnp.bfloat16)   # leading-dim split only
            kh = k.reshape(B, S, hd).astype(jnp.bfloat16)
            vh = v.reshape(B, S, hd).astype(jnp.bfloat16)

            s = jnp.einsum('bqd,bkd->bqk', qh, kh,
                           preferred_element_type=jnp.float32)   # (B, S, S)
            s = s + mask
            m = jnp.max(s, axis=-1, keepdims=True)
            p = jnp.exp(s - m)
            p = p * pl.reciprocal(jnp.sum(p, axis=-1, keepdims=True), approx=True)

            a = jnp.einsum('bqk,bkd->bqd', p.astype(jnp.bfloat16), vh,
                           preferred_element_type=jnp.float32)   # (B, S, hd)
            # fused head-concat + out_linear:  att @ Wo == sum_h att_h @ Wo[h]
            att_out = att_out + jnp.dot(a.reshape(N, hd).astype(jnp.bfloat16),
                                        wo_ref[0, h],
                                        preferred_element_type=jnp.float32)

        h1 = att_out + bo_ref[0] + x                     # out-proj bias + residual

        # ---------------- SwiGLU-style FeedForward + post-norm ----------------
        hb = h1.astype(jnp.bfloat16)
        a1 = jnp.dot(hb, w1_ref[0], preferred_element_type=jnp.float32) + b1_ref[0]
        a2 = jnp.dot(hb, w2_ref[0], preferred_element_type=jnp.float32) + b2_ref[0]
        f = (a1 * _sigmoid(a1)) * a2                     # SiLU(a1) * a2, f32
        ff = jnp.dot(f.astype(jnp.bfloat16), w3_ref[0],
                     preferred_element_type=jnp.float32) + b3_ref[0]
        h2 = _rmsnorm(ff + h1, g2_ref[0])
        h_ref[...] = h2                                  # stays resident for next layer

        # --------- final RMSNorm + vocab head (lane-dense, 128-padded) ---------
        @pl.when(layer == last)
        def _():
            xf = _rmsnorm(h2, gf_ref[...]).astype(jnp.bfloat16)
            o_ref[...] = jnp.dot(xf, wout_ref[...],
                                 preferred_element_type=jnp.float32) + bout_ref[...]

    return kernel


def generative_transformer(word_indices, params):
    B, S = word_indices.shape
    n_layers, H, D, hd = params['wq'].shape
    N = B * S
    Vp = params['w_out'].shape[1]

    # embedding lookup = gather, kept as JAX glue; flatten batch into the slab
    # TODO(synk): embedding gather stays in XLA (data-dependent row gather).
    x = jnp.take(params['embed'], word_indices, axis=0).reshape(N, D)

    # precomputed additive causal mask (finite large negative, no NaN hazard)
    row = jax.lax.broadcasted_iota(jnp.int32, (S, S), 0)
    col = jax.lax.broadcasted_iota(jnp.int32, (S, S), 1)
    mask = jnp.where(col > row, -1e30, 0.0).astype(jnp.float32)

    def layer_spec(arr):   # stacked per-layer weight: block (1, ...), indexed by layer
        zeros = (0,) * (arr.ndim - 1)
        return pl.BlockSpec((1,) + tuple(arr.shape[1:]), lambda l: (l,) + zeros)

    def const_spec(arr):   # layer-invariant input: full block, constant index
        zeros = (0,) * arr.ndim
        return pl.BlockSpec(tuple(arr.shape), lambda l: zeros)

    layer_keys = ('wq', 'wk', 'wv', 'wo', 'bo',
                  'w1', 'b1', 'w2', 'b2', 'w3', 'b3', 'g1', 'g2')
    layer_args = [params[k] for k in layer_keys]
    const_args = [params['g_final'], params['w_out'], params['b_out']]

    logits_pad = pl.pallas_call(
        _make_fused_kernel(B, S, H, hd),
        out_shape=jax.ShapeDtypeStruct((N, Vp), jnp.float32),
        grid=(n_layers,),
        in_specs=([const_spec(x), const_spec(mask)]
                  + [layer_spec(a) for a in layer_args]
                  + [const_spec(a) for a in const_args]),
        out_specs=pl.BlockSpec((N, Vp), lambda l: (0, 0)),
        scratch_shapes=[pltpu.VMEM((N, D), jnp.float32)],   # resident activations
        compiler_params=pltpu.CompilerParams(
            # layer axis carries state in VMEM scratch -> must stay sequential
            dimension_semantics=("arbitrary",),
        ),
    )(x, mask, *layer_args, *const_args)

    # drop the lane padding, restore (B, S, V)
    return logits_pad.reshape(B, S, Vp)[:, :, :params['vocab']]


# ------------------------- deterministic parameter init -------------------------
def init_params(key, vocab, D, H, F, n_layers):
    hd = D // H
    keys = iter(jax.random.split(key, 2 + 7 * n_layers))

    def xavier(k, shape, fan_in, fan_out):
        lim = (6.0 / (fan_in + fan_out)) ** 0.5
        return jax.random.uniform(k, shape, jnp.float32, -lim, lim)

    embed = jax.random.normal(next(keys), (vocab, D), jnp.float32) * 0.02
    q_scale = 1.0 / (hd ** 0.5)   # attention score scale folded into Wq

    acc = {k: [] for k in ('wq', 'wk', 'wv', 'wo', 'bo',
                           'w1', 'b1', 'w2', 'b2', 'w3', 'b3', 'g1', 'g2')}
    for _ in range(n_layers):
        acc['wq'].append(xavier(next(keys), (H, D, hd), D, hd) * q_scale)  # (H, D, hd)
        acc['wk'].append(xavier(next(keys), (H, D, hd), D, hd))
        acc['wv'].append(xavier(next(keys), (H, D, hd), D, hd))
        # out_linear rows grouped per head (head-major concat order of att_out)
        acc['wo'].append(xavier(next(keys), (D, D), D, D).reshape(H, hd, D))
        acc['bo'].append(jnp.zeros((1, D), jnp.float32))
        acc['w1'].append(xavier(next(keys), (D, F), D, F))
        acc['b1'].append(jnp.zeros((1, F), jnp.float32))
        acc['w2'].append(xavier(next(keys), (D, F), D, F))
        acc['b2'].append(jnp.zeros((1, F), jnp.float32))
        acc['w3'].append(xavier(next(keys), (F, D), F, D))
        acc['b3'].append(jnp.zeros((1, D), jnp.float32))
        acc['g1'].append(jnp.ones((1, D), jnp.float32))
        acc['g2'].append(jnp.ones((1, D), jnp.float32))

    params = {k: jnp.stack(v) for k, v in acc.items()}
    for k in ('wq', 'wk', 'wv', 'wo', 'w1', 'w2', 'w3'):     # MXU operands in bf16
        params[k] = params[k].astype(jnp.bfloat16)

    Vp = ((vocab + 127) // 128) * 128                        # lane-dense vocab head
    w_out = xavier(next(keys), (D, vocab), D, vocab)
    params.update(
        embed=embed,
        g_final=jnp.ones((1, D), jnp.float32),
        w_out=jnp.pad(w_out, ((0, 0), (0, Vp - vocab))).astype(jnp.bfloat16),
        b_out=jnp.zeros((1, Vp), jnp.float32),
        vocab=vocab,
        n_head=H,
    )
    return params


if __name__ == "__main__":
    vocab_size, embed_dim, n_head, feed_hid_dim, n_layers = 64, 32, 4, 64, 2
    bsz, seq = 2, 8

    root = jax.random.PRNGKey(0)
    k_param, k_idx = jax.random.split(root)
    params = init_params(k_param, vocab_size, embed_dim, n_head, feed_hid_dim, n_layers)
    word_indices = jax.random.randint(k_idx, (bsz, seq), 0, vocab_size, dtype=jnp.int32)

    logits = generative_transformer(word_indices, params)
    jax.block_until_ready(logits)
    assert logits.shape == (bsz, seq, vocab_size)
    assert bool(jnp.all(jnp.isfinite(logits)))
    print("KERNEL_OK")
</pallas_src>

<mosaic_0001>
module attributes {stable_mosaic.version = 11 : i64} {
  func.func @kernel(%arg0: i32, %arg1: memref<16x32xf32, #tpu.memory_space<vmem>>, %arg2: memref<8x8xf32, #tpu.memory_space<vmem>>, %arg3: memref<1x4x32x8xbf16, #tpu.memory_space<vmem>>, %arg4: memref<1x4x32x8xbf16, #tpu.memory_space<vmem>>, %arg5: memref<1x4x32x8xbf16, #tpu.memory_space<vmem>>, %arg6: memref<1x4x8x32xbf16, #tpu.memory_space<vmem>>, %arg7: memref<1x1x32xf32, #tpu.memory_space<vmem>>, %arg8: memref<1x32x64xbf16, #tpu.memory_space<vmem>>, %arg9: memref<1x1x64xf32, #tpu.memory_space<vmem>>, %arg10: memref<1x32x64xbf16, #tpu.memory_space<vmem>>, %arg11: memref<1x1x64xf32, #tpu.memory_space<vmem>>, %arg12: memref<1x64x32xbf16, #tpu.memory_space<vmem>>, %arg13: memref<1x1x32xf32, #tpu.memory_space<vmem>>, %arg14: memref<1x1x32xf32, #tpu.memory_space<vmem>>, %arg15: memref<1x1x32xf32, #tpu.memory_space<vmem>>, %arg16: memref<1x32xf32, #tpu.memory_space<vmem>>, %arg17: memref<32x128xbf16, #tpu.memory_space<vmem>>, %arg18: memref<1x128xf32, #tpu.memory_space<vmem>>, %arg19: memref<16x128xf32, #tpu.memory_space<vmem>>, %arg20: memref<16x32xf32, #tpu.memory_space<vmem>>) attributes {dimension_semantics = [#tpu.dimension_semantics<arbitrary>], iteration_bounds = array<i64: 2>, scalar_prefetch = 0 : i64, scratch_operands = 1 : i64, tpu.core_type = #tpu.core_type<tc>, window_params = [{pipeline_mode = #tpu.pipeline_mode<synchronous>, transform_indices = @transform_0, window_bounds = array<i64: 16, 32>}, {pipeline_mode = #tpu.pipeline_mode<synchronous>, transform_indices = @transform_1, window_bounds = array<i64: 8, 8>}, {transform_indices = @transform_2, window_bounds = array<i64: 1, 4, 32, 8>}, {transform_indices = @transform_3, window_bounds = array<i64: 1, 4, 32, 8>}, {transform_indices = @transform_4, window_bounds = array<i64: 1, 4, 32, 8>}, {transform_indices = @transform_5, window_bounds = array<i64: 1, 4, 8, 32>}, {transform_indices = @transform_6, window_bounds = array<i64: 1, 1, 32>}, {transform_indices = @transform_7, window_bounds = array<i64: 1, 32, 64>}, {transform_indices = @transform_8, window_bounds = array<i64: 1, 1, 64>}, {transform_indices = @transform_9, window_bounds = array<i64: 1, 32, 64>}, {transform_indices = @transform_10, window_bounds = array<i64: 1, 1, 64>}, {transform_indices = @transform_11, window_bounds = array<i64: 1, 64, 32>}, {transform_indices = @transform_12, window_bounds = array<i64: 1, 1, 32>}, {transform_indices = @transform_13, window_bounds = array<i64: 1, 1, 32>}, {transform_indices = @transform_14, window_bounds = array<i64: 1, 1, 32>}, {pipeline_mode = #tpu.pipeline_mode<synchronous>, transform_indices = @transform_15, window_bounds = array<i64: 1, 32>}, {pipeline_mode = #tpu.pipeline_mode<synchronous>, transform_indices = @transform_16, window_bounds = array<i64: 32, 128>}, {pipeline_mode = #tpu.pipeline_mode<synchronous>, transform_indices = @transform_17, window_bounds = array<i64: 1, 128>}, {pipeline_mode = #tpu.pipeline_mode<synchronous>, transform_indices = @transform_18, window_bounds = array<i64: 16, 128>}]} {
    %c0_i32 = arith.constant 0 : i32
    %0 = arith.cmpi eq, %arg0, %c0_i32 : i32
    %1 = arith.extui %0 : i1 to i32
    %c0_i32_0 = arith.constant 0 : i32
    %2 = arith.cmpi ne, %1, %c0_i32_0 : i32
    scf.if %2 {
      %c0_139 = arith.constant 0 : index
      %c0_140 = arith.constant 0 : index
      %225 = vector.load %arg1[%c0_139, %c0_140] : memref<16x32xf32, #tpu.memory_space<vmem>>, vector<16x32xf32>
      %c0_141 = arith.constant 0 : index
      %c0_142 = arith.constant 0 : index
      %226 = vector.load %arg20[%c0_141, %c0_142] : memref<16x32xf32, #tpu.memory_space<vmem>>, vector<16x32xf32>
      tpu.vector_store %arg20[%c0_141, %c0_142], %225 {strides = array<i32>} : memref<16x32xf32, #tpu.memory_space<vmem>>, vector<16x32xf32>,
    } else {
    }
    %c0 = arith.constant 0 : index
    %c0_1 = arith.constant 0 : index
    %3 = vector.load %arg20[%c0, %c0_1] : memref<16x32xf32, #tpu.memory_space<vmem>>, vector<16x32xf32>
    %c0_2 = arith.constant 0 : index
    %c0_3 = arith.constant 0 : index
    %c0_4 = arith.constant 0 : index
    %4 = vector.load %arg14[%c0_2, %c0_3, %c0_4] : memref<1x1x32xf32, #tpu.memory_space<vmem>>, vector<1x1x32xf32>
    %5 = vector.shape_cast %4 : vector<1x1x32xf32> to vector<1x32xf32>
    %6 = arith.mulf %3, %3 : vector<16x32xf32>
    %cst = arith.constant dense<0.000000e+00> : vector<16xf32>
    %7 = vector.multi_reduction <add>, %6, %cst [1] : vector<16x32xf32> to vector<16xf32>
    %8 = vector.shape_cast %7 : vector<16xf32> to vector<16x1xf32>
    %cst_5 = arith.constant 3.200000e+01 : f32
    %9 = vector.broadcast %cst_5 : f32 to vector<16x1xf32>
    %10 = arith.divf %8, %9 : vector<16x1xf32>
    %cst_6 = arith.constant 9.99999997E-7 : f32
    %11 = vector.broadcast %cst_6 : f32 to vector<16x1xf32>
    %12 = arith.addf %10, %11 : vector<16x1xf32>
    %13 = math.rsqrt %12 : vector<16x1xf32>
    %14 = vector.broadcast %13 : vector<16x1xf32> to vector<16x32xf32>
    %15 = arith.mulf %3, %14 : vector<16x32xf32>
    %16 = vector.broadcast %5 : vector<1x32xf32> to vector<16x32xf32>
    %17 = arith.mulf %15, %16 : vector<16x32xf32>
    %18 = arith.truncf %17 : vector<16x32xf32> to vector<16x32xbf16>
    %c0_7 = arith.constant 0 : index
    %c0_8 = arith.constant 0 : index
    %19 = vector.load %arg2[%c0_7, %c0_8] : memref<8x8xf32, #tpu.memory_space<vmem>>, vector<8x8xf32>
    %cst_9 = arith.constant 0.000000e+00 : f32
    %20 = vector.broadcast %cst_9 : f32 to vector<16x32xf32>
    %c0_10 = arith.constant 0 : index
    %c0_11 = arith.constant 0 : index
    %c0_12 = arith.constant 0 : index
    %c0_13 = arith.constant 0 : index
    %21 = vector.load %arg3[%c0_10, %c0_11, %c0_12, %c0_13] : memref<1x4x32x8xbf16, #tpu.memory_space<vmem>>, vector<1x1x32x8xbf16>
    %22 = vector.shape_cast %21 : vector<1x1x32x8xbf16> to vector<32x8xbf16>
    %cst_14 = arith.constant dense<0.000000e+00> : vector<16x8xf32>
    %23 = tpu.matmul %18, %22, %cst_14 {dimension_numbers = #tpu.dot_dimension_numbers<[1], [0], [0], [1], [0, 0, 1, 1], [], []>} : vector<16x32xbf16>, vector<32x8xbf16>, vector<16x8xf32> -> vector<16x8xf32>
    %c0_15 = arith.constant 0 : index
    %c0_16 = arith.constant 0 : index
    %c0_17 = arith.constant 0 : index
    %c0_18 = arith.constant 0 : index
    %24 = vector.load %arg4[%c0_15, %c0_16, %c0_17, %c0_18] : memref<1x4x32x8xbf16, #tpu.memory_space<vmem>>, vector<1x1x32x8xbf16>
    %25 = vector.shape_cast %24 : vector<1x1x32x8xbf16> to vector<32x8xbf16>
    %cst_19 = arith.constant dense<0.000000e+00> : vector<16x8xf32>
    %26 = tpu.matmul %18, %25, %cst_19 {dimension_numbers = #tpu.dot_dimension_numbers<[1], [0], [0], [1], [0, 0, 1, 1], [], []>} : vector<16x32xbf16>, vector<32x8xbf16>, vector<16x8xf32> -> vector<16x8xf32>
    %c0_20 = arith.constant 0 : index
    %c0_21 = arith.constant 0 : index
    %c0_22 = arith.constant 0 : index
    %c0_23 = arith.constant 0 : index
    %27 = vector.load %arg5[%c0_20, %c0_21, %c0_22, %c0_23] : memref<1x4x32x8xbf16, #tpu.memory_space<vmem>>, vector<1x1x32x8xbf16>
    %28 = vector.shape_cast %27 : vector<1x1x32x8xbf16> to vector<32x8xbf16>
    %cst_24 = arith.constant dense<0.000000e+00> : vector<16x8xf32>
    %29 = tpu.matmul %18, %28, %cst_24 {dimension_numbers = #tpu.dot_dimension_numbers<[1], [0], [0], [1], [0, 0, 1, 1], [], []>} : vector<16x32xbf16>, vector<32x8xbf16>, vector<16x8xf32> -> vector<16x8xf32>
    %30 = vector.shape_cast %23 : vector<16x8xf32> to vector<2x8x8xf32>
    %31 = arith.truncf %30 : vector<2x8x8xf32> to vector<2x8x8xbf16>
    %32 = vector.shape_cast %26 : vector<16x8xf32> to vector<2x8x8xf32>
    %33 = arith.truncf %32 : vector<2x8x8xf32> to vector<2x8x8xbf16>
    %34 = vector.shape_cast %29 : vector<16x8xf32> to vector<2x8x8xf32>
    %35 = arith.truncf %34 : vector<2x8x8xf32> to vector<2x8x8xbf16>
    "tpu.trace_start"() <{level = 10 : i32, message = "bqd,bkd->bqk"}> : () -> ()
    %cst_25 = arith.constant dense<0.000000e+00> : vector<2x8x8xf32>
    %36 = tpu.matmul %31, %33, %cst_25 {dimension_numbers = #tpu.dot_dimension_numbers<[2], [2], [1], [1], [0, 0, 0, 1, 1, 1], [0], [0]>} : vector<2x8x8xbf16>, vector<2x8x8xbf16>, vector<2x8x8xf32> -> vector<2x8x8xf32>
    "tpu.trace_stop"() : () -> ()
    %37 = vector.shape_cast %19 : vector<8x8xf32> to vector<1x8x8xf32>
    %38 = vector.broadcast %37 : vector<1x8x8xf32> to vector<2x8x8xf32>
    %39 = arith.addf %36, %38 : vector<2x8x8xf32>
    %cst_26 = arith.constant dense<0xFF800000> : vector<2x8xf32>
    %40 = vector.multi_reduction <maximumf>, %39, %cst_26 [2] : vector<2x8x8xf32> to vector<2x8xf32>
    %41 = vector.shape_cast %40 : vector<2x8xf32> to vector<2x8x1xf32>
    %42 = vector.broadcast %41 : vector<2x8x1xf32> to vector<2x8x8xf32>
    %43 = arith.subf %39, %42 : vector<2x8x8xf32>
    %44 = math.exp %43 : vector<2x8x8xf32>
    %cst_27 = arith.constant dense<0.000000e+00> : vector<2x8xf32>
    %45 = vector.multi_reduction <add>, %44, %cst_27 [2] : vector<2x8x8xf32> to vector<2x8xf32>
    %46 = vector.shape_cast %45 : vector<2x8xf32> to vector<2x8x1xf32>
    %47 = tpu.reciprocal %46 {approx = true} : vector<2x8x1xf32> -> vector<2x8x1xf32>
    %48 = vector.broadcast %47 : vector<2x8x1xf32> to vector<2x8x8xf32>
    %49 = arith.mulf %44, %48 : vector<2x8x8xf32>
    %50 = arith.truncf %49 : vector<2x8x8xf32> to vector<2x8x8xbf16>
    "tpu.trace_start"() <{level = 10 : i32, message = "bqk,bkd->bqd"}> : () -> ()
    %cst_28 = arith.constant dense<0.000000e+00> : vector<2x8x8xf32>
    %51 = tpu.matmul %50, %35, %cst_28 {dimension_numbers = #tpu.dot_dimension_numbers<[2], [1], [1], [2], [0, 0, 0, 1, 1, 2], [0], [0]>} : vector<2x8x8xbf16>, vector<2x8x8xbf16>, vector<2x8x8xf32> -> vector<2x8x8xf32>
    "tpu.trace_stop"() : () -> ()
    %52 = vector.shape_cast %51 : vector<2x8x8xf32> to vector<16x8xf32>
    %53 = arith.truncf %52 : vector<16x8xf32> to vector<16x8xbf16>
    %c0_29 = arith.constant 0 : index
    %c0_30 = arith.constant 0 : index
    %c0_31 = arith.constant 0 : index
    %c0_32 = arith.constant 0 : index
    %54 = vector.load %arg6[%c0_29, %c0_30, %c0_31, %c0_32] : memref<1x4x8x32xbf16, #tpu.memory_space<vmem>>, vector<1x1x8x32xbf16>
    %55 = vector.shape_cast %54 : vector<1x1x8x32xbf16> to vector<8x32xbf16>
    %cst_33 = arith.constant dense<0.000000e+00> : vector<16x32xf32>
    %56 = tpu.matmul %53, %55, %cst_33 {dimension_numbers = #tpu.dot_dimension_numbers<[1], [0], [0], [1], [0, 0, 1, 1], [], []>} : vector<16x8xbf16>, vector<8x32xbf16>, vector<16x32xf32> -> vector<16x32xf32>
    %57 = arith.addf %20, %56 : vector<16x32xf32>
    %c0_34 = arith.constant 0 : index
    %c1 = arith.constant 1 : index
    %c0_35 = arith.constant 0 : index
    %c0_36 = arith.constant 0 : index
    %58 = vector.load %arg3[%c0_34, %c1, %c0_35, %c0_36] : memref<1x4x32x8xbf16, #tpu.memory_space<vmem>>, vector<1x1x32x8xbf16>
    %59 = vector.shape_cast %58 : vector<1x1x32x8xbf16> to vector<32x8xbf16>
    %cst_37 = arith.constant dense<0.000000e+00> : vector<16x8xf32>
    %60 = tpu.matmul %18, %59, %cst_37 {dimension_numbers = #tpu.dot_dimension_numbers<[1], [0], [0], [1], [0, 0, 1, 1], [], []>} : vector<16x32xbf16>, vector<32x8xbf16>, vector<16x8xf32> -> vector<16x8xf32>
    %c0_38 = arith.constant 0 : index
    %c1_39 = arith.constant 1 : index
    %c0_40 = arith.constant 0 : index
    %c0_41 = arith.constant 0 : index
    %61 = vector.load %arg4[%c0_38, %c1_39, %c0_40, %c0_41] : memref<1x4x32x8xbf16, #tpu.memory_space<vmem>>, vector<1x1x32x8xbf16>
    %62 = vector.shape_cast %61 : vector<1x1x32x8xbf16> to vector<32x8xbf16>
    %cst_42 = arith.constant dense<0.000000e+00> : vector<16x8xf32>
    %63 = tpu.matmul %18, %62, %cst_42 {dimension_numbers = #tpu.dot_dimension_numbers<[1], [0], [0], [1], [0, 0, 1, 1], [], []>} : vector<16x32xbf16>, vector<32x8xbf16>, vector<16x8xf32> -> vector<16x8xf32>
    %c0_43 = arith.constant 0 : index
    %c1_44 = arith.constant 1 : index
    %c0_45 = arith.constant 0 : index
    %c0_46 = arith.constant 0 : index
    %64 = vector.load %arg5[%c0_43, %c1_44, %c0_45, %c0_46] : memref<1x4x32x8xbf16, #tpu.memory_space<vmem>>, vector<1x1x32x8xbf16>
    %65 = vector.shape_cast %64 : vector<1x1x32x8xbf16> to vector<32x8xbf16>
    %cst_47 = arith.constant dense<0.000000e+00> : vector<16x8xf32>
    %66 = tpu.matmul %18, %65, %cst_47 {dimension_numbers = #tpu.dot_dimension_numbers<[1], [0], [0], [1], [0, 0, 1, 1], [], []>} : vector<16x32xbf16>, vector<32x8xbf16>, vector<16x8xf32> -> vector<16x8xf32>
    %67 = vector.shape_cast %60 : vector<16x8xf32> to vector<2x8x8xf32>
    %68 = arith.truncf %67 : vector<2x8x8xf32> to vector<2x8x8xbf16>
    %69 = vector.shape_cast %63 : vector<16x8xf32> to vector<2x8x8xf32>
    %70 = arith.truncf %69 : vector<2x8x8xf32> to vector<2x8x8xbf16>
    %71 = vector.shape_cast %66 : vector<16x8xf32> to vector<2x8x8xf32>
    %72 = arith.truncf %71 : vector<2x8x8xf32> to vector<2x8x8xbf16>
    "tpu.trace_start"() <{level = 10 : i32, message = "bqd,bkd->bqk"}> : () -> ()
    %cst_48 = arith.constant dense<0.000000e+00> : vector<2x8x8xf32>
    %73 = tpu.matmul %68, %70, %cst_48 {dimension_numbers = #tpu.dot_dimension_numbers<[2], [2], [1], [1], [0, 0, 0, 1, 1, 1], [0], [0]>} : vector<2x8x8xbf16>, vector<2x8x8xbf16>, vector<2x8x8xf32> -> vector<2x8x8xf32>
    "tpu.trace_stop"() : () -> ()
    %74 = vector.shape_cast %19 : vector<8x8xf32> to vector<1x8x8xf32>
    %75 = vector.broadcast %74 : vector<1x8x8xf32> to vector<2x8x8xf32>
    %76 = arith.addf %73, %75 : vector<2x8x8xf32>
    %cst_49 = arith.constant dense<0xFF800000> : vector<2x8xf32>
    %77 = vector.multi_reduction <maximumf>, %76, %cst_49 [2] : vector<2x8x8xf32> to vector<2x8xf32>
    %78 = vector.shape_cast %77 : vector<2x8xf32> to vector<2x8x1xf32>
    %79 = vector.broadcast %78 : vector<2x8x1xf32> to vector<2x8x8xf32>
    %80 = arith.subf %76, %79 : vector<2x8x8xf32>
    %81 = math.exp %80 : vector<2x8x8xf32>
    %cst_50 = arith.constant dense<0.000000e+00> : vector<2x8xf32>
    %82 = vector.multi_reduction <add>, %81, %cst_50 [2] : vector<2x8x8xf32> to vector<2x8xf32>
    %83 = vector.shape_cast %82 : vector<2x8xf32> to vector<2x8x1xf32>
    %84 = tpu.reciprocal %83 {approx = true} : vector<2x8x1xf32> -> vector<2x8x1xf32>
    %85 = vector.broadcast %84 : vector<2x8x1xf32> to vector<2x8x8xf32>
    %86 = arith.mulf %81, %85 : vector<2x8x8xf32>
    %87 = arith.truncf %86 : vector<2x8x8xf32> to vector<2x8x8xbf16>
    "tpu.trace_start"() <{level = 10 : i32, message = "bqk,bkd->bqd"}> : () -> ()
    %cst_51 = arith.constant dense<0.000000e+00> : vector<2x8x8xf32>
    %88 = tpu.matmul %87, %72, %cst_51 {dimension_numbers = #tpu.dot_dimension_numbers<[2], [1], [1], [2], [0, 0, 0, 1, 1, 2], [0], [0]>} : vector<2x8x8xbf16>, vector<2x8x8xbf16>, vector<2x8x8xf32> -> vector<2x8x8xf32>
    "tpu.trace_stop"() : () -> ()
    %89 = vector.shape_cast %88 : vector<2x8x8xf32> to vector<16x8xf32>
    %90 = arith.truncf %89 : vector<16x8xf32> to vector<16x8xbf16>
    %c0_52 = arith.constant 0 : index
    %c1_53 = arith.constant 1 : index
    %c0_54 = arith.constant 0 : index
    %c0_55 = arith.constant 0 : index
    %91 = vector.load %arg6[%c0_52, %c1_53, %c0_54, %c0_55] : memref<1x4x8x32xbf16, #tpu.memory_space<vmem>>, vector<1x1x8x32xbf16>
    %92 = vector.shape_cast %91 : vector<1x1x8x32xbf16> to vector<8x32xbf16>
    %cst_56 = arith.constant dense<0.000000e+00> : vector<16x32xf32>
    %93 = tpu.matmul %90, %92, %cst_56 {dimension_numbers = #tpu.dot_dimension_numbers<[1], [0], [0], [1], [0, 0, 1, 1], [], []>} : vector<16x8xbf16>, vector<8x32xbf16>, vector<16x32xf32> -> vector<16x32xf32>
    %94 = arith.addf %57, %93 : vector<16x32xf32>
    %c0_57 = arith.constant 0 : index
    %c2 = arith.constant 2 : index
    %c0_58 = arith.constant 0 : index
    %c0_59 = arith.constant 0 : index
    %95 = vector.load %arg3[%c0_57, %c2, %c0_58, %c0_59] : memref<1x4x32x8xbf16, #tpu.memory_space<vmem>>, vector<1x1x32x8xbf16>
    %96 = vector.shape_cast %95 : vector<1x1x32x8xbf16> to vector<32x8xbf16>
    %cst_60 = arith.constant dense<0.000000e+00> : vector<16x8xf32>
    %97 = tpu.matmul %18, %96, %cst_60 {dimension_numbers = #tpu.dot_dimension_numbers<[1], [0], [0], [1], [0, 0, 1, 1], [], []>} : vector<16x32xbf16>, vector<32x8xbf16>, vector<16x8xf32> -> vector<16x8xf32>
    %c0_61 = arith.constant 0 : index
    %c2_62 = arith.constant 2 : index
    %c0_63 = arith.constant 0 : index
    %c0_64 = arith.constant 0 : index
    %98 = vector.load %arg4[%c0_61, %c2_62, %c0_63, %c0_64] : memref<1x4x32x8xbf16, #tpu.memory_space<vmem>>, vector<1x1x32x8xbf16>
    %99 = vector.shape_cast %98 : vector<1x1x32x8xbf16> to vector<32x8xbf16>
    %cst_65 = arith.constant dense<0.000000e+00> : vector<16x8xf32>
    %100 = tpu.matmul %18, %99, %cst_65 {dimension_numbers = #tpu.dot_dimension_numbers<[1], [0], [0], [1], [0, 0, 1, 1], [], []>} : vector<16x32xbf16>, vector<32x8xbf16>, vector<16x8xf32> -> vector<16x8xf32>
    %c0_66 = arith.constant 0 : index
    %c2_67 = arith.constant 2 : index
    %c0_68 = arith.constant 0 : index
    %c0_69 = arith.constant 0 : index
    %101 = vector.load %arg5[%c0_66, %c2_67, %c0_68, %c0_69] : memref<1x4x32x8xbf16, #tpu.memory_space<vmem>>, vector<1x1x32x8xbf16>
    %102 = vector.shape_cast %101 : vector<1x1x32x8xbf16> to vector<32x8xbf16>
    %cst_70 = arith.constant dense<0.000000e+00> : vector<16x8xf32>
    %103 = tpu.matmul %18, %102, %cst_70 {dimension_numbers = #tpu.dot_dimension_numbers<[1], [0], [0], [1], [0, 0, 1, 1], [], []>} : vector<16x32xbf16>, vector<32x8xbf16>, vector<16x8xf32> -> vector<16x8xf32>
    %104 = vector.shape_cast %97 : vector<16x8xf32> to vector<2x8x8xf32>
    %105 = arith.truncf %104 : vector<2x8x8xf32> to vector<2x8x8xbf16>
    %106 = vector.shape_cast %100 : vector<16x8xf32> to vector<2x8x8xf32>
    %107 = arith.truncf %106 : vector<2x8x8xf32> to vector<2x8x8xbf16>
    %108 = vector.shape_cast %103 : vector<16x8xf32> to vector<2x8x8xf32>
    %109 = arith.truncf %108 : vector<2x8x8xf32> to vector<2x8x8xbf16>
    "tpu.trace_start"() <{level = 10 : i32, message = "bqd,bkd->bqk"}> : () -> ()
    %cst_71 = arith.constant dense<0.000000e+00> : vector<2x8x8xf32>
    %110 = tpu.matmul %105, %107, %cst_71 {dimension_numbers = #tpu.dot_dimension_numbers<[2], [2], [1], [1], [0, 0, 0, 1, 1, 1], [0], [0]>} : vector<2x8x8xbf16>, vector<2x8x8xbf16>, vector<2x8x8xf32> -> vector<2x8x8xf32>
    "tpu.trace_stop"() : () -> ()
    %111 = vector.shape_cast %19 : vector<8x8xf32> to vector<1x8x8xf32>
    %112 = vector.broadcast %111 : vector<1x8x8xf32> to vector<2x8x8xf32>
    %113 = arith.addf %110, %112 : vector<2x8x8xf32>
    %cst_72 = arith.constant dense<0xFF800000> : vector<2x8xf32>
    %114 = vector.multi_reduction <maximumf>, %113, %cst_72 [2] : vector<2x8x8xf32> to vector<2x8xf32>
    %115 = vector.shape_cast %114 : vector<2x8xf32> to vector<2x8x1xf32>
    %116 = vector.broadcast %115 : vector<2x8x1xf32> to vector<2x8x8xf32>
    %117 = arith.subf %113, %116 : vector<2x8x8xf32>
    %118 = math.exp %117 : vector<2x8x8xf32>
    %cst_73 = arith.constant dense<0.000000e+00> : vector<2x8xf32>
    %119 = vector.multi_reduction <add>, %118, %cst_73 [2] : vector<2x8x8xf32> to vector<2x8xf32>
    %120 = vector.shape_cast %119 : vector<2x8xf32> to vector<2x8x1xf32>
    %121 = tpu.reciprocal %120 {approx = true} : vector<2x8x1xf32> -> vector<2x8x1xf32>
    %122 = vector.broadcast %121 : vector<2x8x1xf32> to vector<2x8x8xf32>
    %123 = arith.mulf %118, %122 : vector<2x8x8xf32>
    %124 = arith.truncf %123 : vector<2x8x8xf32> to vector<2x8x8xbf16>
    "tpu.trace_start"() <{level = 10 : i32, message = "bqk,bkd->bqd"}> : () -> ()
    %cst_74 = arith.constant dense<0.000000e+00> : vector<2x8x8xf32>
    %125 = tpu.matmul %124, %109, %cst_74 {dimension_numbers = #tpu.dot_dimension_numbers<[2], [1], [1], [2], [0, 0, 0, 1, 1, 2], [0], [0]>} : vector<2x8x8xbf16>, vector<2x8x8xbf16>, vector<2x8x8xf32> -> vector<2x8x8xf32>
    "tpu.trace_stop"() : () -> ()
    %126 = vector.shape_cast %125 : vector<2x8x8xf32> to vector<16x8xf32>
    %127 = arith.truncf %126 : vector<16x8xf32> to vector<16x8xbf16>
    %c0_75 = arith.constant 0 : index
    %c2_76 = arith.constant 2 : index
    %c0_77 = arith.constant 0 : index
    %c0_78 = arith.constant 0 : index
    %128 = vector.load %arg6[%c0_75, %c2_76, %c0_77, %c0_78] : memref<1x4x8x32xbf16, #tpu.memory_space<vmem>>, vector<1x1x8x32xbf16>
    %129 = vector.shape_cast %128 : vector<1x1x8x32xbf16> to vector<8x32xbf16>
    %cst_79 = arith.constant dense<0.000000e+00> : vector<16x32xf32>
    %130 = tpu.matmul %127, %129, %cst_79 {dimension_numbers = #tpu.dot_dimension_numbers<[1], [0], [0], [1], [0, 0, 1, 1], [], []>} : vector<16x8xbf16>, vector<8x32xbf16>, vector<16x32xf32> -> vector<16x32xf32>
    %131 = arith.addf %94, %130 : vector<16x32xf32>
    %c0_80 = arith.constant 0 : index
    %c3 = arith.constant 3 : index
    %c0_81 = arith.constant 0 : index
    %c0_82 = arith.constant 0 : index
    %132 = vector.load %arg3[%c0_80, %c3, %c0_81, %c0_82] : memref<1x4x32x8xbf16, #tpu.memory_space<vmem>>, vector<1x1x32x8xbf16>
    %133 = vector.shape_cast %132 : vector<1x1x32x8xbf16> to vector<32x8xbf16>
    %cst_83 = arith.constant dense<0.000000e+00> : vector<16x8xf32>
    %134 = tpu.matmul %18, %133, %cst_83 {dimension_numbers = #tpu.dot_dimension_numbers<[1], [0], [0], [1], [0, 0, 1, 1], [], []>} : vector<16x32xbf16>, vector<32x8xbf16>, vector<16x8xf32> -> vector<16x8xf32>
    %c0_84 = arith.constant 0 : index
    %c3_85 = arith.constant 3 : index
    %c0_86 = arith.constant 0 : index
    %c0_87 = arith.constant 0 : index
    %135 = vector.load %arg4[%c0_84, %c3_85, %c0_86, %c0_87] : memref<1x4x32x8xbf16, #tpu.memory_space<vmem>>, vector<1x1x32x8xbf16>
    %136 = vector.shape_cast %135 : vector<1x1x32x8xbf16> to vector<32x8xbf16>
    %cst_88 = arith.constant dense<0.000000e+00> : vector<16x8xf32>
    %137 = tpu.matmul %18, %136, %cst_88 {dimension_numbers = #tpu.dot_dimension_numbers<[1], [0], [0], [1], [0, 0, 1, 1], [], []>} : vector<16x32xbf16>, vector<32x8xbf16>, vector<16x8xf32> -> vector<16x8xf32>
    %c0_89 = arith.constant 0 : index
    %c3_90 = arith.constant 3 : index
    %c0_91 = arith.constant 0 : index
    %c0_92 = arith.constant 0 : index
    %138 = vector.load %arg5[%c0_89, %c3_90, %c0_91, %c0_92] : memref<1x4x32x8xbf16, #tpu.memory_space<vmem>>, vector<1x1x32x8xbf16>
    %139 = vector.shape_cast %138 : vector<1x1x32x8xbf16> to vector<32x8xbf16>
    %cst_93 = arith.constant dense<0.000000e+00> : vector<16x8xf32>
    %140 = tpu.matmul %18, %139, %cst_93 {dimension_numbers = #tpu.dot_dimension_numbers<[1], [0], [0], [1], [0, 0, 1, 1], [], []>} : vector<16x32xbf16>, vector<32x8xbf16>, vector<16x8xf32> -> vector<16x8xf32>
    %141 = vector.shape_cast %134 : vector<16x8xf32> to vector<2x8x8xf32>
    %142 = arith.truncf %141 : vector<2x8x8xf32> to vector<2x8x8xbf16>
    %143 = vector.shape_cast %137 : vector<16x8xf32> to vector<2x8x8xf32>
    %144 = arith.truncf %143 : vector<2x8x8xf32> to vector<2x8x8xbf16>
    %145 = vector.shape_cast %140 : vector<16x8xf32> to vector<2x8x8xf32>
    %146 = arith.truncf %145 : vector<2x8x8xf32> to vector<2x8x8xbf16>
    "tpu.trace_start"() <{level = 10 : i32, message = "bqd,bkd->bqk"}> : () -> ()
    %cst_94 = arith.constant dense<0.000000e+00> : vector<2x8x8xf32>
    %147 = tpu.matmul %142, %144, %cst_94 {dimension_numbers = #tpu.dot_dimension_numbers<[2], [2], [1], [1], [0, 0, 0, 1, 1, 1], [0], [0]>} : vector<2x8x8xbf16>, vector<2x8x8xbf16>, vector<2x8x8xf32> -> vector<2x8x8xf32>
    "tpu.trace_stop"() : () -> ()
    %148 = vector.shape_cast %19 : vector<8x8xf32> to vector<1x8x8xf32>
    %149 = vector.broadcast %148 : vector<1x8x8xf32> to vector<2x8x8xf32>
    %150 = arith.addf %147, %149 : vector<2x8x8xf32>
    %cst_95 = arith.constant dense<0xFF800000> : vector<2x8xf32>
    %151 = vector.multi_reduction <maximumf>, %150, %cst_95 [2] : vector<2x8x8xf32> to vector<2x8xf32>
    %152 = vector.shape_cast %151 : vector<2x8xf32> to vector<2x8x1xf32>
    %153 = vector.broadcast %152 : vector<2x8x1xf32> to vector<2x8x8xf32>
    %154 = arith.subf %150, %153 : vector<2x8x8xf32>
    %155 = math.exp %154 : vector<2x8x8xf32>
    %cst_96 = arith.constant dense<0.000000e+00> : vector<2x8xf32>
    %156 = vector.multi_reduction <add>, %155, %cst_96 [2] : vector<2x8x8xf32> to vector<2x8xf32>
    %157 = vector.shape_cast %156 : vector<2x8xf32> to vector<2x8x1xf32>
    %158 = tpu.reciprocal %157 {approx = true} : vector<2x8x1xf32> -> vector<2x8x1xf32>
    %159 = vector.broadcast %158 : vector<2x8x1xf32> to vector<2x8x8xf32>
    %160 = arith.mulf %155, %159 : vector<2x8x8xf32>
    %161 = arith.truncf %160 : vector<2x8x8xf32> to vector<2x8x8xbf16>
    "tpu.trace_start"() <{level = 10 : i32, message = "bqk,bkd->bqd"}> : () -> ()
    %cst_97 = arith.constant dense<0.000000e+00> : vector<2x8x8xf32>
    %162 = tpu.matmul %161, %146, %cst_97 {dimension_numbers = #tpu.dot_dimension_numbers<[2], [1], [1], [2], [0, 0, 0, 1, 1, 2], [0], [0]>} : vector<2x8x8xbf16>, vector<2x8x8xbf16>, vector<2x8x8xf32> -> vector<2x8x8xf32>
    "tpu.trace_stop"() : () -> ()
    %163 = vector.shape_cast %162 : vector<2x8x8xf32> to vector<16x8xf32>
    %164 = arith.truncf %163 : vector<16x8xf32> to vector<16x8xbf16>
    %c0_98 = arith.constant 0 : index
    %c3_99 = arith.constant 3 : index
    %c0_100 = arith.constant 0 : index
    %c0_101 = arith.constant 0 : index
    %165 = vector.load %arg6[%c0_98, %c3_99, %c0_100, %c0_101] : memref<1x4x8x32xbf16, #tpu.memory_space<vmem>>, vector<1x1x8x32xbf16>
    %166 = vector.shape_cast %165 : vector<1x1x8x32xbf16> to vector<8x32xbf16>
    %cst_102 = arith.constant dense<0.000000e+00> : vector<16x32xf32>
    %167 = tpu.matmul %164, %166, %cst_102 {dimension_numbers = #tpu.dot_dimension_numbers<[1], [0], [0], [1], [0, 0, 1, 1], [], []>} : vector<16x8xbf16>, vector<8x32xbf16>, vector<16x32xf32> -> vector<16x32xf32>
    %168 = arith.addf %131, %167 : vector<16x32xf32>
    %c0_103 = arith.constant 0 : index
    %c0_104 = arith.constant 0 : index
    %c0_105 = arith.constant 0 : index
    %169 = vector.load %arg7[%c0_103, %c0_104, %c0_105] : memref<1x1x32xf32, #tpu.memory_space<vmem>>, vector<1x1x32xf32>
    %170 = vector.shape_cast %169 : vector<1x1x32xf32> to vector<1x32xf32>
    %171 = vector.broadcast %170 : vector<1x32xf32> to vector<16x32xf32>
    %172 = arith.addf %168, %171 : vector<16x32xf32>
    %173 = arith.addf %172, %3 : vector<16x32xf32>
    %174 = arith.truncf %173 : vector<16x32xf32> to vector<16x32xbf16>
    %c0_106 = arith.constant 0 : index
    %c0_107 = arith.constant 0 : index
    %c0_108 = arith.constant 0 : index
    %175 = vector.load %arg8[%c0_106, %c0_107, %c0_108] : memref<1x32x64xbf16, #tpu.memory_space<vmem>>, vector<1x32x64xbf16>
    %176 = vector.shape_cast %175 : vector<1x32x64xbf16> to vector<32x64xbf16>
    %cst_109 = arith.constant dense<0.000000e+00> : vector<16x64xf32>
    %177 = tpu.matmul %174, %176, %cst_109 {dimension_numbers = #tpu.dot_dimension_numbers<[1], [0], [0], [1], [0, 0, 1, 1], [], []>} : vector<16x32xbf16>, vector<32x64xbf16>, vector<16x64xf32> -> vector<16x64xf32>
    %c0_110 = arith.constant 0 : index
    %c0_111 = arith.constant 0 : index
    %c0_112 = arith.constant 0 : index
    %178 = vector.load %arg9[%c0_110, %c0_111, %c0_112] : memref<1x1x64xf32, #tpu.memory_space<vmem>>, vector<1x1x64xf32>
    %179 = vector.shape_cast %178 : vector<1x1x64xf32> to vector<1x64xf32>
    %180 = vector.broadcast %179 : vector<1x64xf32> to vector<16x64xf32>
    %181 = arith.addf %177, %180 : vector<16x64xf32>
    %c0_113 = arith.constant 0 : index
    %c0_114 = arith.constant 0 : index
    %c0_115 = arith.constant 0 : index
    %182 = vector.load %arg10[%c0_113, %c0_114, %c0_115] : memref<1x32x64xbf16, #tpu.memory_space<vmem>>, vector<1x32x64xbf16>
    %183 = vector.shape_cast %182 : vector<1x32x64xbf16> to vector<32x64xbf16>
    %cst_116 = arith.constant dense<0.000000e+00> : vector<16x64xf32>
    %184 = tpu.matmul %174, %183, %cst_116 {dimension_numbers = #tpu.dot_dimension_numbers<[1], [0], [0], [1], [0, 0, 1, 1], [], []>} : vector<16x32xbf16>, vector<32x64xbf16>, vector<16x64xf32> -> vector<16x64xf32>
    %c0_117 = arith.constant 0 : index
    %c0_118 = arith.constant 0 : index
    %c0_119 = arith.constant 0 : index
    %185 = vector.load %arg11[%c0_117, %c0_118, %c0_119] : memref<1x1x64xf32, #tpu.memory_space<vmem>>, vector<1x1x64xf32>
    %186 = vector.shape_cast %185 : vector<1x1x64xf32> to vector<1x64xf32>
    %187 = vector.broadcast %186 : vector<1x64xf32> to vector<16x64xf32>
    %188 = arith.addf %184, %187 : vector<16x64xf32>
    %cst_120 = arith.constant 0.000000e+00 : f32
    %189 = vector.broadcast %cst_120 : f32 to vector<16x64xf32>
    %190 = arith.subf %189, %181 : vector<16x64xf32>
    %191 = math.exp %190 : vector<16x64xf32>
    %cst_121 = arith.constant 1.000000e+00 : f32
    %192 = vector.broadcast %cst_121 : f32 to vector<16x64xf32>
    %193 = arith.addf %192, %191 : vector<16x64xf32>
    %cst_122 = arith.constant 1.000000e+00 : f32
    %194 = vector.broadcast %cst_122 : f32 to vector<16x64xf32>
    %195 = arith.divf %194, %193 : vector<16x64xf32>
    %196 = arith.mulf %181, %195 : vector<16x64xf32>
    %197 = arith.mulf %196, %188 : vector<16x64xf32>
    %198 = arith.truncf %197 : vector<16x64xf32> to vector<16x64xbf16>
    %c0_123 = arith.constant 0 : index
    %c0_124 = arith.constant 0 : index
    %c0_125 = arith.constant 0 : index
    %199 = vector.load %arg12[%c0_123, %c0_124, %c0_125] : memref<1x64x32xbf16, #tpu.memory_space<vmem>>, vector<1x64x32xbf16>
    %200 = vector.shape_cast %199 : vector<1x64x32xbf16> to vector<64x32xbf16>
    %cst_126 = arith.constant dense<0.000000e+00> : vector<16x32xf32>
    %201 = tpu.matmul %198, %200, %cst_126 {dimension_numbers = #tpu.dot_dimension_numbers<[1], [0], [0], [1], [0, 0, 1, 1], [], []>} : vector<16x64xbf16>, vector<64x32xbf16>, vector<16x32xf32> -> vector<16x32xf32>
    %c0_127 = arith.constant 0 : index
    %c0_128 = arith.constant 0 : index
    %c0_129 = arith.constant 0 : index
    %202 = vector.load %arg13[%c0_127, %c0_128, %c0_129] : memref<1x1x32xf32, #tpu.memory_space<vmem>>, vector<1x1x32xf32>
    %203 = vector.shape_cast %202 : vector<1x1x32xf32> to vector<1x32xf32>
    %204 = vector.broadcast %203 : vector<1x32xf32> to vector<16x32xf32>
    %205 = arith.addf %201, %204 : vector<16x32xf32>
    %206 = arith.addf %205, %173 : vector<16x32xf32>
    %c0_130 = arith.constant 0 : index
    %c0_131 = arith.constant 0 : index
    %c0_132 = arith.constant 0 : index
    %207 = vector.load %arg15[%c0_130, %c0_131, %c0_132] : memref<1x1x32xf32, #tpu.memory_space<vmem>>, vector<1x1x32xf32>
    %208 = vector.shape_cast %207 : vector<1x1x32xf32> to vector<1x32xf32>
    %209 = arith.mulf %206, %206 : vector<16x32xf32>
    %cst_133 = arith.constant dense<0.000000e+00> : vector<16xf32>
    %210 = vector.multi_reduction <add>, %209, %cst_133 [1] : vector<16x32xf32> to vector<16xf32>
    %211 = vector.shape_cast %210 : vector<16xf32> to vector<16x1xf32>
    %cst_134 = arith.constant 3.200000e+01 : f32
    %212 = vector.broadcast %cst_134 : f32 to vector<16x1xf32>
    %213 = arith.divf %211, %212 : vector<16x1xf32>
    %cst_135 = arith.constant 9.99999997E-7 : f32
    %214 = vector.broadcast %cst_135 : f32 to vector<16x1xf32>
    %215 = arith.addf %213, %214 : vector<16x1xf32>
    %216 = math.rsqrt %215 : vector<16x1xf32>
    %217 = vector.broadcast %216 : vector<16x1xf32> to vector<16x32xf32>
    %218 = arith.mulf %206, %217 : vector<16x32xf32>
    %219 = vector.broadcast %208 : vector<1x32xf32> to vector<16x32xf32>
    %220 = arith.mulf %218, %219 : vector<16x32xf32>
    %c0_136 = arith.constant 0 : index
    %c0_137 = arith.constant 0 : index
    %221 = vector.load %arg20[%c0_136, %c0_137] : memref<16x32xf32, #tpu.memory_space<vmem>>, vector<16x32xf32>
    tpu.vector_store %arg20[%c0_136, %c0_137], %220 {strides = array<i32>} : memref<16x32xf32, #tpu.memory_space<vmem>>, vector<16x32xf32>,
    %c1_i32 = arith.constant 1 : i32
    %222 = arith.cmpi eq, %arg0, %c1_i32 : i32
    %223 = arith.extui %222 : i1 to i32
    %c0_i32_138 = arith.constant 0 : i32
    %224 = arith.cmpi ne, %223, %c0_i32_138 : i32
    scf.if %224 {
      %c0_139 = arith.constant 0 : index
      %c0_140 = arith.constant 0 : index
      %225 = vector.load %arg16[%c0_139, %c0_140] : memref<1x32xf32, #tpu.memory_space<vmem>>, vector<1x32xf32>
      %226 = arith.mulf %220, %220 : vector<16x32xf32>
      %cst_141 = arith.constant dense<0.000000e+00> : vector<16xf32>
      %227 = vector.multi_reduction <add>, %226, %cst_141 [1] : vector<16x32xf32> to vector<16xf32>
      %228 = vector.shape_cast %227 : vector<16xf32> to vector<16x1xf32>
      %cst_142 = arith.constant 3.200000e+01 : f32
      %229 = vector.broadcast %cst_142 : f32 to vector<16x1xf32>
      %230 = arith.divf %228, %229 : vector<16x1xf32>
      %cst_143 = arith.constant 9.99999997E-7 : f32
      %231 = vector.broadcast %cst_143 : f32 to vector<16x1xf32>
      %232 = arith.addf %230, %231 : vector<16x1xf32>
      %233 = math.rsqrt %232 : vector<16x1xf32>
      %234 = vector.broadcast %233 : vector<16x1xf32> to vector<16x32xf32>
      %235 = arith.mulf %220, %234 : vector<16x32xf32>
      %236 = vector.broadcast %225 : vector<1x32xf32> to vector<16x32xf32>
      %237 = arith.mulf %235, %236 : vector<16x32xf32>
      %238 = arith.truncf %237 : vector<16x32xf32> to vector<16x32xbf16>
      %c0_144 = arith.constant 0 : index
      %c0_145 = arith.constant 0 : index
      %239 = vector.load %arg17[%c0_144, %c0_145] : memref<32x128xbf16, #tpu.memory_space<vmem>>, vector<32x128xbf16>
      %cst_146 = arith.constant dense<0.000000e+00> : vector<16x128xf32>
      %240 = tpu.matmul %238, %239, %cst_146 {dimension_numbers = #tpu.dot_dimension_numbers<[1], [0], [0], [1], [0, 0, 1, 1], [], []>} : vector<16x32xbf16>, vector<32x128xbf16>, vector<16x128xf32> -> vector<16x128xf32>
      %c0_147 = arith.constant 0 : index
      %c0_148 = arith.constant 0 : index
      %241 = vector.load %arg18[%c0_147, %c0_148] : memref<1x128xf32, #tpu.memory_space<vmem>>, vector<1x128xf32>
      %242 = vector.broadcast %241 : vector<1x128xf32> to vector<16x128xf32>
      %243 = arith.addf %240, %242 : vector<16x128xf32>
      %c0_149 = arith.constant 0 : index
      %c0_150 = arith.constant 0 : index
      %244 = vector.load %arg19[%c0_149, %c0_150] : memref<16x128xf32, #tpu.memory_space<vmem>>, vector<16x128xf32>
      tpu.vector_store %arg19[%c0_149, %c0_150], %243 {strides = array<i32>} : memref<16x128xf32, #tpu.memory_space<vmem>>, vector<16x128xf32>,
    } else {
    }
    return
  }
  func.func @transform_0(%arg0: i32) -> (i32, i32) {
    %c0_i32 = arith.constant 0 : i32
    %c0_i32_0 = arith.constant 0 : i32
    %c0_i32_1 = arith.constant 0 : i32
    return %c0_i32, %c0_i32_0 : i32, i32
  }
  func.func @transform_1(%arg0: i32) -> (i32, i32) {
    %c0_i32 = arith.constant 0 : i32
    %c0_i32_0 = arith.constant 0 : i32
    %c0_i32_1 = arith.constant 0 : i32
    return %c0_i32, %c0_i32_0 : i32, i32
  }
  func.func @transform_2(%arg0: i32) -> (i32, i32, i32, i32) {
    %c0_i32 = arith.constant 0 : i32
    %c0_i32_0 = arith.constant 0 : i32
    %c0_i32_1 = arith.constant 0 : i32
    %c0_i32_2 = arith.constant 0 : i32
    return %arg0, %c0_i32, %c0_i32_0, %c0_i32_1 : i32, i32, i32, i32
  }
  func.func @transform_3(%arg0: i32) -> (i32, i32, i32, i32) {
    %c0_i32 = arith.constant 0 : i32
    %c0_i32_0 = arith.constant 0 : i32
    %c0_i32_1 = arith.constant 0 : i32
    %c0_i32_2 = arith.constant 0 : i32
    return %arg0, %c0_i32, %c0_i32_0, %c0_i32_1 : i32, i32, i32, i32
  }
  func.func @transform_4(%arg0: i32) -> (i32, i32, i32, i32) {
    %c0_i32 = arith.constant 0 : i32
    %c0_i32_0 = arith.constant 0 : i32
    %c0_i32_1 = arith.constant 0 : i32
    %c0_i32_2 = arith.constant 0 : i32
    return %arg0, %c0_i32, %c0_i32_0, %c0_i32_1 : i32, i32, i32, i32
  }
  func.func @transform_5(%arg0: i32) -> (i32, i32, i32, i32) {
    %c0_i32 = arith.constant 0 : i32
    %c0_i32_0 = arith.constant 0 : i32
    %c0_i32_1 = arith.constant 0 : i32
    %c0_i32_2 = arith.constant 0 : i32
    return %arg0, %c0_i32, %c0_i32_0, %c0_i32_1 : i32, i32, i32, i32
  }
  func.func @transform_6(%arg0: i32) -> (i32, i32, i32) {
    %c0_i32 = arith.constant 0 : i32
    %c0_i32_0 = arith.constant 0 : i32
    %c0_i32_1 = arith.constant 0 : i32
    return %arg0, %c0_i32, %c0_i32_0 : i32, i32, i32
  }
  func.func @transform_7(%arg0: i32) -> (i32, i32, i32) {
    %c0_i32 = arith.constant 0 : i32
    %c0_i32_0 = arith.constant 0 : i32
    %c0_i32_1 = arith.constant 0 : i32
    return %arg0, %c0_i32, %c0_i32_0 : i32, i32, i32
  }
  func.func @transform_8(%arg0: i32) -> (i32, i32, i32) {
    %c0_i32 = arith.constant 0 : i32
    %c0_i32_0 = arith.constant 0 : i32
    %c0_i32_1 = arith.constant 0 : i32
    return %arg0, %c0_i32, %c0_i32_0 : i32, i32, i32
  }
  func.func @transform_9(%arg0: i32) -> (i32, i32, i32) {
    %c0_i32 = arith.constant 0 : i32
    %c0_i32_0 = arith.constant 0 : i32
    %c0_i32_1 = arith.constant 0 : i32
    return %arg0, %c0_i32, %c0_i32_0 : i32, i32, i32
  }
  func.func @transform_10(%arg0: i32) -> (i32, i32, i32) {
    %c0_i32 = arith.constant 0 : i32
    %c0_i32_0 = arith.constant 0 : i32
    %c0_i32_1 = arith.constant 0 : i32
    return %arg0, %c0_i32, %c0_i32_0 : i32, i32, i32
  }
  func.func @transform_11(%arg0: i32) -> (i32, i32, i32) {
    %c0_i32 = arith.constant 0 : i32
    %c0_i32_0 = arith.constant 0 : i32
    %c0_i32_1 = arith.constant 0 : i32
    return %arg0, %c0_i32, %c0_i32_0 : i32, i32, i32
  }
  func.func @transform_12(%arg0: i32) -> (i32, i32, i32) {
    %c0_i32 = arith.constant 0 : i32
    %c0_i32_0 = arith.constant 0 : i32
    %c0_i32_1 = arith.constant 0 : i32
    return %arg0, %c0_i32, %c0_i32_0 : i32, i32, i32
  }
  func.func @transform_13(%arg0: i32) -> (i32, i32, i32) {
    %c0_i32 = arith.constant 0 : i32
    %c0_i32_0 = arith.constant 0 : i32
    %c0_i32_1 = arith.constant 0 : i32
    return %arg0, %c0_i32, %c0_i32_0 : i32, i32, i32
  }
  func.func @transform_14(%arg0: i32) -> (i32, i32, i32) {
    %c0_i32 = arith.constant 0 : i32
    %c0_i32_0 = arith.constant 0 : i32
    %c0_i32_1 = arith.constant 0 : i32
    return %arg0, %c0_i32, %c0_i32_0 : i32, i32, i32
  }
  func.func @transform_15(%arg0: i32) -> (i32, i32) {
    %c0_i32 = arith.constant 0 : i32
    %c0_i32_0 = arith.constant 0 : i32
    %c0_i32_1 = arith.constant 0 : i32
    return %c0_i32, %c0_i32_0 : i32, i32
  }
  func.func @transform_16(%arg0: i32) -> (i32, i32) {
    %c0_i32 = arith.constant 0 : i32
    %c0_i32_0 = arith.constant 0 : i32
    %c0_i32_1 = arith.constant 0 : i32
    return %c0_i32, %c0_i32_0 : i32, i32
  }
  func.func @transform_17(%arg0: i32) -> (i32, i32) {
    %c0_i32 = arith.constant 0 : i32
    %c0_i32_0 = arith.constant 0 : i32
    %c0_i32_1 = arith.constant 0 : i32
    return %c0_i32, %c0_i32_0 : i32, i32
  }
  func.func @transform_18(%arg0: i32) -> (i32, i32) {
    %c0_i32 = arith.constant 0 : i32
    %c0_i32_0 = arith.constant 0 : i32
    %c0_i32_1 = arith.constant 0 : i32
    return %c0_i32, %c0_i32_0 : i32, i32
  }
}

</mosaic_0001>

<llo_original>
// kernel: tpu_custom_call.1
$region0: #{tpu_custom_call.1}
  #allocation0 [shape = 'u32[]', space=smem, size = 0x4, offset = 0x4, fixed_abs, tag = 'smem constant byte address 0x4 - core index']
  #allocation1 [shape = 'u32[144,128]{1,0:T(1,128)}', space=vmem, size = 0x12000, scoped, tag = 'internal scratch']
  #allocation2 [shape = 'f32[16,32]{1,0:T(8,128)}', space=vmem, size = 0x2000, scoped, tag = 'scratch operand']
  %s0 = inlined_call_operand.vmem [shape: f32[16,32], index: 0, kind: input, shape index: {}]
  %s1 = inlined_call_operand.vmem [shape: f32[8,8], index: 1, kind: input, shape index: {}]
  %s2 = inlined_call_operand.vmem [shape: bf16[2,4,32,8], index: 2, kind: input, shape index: {}]
  %s3 = inlined_call_operand.vmem [shape: bf16[2,4,32,8], index: 3, kind: input, shape index: {}]
  %s4 = inlined_call_operand.vmem [shape: bf16[2,4,32,8], index: 4, kind: input, shape index: {}]
  %s5 = inlined_call_operand.vmem [shape: bf16[2,4,8,32], index: 5, kind: input, shape index: {}]
  %s6 = inlined_call_operand.vmem [shape: f32[2,1,32], index: 6, kind: input, shape index: {}]
  %s7 = inlined_call_operand.vmem [shape: bf16[2,32,64], index: 7, kind: input, shape index: {}]
  %s8 = inlined_call_operand.vmem [shape: f32[2,1,64], index: 8, kind: input, shape index: {}]
  %s9 = inlined_call_operand.vmem [shape: bf16[2,32,64], index: 9, kind: input, shape index: {}]
  %s10 = inlined_call_operand.vmem [shape: f32[2,1,64], index: 10, kind: input, shape index: {}]
  %s11 = inlined_call_operand.vmem [shape: bf16[2,64,32], index: 11, kind: input, shape index: {}]
  %s12 = inlined_call_operand.vmem [shape: f32[2,1,32], index: 12, kind: input, shape index: {}]
  %s13 = inlined_call_operand.vmem [shape: f32[2,1,32], index: 13, kind: input, shape index: {}]
  %s14 = inlined_call_operand.vmem [shape: f32[2,1,32], index: 14, kind: input, shape index: {}]
  %s15 = inlined_call_operand.vmem [shape: f32[1,32], index: 15, kind: input, shape index: {}]
  %s16 = inlined_call_operand.vmem [shape: bf16[32,128], index: 16, kind: input, shape index: {}]
  %s17 = inlined_call_operand.vmem [shape: f32[1,128], index: 17, kind: input, shape index: {}]
  %s18 = inlined_call_operand.hbm [shape: f32[16,128], index: 18, kind: output, shape index: {}]
  %s19 = sld [smem:[#allocation0]]
  $region113: #{tpu_custom_call.1} parent=0
    _
  %s21 = ssub.s32 1, %s19
  %s22 = scalar_select 0, %s21, %s19
  $region1: #{tpu_custom_call.1} parent=0
    #allocation3 [shape = 'u8[8192]{0}', space=vmem, size = 0x2000, scoped, tag = 'output window, operand 0, single buffered']
    #allocation4 [shape = 's32[2]{0}', space=sflag, size = 0x8, scoped, tag = 'scoped memory for tpu_custom_call.1']
    %23 = vsyncpa [#allocation4], 0
    loop: start=0, step=1, limit=4
    $region2: #{tpu_custom_call.1} parent=1 // loop_pre_header
      _
    $region3: #{tpu_custom_call.1} parent=1 // loop_header
      %s25 = sphi 0, %s29
      %p26 = scmp.ge.s32.totalorder %s25, 4
      %s33 = sphi 0, %s33
      %s35 = sphi 0, %s33
      %s36 = sphi 0, %s35
      %s50 = sphi 0, %s36
      %s54 = sphi 0, %s54
      %s56 = sphi 0, %s54
      %s57 = sphi 0, %s56
      %s71 = sphi 0, %s57
      %s77 = sphi 0, %s79
      %s80 = sphi 0, %s77
      %s81 = sphi 0, %s80
      %s97 = sphi 0, %s81
      %s103 = sphi 0, %s105
      %s106 = sphi 0, %s103
      %s107 = sphi 0, %s106
      %s123 = sphi 0, %s107
      %s129 = sphi 0, %s131
      %s132 = sphi 0, %s129
      %s133 = sphi 0, %s132
      %s149 = sphi 0, %s133
      %s155 = sphi 0, %s157
      %s158 = sphi 0, %s155
      %s159 = sphi 0, %s158
      %s175 = sphi 0, %s159
      %s181 = sphi 0, %s183
      %s184 = sphi 0, %s181
      %s185 = sphi 0, %s184
      %s201 = sphi 0, %s185
      %s207 = sphi 0, %s209
      %s210 = sphi 0, %s207
      %s211 = sphi 0, %s210
      %s227 = sphi 0, %s211
      %s233 = sphi 0, %s235
      %s236 = sphi 0, %s233
      %s237 = sphi 0, %s236
      %s253 = sphi 0, %s237
      %s259 = sphi 0, %s261
      %s262 = sphi 0, %s259
      %s263 = sphi 0, %s262
      %s279 = sphi 0, %s263
      %s285 = sphi 0, %s287
      %s288 = sphi 0, %s285
      %s289 = sphi 0, %s288
      %s305 = sphi 0, %s289
      %s311 = sphi 0, %s313
      %s314 = sphi 0, %s311
      %s315 = sphi 0, %s314
      %s331 = sphi 0, %s315
      %s337 = sphi 0, %s339
      %s340 = sphi 0, %s337
      %s341 = sphi 0, %s340
      %s357 = sphi 0, %s341
      %s363 = sphi 0, %s365
      %s366 = sphi 0, %s363
      %s367 = sphi 0, %s366
      %s383 = sphi 0, %s367
      %s389 = sphi 0, %s391
      %s392 = sphi 0, %s389
      %s393 = sphi 0, %s392
      %s409 = sphi 0, %s393
      %s413 = sphi 0, %s413
      %s415 = sphi 0, %s413
      %s416 = sphi 0, %s415
      %s430 = sphi 0, %s416
      %s434 = sphi 0, %s434
      %s436 = sphi 0, %s434
      %s437 = sphi 0, %s436
      %s451 = sphi 0, %s437
      %s455 = sphi 0, %s455
      %s457 = sphi 0, %s455
      %s458 = sphi 0, %s457
      %s472 = sphi 0, %s458
      %s476 = sphi 0, %s476
      %s478 = sphi 0, %s476
      %s479 = sphi 0, %s478
      %s493 = sphi 0, %s479
    $region4: #{tpu_custom_call.1} parent=1 // loop_header_branch
      %28 = sbr.rel (%p26) target = $region8
    $region5: #{tpu_custom_call.1} parent=1 // loop_body
      %s30 = ssub.s32 %s25, 1
      %s31 = ssub.s32 %s25, 2
      %s32 = sadd.s32 %s25, 1
      %s34 = sadd.s32 %s33, 1
      %p37 = scmp.eq.s32.totalorder %s25, 1
      %p38 = scmp.ne.s32.totalorder %s33, %s35
      %p39 = scmp.eq.s32.totalorder %s25, 0
      %p40 = por %p38, %p39
      %p41 = scmp.ne.s32.totalorder %s33, %s35
      %p42 = scmp.eq.s32.totalorder %s30, 1
      %p43 = por %p41, %p42
      %p44 = scmp.ne.s32.totalorder %s35, %s36
      %p45 = scmp.eq.s32.totalorder %s30, 0
      %p46 = por %p44, %p45
      %p47 = scmp.ne.s32.totalorder %s35, %s36
      %p48 = scmp.eq.s32.totalorder %s31, 1
      %p49 = por %p47, %p48
      %p51 = scmp.ne.s32.totalorder %s36, %s50
      %p52 = scmp.eq.s32.totalorder %s31, 0
      %p53 = por %p51, %p52
      %s55 = sadd.s32 %s54, 1
      %p58 = scmp.eq.s32.totalorder %s25, 1
      %p59 = scmp.ne.s32.totalorder %s54, %s56
      %p60 = scmp.eq.s32.totalorder %s25, 0
      %p61 = por %p59, %p60
      %p62 = scmp.ne.s32.totalorder %s54, %s56
      %p63 = scmp.eq.s32.totalorder %s30, 1
      %p64 = por %p62, %p63
      %p65 = scmp.ne.s32.totalorder %s56, %s57
      %p66 = scmp.eq.s32.totalorder %s30, 0
      %p67 = por %p65, %p66
      %p68 = scmp.ne.s32.totalorder %s56, %s57
      %p69 = scmp.eq.s32.totalorder %s31, 1
      %p70 = por %p68, %p69
      %p72 = scmp.ne.s32.totalorder %s57, %s71
      %p73 = scmp.eq.s32.totalorder %s31, 0
      %p74 = por %p72, %p73
      %s75 = ssub.s32 %s25, %s32
      %p76 = scmp.eq.s32.totalorder %s75, 0
      %s78 = sadd.s32 %s77, 1
      %s79 = scalar_select %p76, %s77, %s78
      %p82 = pneg %p76
      %p83 = scmp.eq.s32.totalorder %s25, 1
      %p84 = por %p82, %p83
      %p85 = scmp.ne.s32.totalorder %s77, %s80
      %p86 = scmp.eq.s32.totalorder %s25, 0
      %p87 = por %p85, %p86
      %p88 = scmp.ne.s32.totalorder %s77, %s80
      %p89 = scmp.eq.s32.totalorder %s30, 1
      %p90 = por %p88, %p89
      %p91 = scmp.ne.s32.totalorder %s80, %s81
      %p92 = scmp.eq.s32.totalorder %s30, 0
      %p93 = por %p91, %p92
      %p94 = scmp.ne.s32.totalorder %s80, %s81
      %p95 = scmp.eq.s32.totalorder %s31, 1
      %p96 = por %p94, %p95
      %p98 = scmp.ne.s32.totalorder %s81, %s97
      %p99 = scmp.eq.s32.totalorder %s31, 0
      %p100 = por %p98, %p99
      %s101 = ssub.s32 %s25, %s32
      %p102 = scmp.eq.s32.totalorder %s101, 0
      %s104 = sadd.s32 %s103, 1
      %s105 = scalar_select %p102, %s103, %s104
      %p108 = pneg %p102
      %p109 = scmp.eq.s32.totalorder %s25, 1
      %p110 = por %p108, %p109
      %p111 = scmp.ne.s32.totalorder %s103, %s106
      %p112 = scmp.eq.s32.totalorder %s25, 0
      %p113 = por %p111, %p112
      %p114 = scmp.ne.s32.totalorder %s103, %s106
      %p115 = scmp.eq.s32.totalorder %s30, 1
      %p116 = por %p114, %p115
      %p117 = scmp.ne.s32.totalorder %s106, %s107
      %p118 = scmp.eq.s32.totalorder %s30, 0
      %p119 = por %p117, %p118
      %p120 = scmp.ne.s32.totalorder %s106, %s107
      %p121 = scmp.eq.s32.totalorder %s31, 1
      %p122 = por %p120, %p121
      %p124 = scmp.ne.s32.totalorder %s107, %s123
      %p125 = scmp.eq.s32.totalorder %s31, 0
      %p126 = por %p124, %p125
      %s127 = ssub.s32 %s25, %s32
      %p128 = scmp.eq.s32.totalorder %s127, 0
      %s130 = sadd.s32 %s129, 1
      %s131 = scalar_select %p128, %s129, %s130
      %p134 = pneg %p128
      %p135 = scmp.eq.s32.totalorder %s25, 1
      %p136 = por %p134, %p135
      %p137 = scmp.ne.s32.totalorder %s129, %s132
      %p138 = scmp.eq.s32.totalorder %s25, 0
      %p139 = por %p137, %p138
      %p140 = scmp.ne.s32.totalorder %s129, %s132
      %p141 = scmp.eq.s32.totalorder %s30, 1
      %p142 = por %p140, %p141
      %p143 = scmp.ne.s32.totalorder %s132, %s133
      %p144 = scmp.eq.s32.totalorder %s30, 0
      %p145 = por %p143, %p144
      %p146 = scmp.ne.s32.totalorder %s132, %s133
      %p147 = scmp.eq.s32.totalorder %s31, 1
      %p148 = por %p146, %p147
      %p150 = scmp.ne.s32.totalorder %s133, %s149
      %p151 = scmp.eq.s32.totalorder %s31, 0
      %p152 = por %p150, %p151
      %s153 = ssub.s32 %s25, %s32
      %p154 = scmp.eq.s32.totalorder %s153, 0
      %s156 = sadd.s32 %s155, 1
      %s157 = scalar_select %p154, %s155, %s156
      %p160 = pneg %p154
      %p161 = scmp.eq.s32.totalorder %s25, 1
      %p162 = por %p160, %p161
      %p163 = scmp.ne.s32.totalorder %s155, %s158
      %p164 = scmp.eq.s32.totalorder %s25, 0
      %p165 = por %p163, %p164
      %p166 = scmp.ne.s32.totalorder %s155, %s158
      %p167 = scmp.eq.s32.totalorder %s30, 1
      %p168 = por %p166, %p167
      %p169 = scmp.ne.s32.totalorder %s158, %s159
      %p170 = scmp.eq.s32.totalorder %s30, 0
      %p171 = por %p169, %p170
      %p172 = scmp.ne.s32.totalorder %s158, %s159
      %p173 = scmp.eq.s32.totalorder %s31, 1
      %p174 = por %p172, %p173
      %p176 = scmp.ne.s32.totalorder %s159, %s175
      %p177 = scmp.eq.s32.totalorder %s31, 0
      %p178 = por %p176, %p177
      %s179 = ssub.s32 %s25, %s32
      %p180 = scmp.eq.s32.totalorder %s179, 0
      %s182 = sadd.s32 %s181, 1
      %s183 = scalar_select %p180, %s181, %s182
      %p186 = pneg %p180
      %p187 = scmp.eq.s32.totalorder %s25, 1
      %p188 = por %p186, %p187
      %p189 = scmp.ne.s32.totalorder %s181, %s184
      %p190 = scmp.eq.s32.totalorder %s25, 0
      %p191 = por %p189, %p190
      %p192 = scmp.ne.s32.totalorder %s181, %s184
      %p193 = scmp.eq.s32.totalorder %s30, 1
      %p194 = por %p192, %p193
      %p195 = scmp.ne.s32.totalorder %s184, %s185
      %p196 = scmp.eq.s32.totalorder %s30, 0
      %p197 = por %p195, %p196
      %p198 = scmp.ne.s32.totalorder %s184, %s185
      %p199 = scmp.eq.s32.totalorder %s31, 1
      %p200 = por %p198, %p199
      %p202 = scmp.ne.s32.totalorder %s185, %s201
      %p203 = scmp.eq.s32.totalorder %s31, 0
      %p204 = por %p202, %p203
      %s205 = ssub.s32 %s25, %s32
      %p206 = scmp.eq.s32.totalorder %s205, 0
      %s208 = sadd.s32 %s207, 1
      %s209 = scalar_select %p206, %s207, %s208
      %p212 = pneg %p206
      %p213 = scmp.eq.s32.totalorder %s25, 1
      %p214 = por %p212, %p213
      %p215 = scmp.ne.s32.totalorder %s207, %s210
      %p216 = scmp.eq.s32.totalorder %s25, 0
      %p217 = por %p215, %p216
      %p218 = scmp.ne.s32.totalorder %s207, %s210
      %p219 = scmp.eq.s32.totalorder %s30, 1
      %p220 = por %p218, %p219
      %p221 = scmp.ne.s32.totalorder %s210, %s211
      %p222 = scmp.eq.s32.totalorder %s30, 0
      %p223 = por %p221, %p222
      %p224 = scmp.ne.s32.totalorder %s210, %s211
      %p225 = scmp.eq.s32.totalorder %s31, 1
      %p226 = por %p224, %p225
      %p228 = scmp.ne.s32.totalorder %s211, %s227
      %p229 = scmp.eq.s32.totalorder %s31, 0
      %p230 = por %p228, %p229
      %s231 = ssub.s32 %s25, %s32
      %p232 = scmp.eq.s32.totalorder %s231, 0
      %s234 = sadd.s32 %s233, 1
      %s235 = scalar_select %p232, %s233, %s234
      %p238 = pneg %p232
      %p239 = scmp.eq.s32.totalorder %s25, 1
      %p240 = por %p238, %p239
      %p241 = scmp.ne.s32.totalorder %s233, %s236
      %p242 = scmp.eq.s32.totalorder %s25, 0
      %p243 = por %p241, %p242
      %p244 = scmp.ne.s32.totalorder %s233, %s236
      %p245 = scmp.eq.s32.totalorder %s30, 1
      %p246 = por %p244, %p245
      %p247 = scmp.ne.s32.totalorder %s236, %s237
      %p248 = scmp.eq.s32.totalorder %s30, 0
      %p249 = por %p247, %p248
      %p250 = scmp.ne.s32.totalorder %s236, %s237
      %p251 = scmp.eq.s32.totalorder %s31, 1
      %p252 = por %p250, %p251
      %p254 = scmp.ne.s32.totalorder %s237, %s253
      %p255 = scmp.eq.s32.totalorder %s31, 0
      %p256 = por %p254, %p255
      %s257 = ssub.s32 %s25, %s32
      %p258 = scmp.eq.s32.totalorder %s257, 0
      %s260 = sadd.s32 %s259, 1
      %s261 = scalar_select %p258, %s259, %s260
      %p264 = pneg %p258
      %p265 = scmp.eq.s32.totalorder %s25, 1
      %p266 = por %p264, %p265
      %p267 = scmp.ne.s32.totalorder %s259, %s262
      %p268 = scmp.eq.s32.totalorder %s25, 0
      %p269 = por %p267, %p268
      %p270 = scmp.ne.s32.totalorder %s259, %s262
      %p271 = scmp.eq.s32.totalorder %s30, 1
      %p272 = por %p270, %p271
      %p273 = scmp.ne.s32.totalorder %s262, %s263
      %p274 = scmp.eq.s32.totalorder %s30, 0
      %p275 = por %p273, %p274
      %p276 = scmp.ne.s32.totalorder %s262, %s263
      %p277 = scmp.eq.s32.totalorder %s31, 1
      %p278 = por %p276, %p277
      %p280 = scmp.ne.s32.totalorder %s263, %s279
      %p281 = scmp.eq.s32.totalorder %s31, 0
      %p282 = por %p280, %p281
      %s283 = ssub.s32 %s25, %s32
      %p284 = scmp.eq.s32.totalorder %s283, 0
      %s286 = sadd.s32 %s285, 1
      %s287 = scalar_select %p284, %s285, %s286
      %p290 = pneg %p284
      %p291 = scmp.eq.s32.totalorder %s25, 1
      %p292 = por %p290, %p291
      %p293 = scmp.ne.s32.totalorder %s285, %s288
      %p294 = scmp.eq.s32.totalorder %s25, 0
      %p295 = por %p293, %p294
      %p296 = scmp.ne.s32.totalorder %s285, %s288
      %p297 = scmp.eq.s32.totalorder %s30, 1
      %p298 = por %p296, %p297
      %p299 = scmp.ne.s32.totalorder %s288, %s289
      %p300 = scmp.eq.s32.totalorder %s30, 0
      %p301 = por %p299, %p300
      %p302 = scmp.ne.s32.totalorder %s288, %s289
      %p303 = scmp.eq.s32.totalorder %s31, 1
      %p304 = por %p302, %p303
      %p306 = scmp.ne.s32.totalorder %s289, %s305
      %p307 = scmp.eq.s32.totalorder %s31, 0
      %p308 = por %p306, %p307
      %s309 = ssub.s32 %s25, %s32
      %p310 = scmp.eq.s32.totalorder %s309, 0
      %s312 = sadd.s32 %s311, 1
      %s313 = scalar_select %p310, %s311, %s312
      %p316 = pneg %p310
      %p317 = scmp.eq.s32.totalorder %s25, 1
      %p318 = por %p316, %p317
      %p319 = scmp.ne.s32.totalorder %s311, %s314
      %p320 = scmp.eq.s32.totalorder %s25, 0
      %p321 = por %p319, %p320
      %p322 = scmp.ne.s32.totalorder %s311, %s314
      %p323 = scmp.eq.s32.totalorder %s30, 1
      %p324 = por %p322, %p323
      %p325 = scmp.ne.s32.totalorder %s314, %s315
      %p326 = scmp.eq.s32.totalorder %s30, 0
      %p327 = por %p325, %p326
      %p328 = scmp.ne.s32.totalorder %s314, %s315
      %p329 = scmp.eq.s32.totalorder %s31, 1
      %p330 = por %p328, %p329
      %p332 = scmp.ne.s32.totalorder %s315, %s331
      %p333 = scmp.eq.s32.totalorder %s31, 0
      %p334 = por %p332, %p333
      %s335 = ssub.s32 %s25, %s32
      %p336 = scmp.eq.s32.totalorder %s335, 0
      %s338 = sadd.s32 %s337, 1
      %s339 = scalar_select %p336, %s337, %s338
      %p342 = pneg %p336
      %p343 = scmp.eq.s32.totalorder %s25, 1
      %p344 = por %p342, %p343
      %p345 = scmp.ne.s32.totalorder %s337, %s340
      %p346 = scmp.eq.s32.totalorder %s25, 0
      %p347 = por %p345, %p346
      %p348 = scmp.ne.s32.totalorder %s337, %s340
      %p349 = scmp.eq.s32.totalorder %s30, 1
      %p350 = por %p348, %p349
      %p351 = scmp.ne.s32.totalorder %s340, %s341
      %p352 = scmp.eq.s32.totalorder %s30, 0
      %p353 = por %p351, %p352
      %p354 = scmp.ne.s32.totalorder %s340, %s341
      %p355 = scmp.eq.s32.totalorder %s31, 1
      %p356 = por %p354, %p355
      %p358 = scmp.ne.s32.totalorder %s341, %s357
      %p359 = scmp.eq.s32.totalorder %s31, 0
      %p360 = por %p358, %p359
      %s361 = ssub.s32 %s25, %s32
      %p362 = scmp.eq.s32.totalorder %s361, 0
      %s364 = sadd.s32 %s363, 1
      %s365 = scalar_select %p362, %s363, %s364
      %p368 = pneg %p362
      %p369 = scmp.eq.s32.totalorder %s25, 1
      %p370 = por %p368, %p369
      %p371 = scmp.ne.s32.totalorder %s363, %s366
      %p372 = scmp.eq.s32.totalorder %s25, 0
      %p373 = por %p371, %p372
      %p374 = scmp.ne.s32.totalorder %s363, %s366
      %p375 = scmp.eq.s32.totalorder %s30, 1
      %p376 = por %p374, %p375
      %p377 = scmp.ne.s32.totalorder %s366, %s367
      %p378 = scmp.eq.s32.totalorder %s30, 0
      %p379 = por %p377, %p378
      %p380 = scmp.ne.s32.totalorder %s366, %s367
      %p381 = scmp.eq.s32.totalorder %s31, 1
      %p382 = por %p380, %p381
      %p384 = scmp.ne.s32.totalorder %s367, %s383
      %p385 = scmp.eq.s32.totalorder %s31, 0
      %p386 = por %p384, %p385
      %s387 = ssub.s32 %s25, %s32
      %p388 = scmp.eq.s32.totalorder %s387, 0
      %s390 = sadd.s32 %s389, 1
      %s391 = scalar_select %p388, %s389, %s390
      %p394 = pneg %p388
      %p395 = scmp.eq.s32.totalorder %s25, 1
      %p396 = por %p394, %p395
      %p397 = scmp.ne.s32.totalorder %s389, %s392
      %p398 = scmp.eq.s32.totalorder %s25, 0
      %p399 = por %p397, %p398
      %p400 = scmp.ne.s32.totalorder %s389, %s392
      %p401 = scmp.eq.s32.totalorder %s30, 1
      %p402 = por %p400, %p401
      %p403 = scmp.ne.s32.totalorder %s392, %s393
      %p404 = scmp.eq.s32.totalorder %s30, 0
      %p405 = por %p403, %p404
      %p406 = scmp.ne.s32.totalorder %s392, %s393
      %p407 = scmp.eq.s32.totalorder %s31, 1
      %p408 = por %p406, %p407
      %p410 = scmp.ne.s32.totalorder %s393, %s409
      %p411 = scmp.eq.s32.totalorder %s31, 0
      %p412 = por %p410, %p411
      %s414 = sadd.s32 %s413, 1
      %p417 = scmp.eq.s32.totalorder %s25, 1
      %p418 = scmp.ne.s32.totalorder %s413, %s415
      %p419 = scmp.eq.s32.totalorder %s25, 0
      %p420 = por %p418, %p419
      %p421 = scmp.ne.s32.totalorder %s413, %s415
      %p422 = scmp.eq.s32.totalorder %s30, 1
      %p423 = por %p421, %p422
      %p424 = scmp.ne.s32.totalorder %s415, %s416
      %p425 = scmp.eq.s32.totalorder %s30, 0
      %p426 = por %p424, %p425
      %p427 = scmp.ne.s32.totalorder %s415, %s416
      %p428 = scmp.eq.s32.totalorder %s31, 1
      %p429 = por %p427, %p428
      %p431 = scmp.ne.s32.totalorder %s416, %s430
      %p432 = scmp.eq.s32.totalorder %s31, 0
      %p433 = por %p431, %p432
      %s435 = sadd.s32 %s434, 1
      %p438 = scmp.eq.s32.totalorder %s25, 1
      %p439 = scmp.ne.s32.totalorder %s434, %s436
      %p440 = scmp.eq.s32.totalorder %s25, 0
      %p441 = por %p439, %p440
      %p442 = scmp.ne.s32.totalorder %s434, %s436
      %p443 = scmp.eq.s32.totalorder %s30, 1
      %p444 = por %p442, %p443
      %p445 = scmp.ne.s32.totalorder %s436, %s437
      %p446 = scmp.eq.s32.totalorder %s30, 0
      %p447 = por %p445, %p446
      %p448 = scmp.ne.s32.totalorder %s436, %s437
      %p449 = scmp.eq.s32.totalorder %s31, 1
      %p450 = por %p448, %p449
      %p452 = scmp.ne.s32.totalorder %s437, %s451
      %p453 = scmp.eq.s32.totalorder %s31, 0
      %p454 = por %p452, %p453
      %s456 = sadd.s32 %s455, 1
      %p459 = scmp.eq.s32.totalorder %s25, 1
      %p460 = scmp.ne.s32.totalorder %s455, %s457
      %p461 = scmp.eq.s32.totalorder %s25, 0
      %p462 = por %p460, %p461
      %p463 = scmp.ne.s32.totalorder %s455, %s457
      %p464 = scmp.eq.s32.totalorder %s30, 1
      %p465 = por %p463, %p464
      %p466 = scmp.ne.s32.totalorder %s457, %s458
      %p467 = scmp.eq.s32.totalorder %s30, 0
      %p468 = por %p466, %p467
      %p469 = scmp.ne.s32.totalorder %s457, %s458
      %p470 = scmp.eq.s32.totalorder %s31, 1
      %p471 = por %p469, %p470
      %p473 = scmp.ne.s32.totalorder %s458, %s472
      %p474 = scmp.eq.s32.totalorder %s31, 0
      %p475 = por %p473, %p474
      %s477 = sadd.s32 %s476, 1
      %p480 = scmp.eq.s32.totalorder %s25, 1
      %p481 = scmp.ne.s32.totalorder %s476, %s478
      %p482 = scmp.eq.s32.totalorder %s25, 0
      %p483 = por %p481, %p482
      %p484 = scmp.ne.s32.totalorder %s476, %s478
      %p485 = scmp.eq.s32.totalorder %s30, 1
      %p486 = por %p484, %p485
      %p487 = scmp.ne.s32.totalorder %s478, %s479
      %p488 = scmp.eq.s32.totalorder %s30, 0
      %p489 = por %p487, %p488
      %p490 = scmp.ne.s32.totalorder %s478, %s479
      %p491 = scmp.eq.s32.totalorder %s31, 1
      %p492 = por %p490, %p491
      %p494 = scmp.ne.s32.totalorder %s479, %s493
      %p495 = scmp.eq.s32.totalorder %s31, 0
      %p496 = por %p494, %p495
      %p497 = scmp.le.s32.totalorder 1, %s25
      %p498 = scmp.lt.s32.totalorder %s25, 3
      %p499 = pnand %p497, %p498
      %p500 = pneg %p499
      // Predicated region
      $region9: #{tpu_custom_call.1} parent=5 // pred_check
        _
      $region10: #{tpu_custom_call.1} parent=5 // pred_check_branch
        %502 = sbr.rel (%p499) target = $region12
      $region11: #{tpu_custom_call.1} parent=5 // pred_region
        %s503 = ssub.s32 %s25, 1
        // Predicated region
        $region13: #{tpu_custom_call.1} parent=11 // pred_check
          %p504 = pneg %p46
        $region14: #{tpu_custom_call.1} parent=11 // pred_check_branch
          %506 = sbr.rel (%p504) target = $region16
        $region15: #{tpu_custom_call.1} parent=11 // pred_region
          _
        $region16: #{tpu_custom_call.1} parent=11 // pred_fallthru
          _
        // Predicated region
        $region17: #{tpu_custom_call.1} parent=11 // pred_check
          %p507 = pneg %p67
        $region18: #{tpu_custom_call.1} parent=11 // pred_check_branch
          %509 = sbr.rel (%p507) target = $region20
        $region19: #{tpu_custom_call.1} parent=11 // pred_region
          _
        $region20: #{tpu_custom_call.1} parent=11 // pred_fallthru
          _
        // Predicated region
        $region21: #{tpu_custom_call.1} parent=11 // pred_check
          %p510 = pneg %p426
        $region22: #{tpu_custom_call.1} parent=11 // pred_check_branch
          %512 = sbr.rel (%p510) target = $region24
        $region23: #{tpu_custom_call.1} parent=11 // pred_region
          _
        $region24: #{tpu_custom_call.1} parent=11 // pred_fallthru
          _
        // Predicated region
        $region25: #{tpu_custom_call.1} parent=11 // pred_check
          %p513 = pneg %p447
        $region26: #{tpu_custom_call.1} parent=11 // pred_check_branch
          %515 = sbr.rel (%p513) target = $region28
        $region27: #{tpu_custom_call.1} parent=11 // pred_region
          _
        $region28: #{tpu_custom_call.1} parent=11 // pred_fallthru
          _
        // Predicated region
        $region29: #{tpu_custom_call.1} parent=11 // pred_check
          %p516 = pneg %p468
        $region30: #{tpu_custom_call.1} parent=11 // pred_check_branch
          %518 = sbr.rel (%p516) target = $region32
        $region31: #{tpu_custom_call.1} parent=11 // pred_region
          _
        $region32: #{tpu_custom_call.1} parent=11 // pred_fallthru
          _
      $region12: #{tpu_custom_call.1} parent=5 // pred_fallthru
        _
      %p519 = scmp.lt.s32.totalorder %s25, 2
      // Predicated region
      $region33: #{tpu_custom_call.1} parent=5 // pred_check
        %p520 = pneg %p519
      $region34: #{tpu_custom_call.1} parent=5 // pred_check_branch
        %522 = sbr.rel (%p520) target = $region36
      $region35: #{tpu_custom_call.1} parent=5 // pred_region
        // Predicated region
        $region37: #{tpu_custom_call.1} parent=35 // pred_check
          %p523 = pneg %p87
        $region38: #{tpu_custom_call.1} parent=35 // pred_check_branch
          %525 = sbr.rel (%p523) target = $region40
        $region39: #{tpu_custom_call.1} parent=35 // pred_region
          %p526 = scmp.lt.s32.totalorder %s25, 1
          %s527 = scalar_select %p526, %s25, 1
          %s528 = smul.addr %s527, 16
          %s529 = smul.addr %s528, 4
          %s530 = scalar_lea.vmem %s2, %s529
        $region40: #{tpu_custom_call.1} parent=35 // pred_fallthru
          _
        // Predicated region
        $region41: #{tpu_custom_call.1} parent=35 // pred_check
          %p531 = pneg %p113
        $region42: #{tpu_custom_call.1} parent=35 // pred_check_branch
          %533 = sbr.rel (%p531) target = $region44
        $region43: #{tpu_custom_call.1} parent=35 // pred_region
          %p534 = scmp.lt.s32.totalorder %s25, 1
          %s535 = scalar_select %p534, %s25, 1
          %s536 = smul.addr %s535, 16
          %s537 = smul.addr %s536, 4
          %s538 = scalar_lea.vmem %s3, %s537
        $region44: #{tpu_custom_call.1} parent=35 // pred_fallthru
          _
        // Predicated region
        $region45: #{tpu_custom_call.1} parent=35 // pred_check
          %p539 = pneg %p139
        $region46: #{tpu_custom_call.1} parent=35 // pred_check_branch
          %541 = sbr.rel (%p539) target = $region48
        $region47: #{tpu_custom_call.1} parent=35 // pred_region
          %p542 = scmp.lt.s32.totalorder %s25, 1
          %s543 = scalar_select %p542, %s25, 1
          %s544 = smul.addr %s543, 16
          %s545 = smul.addr %s544, 4
          %s546 = scalar_lea.vmem %s4, %s545
        $region48: #{tpu_custom_call.1} parent=35 // pred_fallthru
          _
        // Predicated region
        $region49: #{tpu_custom_call.1} parent=35 // pred_check
          %p547 = pneg %p165
        $region50: #{tpu_custom_call.1} parent=35 // pred_check_branch
          %549 = sbr.rel (%p547) target = $region52
        $region51: #{tpu_custom_call.1} parent=35 // pred_region
          %p550 = scmp.lt.s32.totalorder %s25, 1
          %s551 = scalar_select %p550, %s25, 1
          %s552 = smul.addr %s551, 4
          %s553 = smul.addr %s552, 4
          %s554 = scalar_lea.vmem %s5, %s553
        $region52: #{tpu_custom_call.1} parent=35 // pred_fallthru
          _
        // Predicated region
        $region53: #{tpu_custom_call.1} parent=35 // pred_check
          %p555 = pneg %p191
        $region54: #{tpu_custom_call.1} parent=35 // pred_check_branch
          %557 = sbr.rel (%p555) target = $region56
        $region55: #{tpu_custom_call.1} parent=35 // pred_region
          %p558 = scmp.lt.s32.totalorder %s25, 1
          %s559 = scalar_select %p558, %s25, 1
          %s560 = scalar_lea.vmem %s6, %s559
        $region56: #{tpu_custom_call.1} parent=35 // pred_fallthru
          _
        // Predicated region
        $region57: #{tpu_custom_call.1} parent=35 // pred_check
          %p561 = pneg %p217
        $region58: #{tpu_custom_call.1} parent=35 // pred_check_branch
          %563 = sbr.rel (%p561) target = $region60
        $region59: #{tpu_custom_call.1} parent=35 // pred_region
          %p564 = scmp.lt.s32.totalorder %s25, 1
          %s565 = scalar_select %p564, %s25, 1
          %s566 = smul.addr %s565, 4
          %s567 = smul.addr %s566, 4
          %s568 = scalar_lea.vmem %s7, %s567
        $region60: #{tpu_custom_call.1} parent=35 // pred_fallthru
          _
        // Predicated region
        $region61: #{tpu_custom_call.1} parent=35 // pred_check
          %p569 = pneg %p243
        $region62: #{tpu_custom_call.1} parent=35 // pred_check_branch
          %571 = sbr.rel (%p569) target = $region64
        $region63: #{tpu_custom_call.1} parent=35 // pred_region
          %p572 = scmp.lt.s32.totalorder %s25, 1
          %s573 = scalar_select %p572, %s25, 1
          %s574 = scalar_lea.vmem %s8, %s573
        $region64: #{tpu_custom_call.1} parent=35 // pred_fallthru
          _
        // Predicated region
        $region65: #{tpu_custom_call.1} parent=35 // pred_check
          %p575 = pneg %p269
        $region66: #{tpu_custom_call.1} parent=35 // pred_check_branch
          %577 = sbr.rel (%p575) target = $region68
        $region67: #{tpu_custom_call.1} parent=35 // pred_region
          %p578 = scmp.lt.s32.totalorder %s25, 1
          %s579 = scalar_select %p578, %s25, 1
          %s580 = smul.addr %s579, 4
          %s581 = smul.addr %s580, 4
          %s582 = scalar_lea.vmem %s9, %s581
        $region68: #{tpu_custom_call.1} parent=35 // pred_fallthru
          _
        // Predicated region
        $region69: #{tpu_custom_call.1} parent=35 // pred_check
          %p583 = pneg %p295
        $region70: #{tpu_custom_call.1} parent=35 // pred_check_branch
          %585 = sbr.rel (%p583) target = $region72
        $region71: #{tpu_custom_call.1} parent=35 // pred_region
          %p586 = scmp.lt.s32.totalorder %s25, 1
          %s587 = scalar_select %p586, %s25, 1
          %s588 = scalar_lea.vmem %s10, %s587
        $region72: #{tpu_custom_call.1} parent=35 // pred_fallthru
          _
        // Predicated region
        $region73: #{tpu_custom_call.1} parent=35 // pred_check
          %p589 = pneg %p321
        $region74: #{tpu_custom_call.1} parent=35 // pred_check_branch
          %591 = sbr.rel (%p589) target = $region76
        $region75: #{tpu_custom_call.1} parent=35 // pred_region
          %p592 = scmp.lt.s32.totalorder %s25, 1
          %s593 = scalar_select %p592, %s25, 1
          %s594 = smul.addr %s593, 8
          %s595 = smul.addr %s594, 4
          %s596 = scalar_lea.vmem %s11, %s595
        $region76: #{tpu_custom_call.1} parent=35 // pred_fallthru
          _
        // Predicated region
        $region77: #{tpu_custom_call.1} parent=35 // pred_check
          %p597 = pneg %p347
        $region78: #{tpu_custom_call.1} parent=35 // pred_check_branch
          %599 = sbr.rel (%p597) target = $region80
        $region79: #{tpu_custom_call.1} parent=35 // pred_region
          %p600 = scmp.lt.s32.totalorder %s25, 1
          %s601 = scalar_select %p600, %s25, 1
          %s602 = scalar_lea.vmem %s12, %s601
        $region80: #{tpu_custom_call.1} parent=35 // pred_fallthru
          _
        // Predicated region
        $region81: #{tpu_custom_call.1} parent=35 // pred_check
          %p603 = pneg %p373
        $region82: #{tpu_custom_call.1} parent=35 // pred_check_branch
          %605 = sbr.rel (%p603) target = $region84
        $region83: #{tpu_custom_call.1} parent=35 // pred_region
          %p606 = scmp.lt.s32.totalorder %s25, 1
          %s607 = scalar_select %p606, %s25, 1
          %s608 = scalar_lea.vmem %s13, %s607
        $region84: #{tpu_custom_call.1} parent=35 // pred_fallthru
          _
        // Predicated region
        $region85: #{tpu_custom_call.1} parent=35 // pred_check
          %p609 = pneg %p399
        $region86: #{tpu_custom_call.1} parent=35 // pred_check_branch
          %611 = sbr.rel (%p609) target = $region88
        $region87: #{tpu_custom_call.1} parent=35 // pred_region
          %p612 = scmp.lt.s32.totalorder %s25, 1
          %s613 = scalar_select %p612, %s25, 1
          %s614 = scalar_lea.vmem %s14, %s613
        $region88: #{tpu_custom_call.1} parent=35 // pred_fallthru
          _
      $region36: #{tpu_custom_call.1} parent=5 // pred_fallthru
        _
      %p615 = scmp.le.s32.totalorder 1, %s25
      %p616 = scmp.lt.s32.totalorder %s25, 3
      %p617 = pnand %p615, %p616
      %p618 = pneg %p617
      // Predicated region
      $region89: #{tpu_custom_call.1} parent=5 // pred_check
        _
      $region90: #{tpu_custom_call.1} parent=5 // pred_check_branch
        %620 = sbr.rel (%p617) target = $region92
      $region91: #{tpu_custom_call.1} parent=5 // pred_region
        %s621 = ssub.s32 %s25, 1
        %p622 = pneg %p46
        %p623 = pneg %p43
        %p624 = pneg %p67
        %p625 = pneg %p64
        %p626 = scmp.lt.s32.totalorder %s30, 1
        %s627 = scalar_select %p626, %s30, 1
        %s628 = smul.addr %s627, 16
        %s629 = smul.addr %s628, 4
        %s630 = scalar_lea.vmem %s2, %s629
        %p631 = pneg %p93
        %p632 = pneg %p90
        %p633 = scmp.lt.s32.totalorder %s30, 1
        %s634 = scalar_select %p633, %s30, 1
        %s635 = smul.addr %s634, 16
        %s636 = smul.addr %s635, 4
        %s637 = scalar_lea.vmem %s3, %s636
        %p638 = pneg %p119
        %p639 = pneg %p116
        %p640 = scmp.lt.s32.totalorder %s30, 1
        %s641 = scalar_select %p640, %s30, 1
        %s642 = smul.addr %s641, 16
        %s643 = smul.addr %s642, 4
        %s644 = scalar_lea.vmem %s4, %s643
        %p645 = pneg %p145
        %p646 = pneg %p142
        %p647 = scmp.lt.s32.totalorder %s30, 1
        %s648 = scalar_select %p647, %s30, 1
        %s649 = smul.addr %s648, 4
        %s650 = smul.addr %s649, 4
        %s651 = scalar_lea.vmem %s5, %s650
        %p652 = pneg %p171
        %p653 = pneg %p168
        %p654 = scmp.lt.s32.totalorder %s30, 1
        %s655 = scalar_select %p654, %s30, 1
        %s656 = scalar_lea.vmem %s6, %s655
        %p657 = pneg %p197
        %p658 = pneg %p194
        %p659 = scmp.lt.s32.totalorder %s30, 1
        %s660 = scalar_select %p659, %s30, 1
        %s661 = smul.addr %s660, 4
        %s662 = smul.addr %s661, 4
        %s663 = scalar_lea.vmem %s7, %s662
        %p664 = pneg %p223
        %p665 = pneg %p220
        %p666 = scmp.lt.s32.totalorder %s30, 1
        %s667 = scalar_select %p666, %s30, 1
        %s668 = scalar_lea.vmem %s8, %s667
        %p669 = pneg %p249
        %p670 = pneg %p246
        %p671 = scmp.lt.s32.totalorder %s30, 1
        %s672 = scalar_select %p671, %s30, 1
        %s673 = smul.addr %s672, 4
        %s674 = smul.addr %s673, 4
        %s675 = scalar_lea.vmem %s9, %s674
        %p676 = pneg %p275
        %p677 = pneg %p272
        %p678 = scmp.lt.s32.totalorder %s30, 1
        %s679 = scalar_select %p678, %s30, 1
        %s680 = scalar_lea.vmem %s10, %s679
        %p681 = pneg %p301
        %p682 = pneg %p298
        %p683 = scmp.lt.s32.totalorder %s30, 1
        %s684 = scalar_select %p683, %s30, 1
        %s685 = smul.addr %s684, 8
        %s686 = smul.addr %s685, 4
        %s687 = scalar_lea.vmem %s11, %s686
        %p688 = pneg %p327
        %p689 = pneg %p324
        %p690 = scmp.lt.s32.totalorder %s30, 1
        %s691 = scalar_select %p690, %s30, 1
        %s692 = scalar_lea.vmem %s12, %s691
        %p693 = pneg %p353
        %p694 = pneg %p350
        %p695 = scmp.lt.s32.totalorder %s30, 1
        %s696 = scalar_select %p695, %s30, 1
        %s697 = scalar_lea.vmem %s13, %s696
        %p698 = pneg %p379
        %p699 = pneg %p376
        %p700 = scmp.lt.s32.totalorder %s30, 1
        %s701 = scalar_select %p700, %s30, 1
        %s702 = scalar_lea.vmem %s14, %s701
        %p703 = pneg %p405
        %p704 = pneg %p402
        %p705 = pneg %p426
        %p706 = pneg %p423
        %p707 = pneg %p447
        %p708 = pneg %p444
        %p709 = pneg %p468
        %p710 = pneg %p465
        %p711 = pneg %p489
        %p712 = pneg %p486
        %p713 = scmp.lt.s32.totalorder %s30, 1
        %s714 = scalar_select %p713, %s30, 1
        %s715 = smul.addr %s714, 16
        %s716 = smul.addr %s715, 4
        %s717 = scalar_lea.vmem %s2, %s716
        %p718 = scmp.lt.s32.totalorder %s30, 1
        %s719 = scalar_select %p718, %s30, 1
        %s720 = smul.addr %s719, 16
        %s721 = smul.addr %s720, 4
        %s722 = scalar_lea.vmem %s3, %s721
        %p723 = scmp.lt.s32.totalorder %s30, 1
        %s724 = scalar_select %p723, %s30, 1
        %s725 = smul.addr %s724, 16
        %s726 = smul.addr %s725, 4
        %s727 = scalar_lea.vmem %s4, %s726
        %p728 = scmp.lt.s32.totalorder %s30, 1
        %s729 = scalar_select %p728, %s30, 1
        %s730 = smul.addr %s729, 4
        %s731 = smul.addr %s730, 4
        %s732 = scalar_lea.vmem %s5, %s731
        %p733 = scmp.lt.s32.totalorder %s30, 1
        %s734 = scalar_select %p733, %s30, 1
        %s735 = scalar_lea.vmem %s6, %s734
        %p736 = scmp.lt.s32.totalorder %s30, 1
        %s737 = scalar_select %p736, %s30, 1
        %s738 = smul.addr %s737, 4
        %s739 = smul.addr %s738, 4
        %s740 = scalar_lea.vmem %s7, %s739
        %p741 = scmp.lt.s32.totalorder %s30, 1
        %s742 = scalar_select %p741, %s30, 1
        %s743 = scalar_lea.vmem %s8, %s742
        %p744 = scmp.lt.s32.totalorder %s30, 1
        %s745 = scalar_select %p744, %s30, 1
        %s746 = smul.addr %s745, 4
        %s747 = smul.addr %s746, 4
        %s748 = scalar_lea.vmem %s9, %s747
        %p749 = scmp.lt.s32.totalorder %s30, 1
        %s750 = scalar_select %p749, %s30, 1
        %s751 = scalar_lea.vmem %s10, %s750
        %p752 = scmp.lt.s32.totalorder %s30, 1
        %s753 = scalar_select %p752, %s30, 1
        %s754 = smul.addr %s753, 8
        %s755 = smul.addr %s754, 4
        %s756 = scalar_lea.vmem %s11, %s755
        %p757 = scmp.lt.s32.totalorder %s30, 1
        %s758 = scalar_select %p757, %s30, 1
        %s759 = scalar_lea.vmem %s12, %s758
        %p760 = scmp.lt.s32.totalorder %s30, 1
        %s761 = scalar_select %p760, %s30, 1
        %s762 = scalar_lea.vmem %s13, %s761
        %p763 = scmp.lt.s32.totalorder %s30, 1
        %s764 = scalar_select %p763, %s30, 1
        %s765 = scalar_lea.vmem %s14, %s764
        %p767 = scmp.eq.s32.totalorder %s30, 0
        // Predicated region
        $region93: #{tpu_custom_call.1} parent=91 // pred_check
          %p768 = pneg %p767
        $region94: #{tpu_custom_call.1} parent=91 // pred_check_branch
          %770 = sbr.rel (%p768) target = $region96
        $region95: #{tpu_custom_call.1} parent=91 // pred_region
          %v771 = vld [vmem:[%s0] sm:$0xff]
          %v772 = vld [vmem:[%s0 + $0x8] sm:$0xff]
          %vm773 = vcmask 261120
          %774 = vst.msk [vmem:[#allocation2] sm:$0xff] %vm773, %v771
          %775 = vst.msk [vmem:[#allocation2 + $0x8] sm:$0xff] %vm773, %v772
        $region96: #{tpu_custom_call.1} parent=91 // pred_fallthru
          _
        %v776 = vld [vmem:[#allocation2] sm:$0xff]
        %v777 = vld [vmem:[#allocation2 + $0x8] sm:$0xff]
        %v778 = vld [vmem:[%s762] sm:$0x1]
        %v779 = vmul.f32 %v776, %v776
        %v780 = vmul.f32 %v777, %v777
        %vm781 = vcmask 261120
        %v782 = vsel %vm781, %v779, 0.0
        %783 = vadd.xlane.f32.xlu0 %v782
        %v784 = vpop.xlane.xlu0 %783
        %v785 = vsel %vm781, %v780, 0.0
        %786 = vadd.xlane.f32.xlu0 %v785
        %v787 = vpop.xlane.xlu0 %786
        %v788 = vrcp.pop 32.0
        %v789 = vmul.f32 %v784, %v788
        %v790 = vmul.f32 %v787, %v788
        %v791 = vadd.f32 %v789, 1e-06
        %v792 = vadd.f32 %v790, 1e-06
        %v793 = vrsqrt.pop %v791
        %v794 = vrsqrt.pop %v792
        %v795 = vmul.f32 %v776, %v793
        %v796 = vmul.f32 %v777, %v794
        %v798 = vlaneseq
        %v799 = vshrl.u32 %v798, 7
        %v800 = vsub.s32 0, %v799
        %v801 = vrot.slane %v778, %v800
        %v803 = vmul.f32 %v795, %v801
        %v804 = vmul.f32 %v796, %v801
        %v805 = vpack.c.bf16 %v804, %v803
        %v806 = vld [vmem:[%s1] sm:$0xff]
        %v807 = vld [vmem:[%s717] sm:$0xf]
        %v808 = vld [vmem:[%s717 + $0x4] sm:$0xf]
        %v809 = vld [vmem:[%s717 + $0x8] sm:$0xf]
        %v810 = vld [vmem:[%s717 + $0xc] sm:$0xf]
        %v815 = vunpack.c.l.b16 %v807
        %v816 = vunpack.c.l.b16 %v808
        %v817 = vunpack.c.l.b16 %v809
        %v818 = vunpack.c.l.b16 %v810
        %v819 = vpack.c.b16 %v816, %v815
        %v820 = vpack.c.b16 %v818, %v817
        %v824 = vsel %vm781, %v805, 0
        %826 = vmatprep.subr.bf16.mxu0 0
        %827 = vmatpush1.bf16.msra.mxu0 %v819
        %828 = vmatprep.subr.bf16.mxu0 0
        %829 = vmatpush1.bf16.msra.mxu0 %v820
        %830 = vmatprep.subr.bf16.mxu0 0
        %831 = vmatpush1.bf16.msra.mxu0 0
        %832 = vmatprep.subr.bf16.mxu0 0
        %833 = vmatpush1.bf16.msra.mxu0 0
        %834 = vmatprep.subr.bf16.mxu0 0
        %835 = vmatpush1.bf16.msra.mxu0 0
        %836 = vmatprep.subr.bf16.mxu0 0
        %837 = vmatpush1.bf16.msra.mxu0 0
        %838 = vmatprep.subr.bf16.mxu0 0
        %839 = vmatpush1.bf16.msra.mxu0 0
        %840 = vmatprep.subr.bf16.mxu0 0
        %841 = vmatpush1.bf16.msra.mxu0 0
        %842 = vmatprep.subr.bf16.mxu0 0
        %843 = vmatpush1.bf16.msra.mxu0 0
        %844 = vmatprep.subr.bf16.mxu0 0
        %845 = vmatpush1.bf16.msra.mxu0 0
        %846 = vmatprep.subr.bf16.mxu0 0
        %847 = vmatpush1.bf16.msra.mxu0 0
        %848 = vmatprep.subr.bf16.mxu0 0
        %849 = vmatpush1.bf16.msra.mxu0 0
        %850 = vmatprep.subr.bf16.mxu0 0
        %851 = vmatpush1.bf16.msra.mxu0 0
        %852 = vmatprep.subr.bf16.mxu0 0
        %853 = vmatpush1.bf16.msra.mxu0 0
        %854 = vmatprep.subr.bf16.mxu0 0
        %855 = vmatpush1.bf16.msra.mxu0 0
        %856 = vmatprep.subr.bf16.mxu0 0
        %857 = vmatpush1.bf16.msra.mxu0 0
        %858 = vmatprep.mubr.bf16.mxu0 0
        %859 = vmatmul.mubr.bf16.gmra.mrb[0].mxu0 %v824
        %v860 = vpop.f32.mrb[0].mxu0
        %v861 = vadd.f32 0.0, %v860
        %v862 = vpop.f32.mrb[0].mxu0
        %v863 = vpop.f32.mrb[0].mxu0
        %v864 = vadd.f32 0.0, %v863
        %v865 = vpop.f32.mrb[0].mxu0
        %866 = vdwg.mxu0
        %v867 = vld [vmem:[%s722] sm:$0xf]
        %v868 = vld [vmem:[%s722 + $0x4] sm:$0xf]
        %v869 = vld [vmem:[%s722 + $0x8] sm:$0xf]
        %v870 = vld [vmem:[%s722 + $0xc] sm:$0xf]
        %v875 = vunpack.c.l.b16 %v867
        %v876 = vunpack.c.l.b16 %v868
        %v877 = vunpack.c.l.b16 %v869
        %v878 = vunpack.c.l.b16 %v870
        %v879 = vpack.c.b16 %v876, %v875
        %v880 = vpack.c.b16 %v878, %v877
        %883 = vmatprep.subr.bf16.mxu0 0
        %884 = vmatpush1.bf16.msra.mxu0 %v879
        %885 = vmatprep.subr.bf16.mxu0 0
        %886 = vmatpush1.bf16.msra.mxu0 %v880
        %887 = vmatprep.subr.bf16.mxu0 0
        %888 = vmatpush1.bf16.msra.mxu0 0
        %889 = vmatprep.subr.bf16.mxu0 0
        %890 = vmatpush1.bf16.msra.mxu0 0
        %891 = vmatprep.subr.bf16.mxu0 0
        %892 = vmatpush1.bf16.msra.mxu0 0
        %893 = vmatprep.subr.bf16.mxu0 0
        %894 = vmatpush1.bf16.msra.mxu0 0
        %895 = vmatprep.subr.bf16.mxu0 0
        %896 = vmatpush1.bf16.msra.mxu0 0
        %897 = vmatprep.subr.bf16.mxu0 0
        %898 = vmatpush1.bf16.msra.mxu0 0
        %899 = vmatprep.subr.bf16.mxu0 0
        %900 = vmatpush1.bf16.msra.mxu0 0
        %901 = vmatprep.subr.bf16.mxu0 0
        %902 = vmatpush1.bf16.msra.mxu0 0
        %903 = vmatprep.subr.bf16.mxu0 0
        %904 = vmatpush1.bf16.msra.mxu0 0
        %905 = vmatprep.subr.bf16.mxu0 0
        %906 = vmatpush1.bf16.msra.mxu0 0
        %907 = vmatprep.subr.bf16.mxu0 0
        %908 = vmatpush1.bf16.msra.mxu0 0
        %909 = vmatprep.subr.bf16.mxu0 0
        %910 = vmatpush1.bf16.msra.mxu0 0
        %911 = vmatprep.subr.bf16.mxu0 0
        %912 = vmatpush1.bf16.msra.mxu0 0
        %913 = vmatprep.subr.bf16.mxu0 0
        %914 = vmatpush1.bf16.msra.mxu0 0
        %915 = vmatprep.mubr.bf16.mxu0 0
        %916 = vmatmul.mubr.bf16.gmra.mrb[0].mxu0 %v824
        %v917 = vpop.f32.mrb[0].mxu0
        %v918 = vadd.f32 0.0, %v917
        %v919 = vpop.f32.mrb[0].mxu0
        %v920 = vpop.f32.mrb[0].mxu0
        %v921 = vadd.f32 0.0, %v920
        %v922 = vpop.f32.mrb[0].mxu0
        %923 = vdwg.mxu0
        %v924 = vld [vmem:[%s727] sm:$0xf]
        %v925 = vld [vmem:[%s727 + $0x4] sm:$0xf]
        %v926 = vld [vmem:[%s727 + $0x8] sm:$0xf]
        %v927 = vld [vmem:[%s727 + $0xc] sm:$0xf]
        %v932 = vunpack.c.l.b16 %v924
        %v933 = vunpack.c.l.b16 %v925
        %v934 = vunpack.c.l.b16 %v926
        %v935 = vunpack.c.l.b16 %v927
        %v936 = vpack.c.b16 %v933, %v932
        %v937 = vpack.c.b16 %v935, %v934
        %940 = vmatprep.subr.bf16.mxu0 0
        %941 = vmatpush1.bf16.msra.mxu0 %v936
        %942 = vmatprep.subr.bf16.mxu0 0
        %943 = vmatpush1.bf16.msra.mxu0 %v937
        %944 = vmatprep.subr.bf16.mxu0 0
        %945 = vmatpush1.bf16.msra.mxu0 0
        %946 = vmatprep.subr.bf16.mxu0 0
        %947 = vmatpush1.bf16.msra.mxu0 0
        %948 = vmatprep.subr.bf16.mxu0 0
        %949 = vmatpush1.bf16.msra.mxu0 0
        %950 = vmatprep.subr.bf16.mxu0 0
        %951 = vmatpush1.bf16.msra.mxu0 0
        %952 = vmatprep.subr.bf16.mxu0 0
        %953 = vmatpush1.bf16.msra.mxu0 0
        %954 = vmatprep.subr.bf16.mxu0 0
        %955 = vmatpush1.bf16.msra.mxu0 0
        %956 = vmatprep.subr.bf16.mxu0 0
        %957 = vmatpush1.bf16.msra.mxu0 0
        %958 = vmatprep.subr.bf16.mxu0 0
        %959 = vmatpush1.bf16.msra.mxu0 0
        %960 = vmatprep.subr.bf16.mxu0 0
        %961 = vmatpush1.bf16.msra.mxu0 0
        %962 = vmatprep.subr.bf16.mxu0 0
        %963 = vmatpush1.bf16.msra.mxu0 0
        %964 = vmatprep.subr.bf16.mxu0 0
        %965 = vmatpush1.bf16.msra.mxu0 0
        %966 = vmatprep.subr.bf16.mxu0 0
        %967 = vmatpush1.bf16.msra.mxu0 0
        %968 = vmatprep.subr.bf16.mxu0 0
        %969 = vmatpush1.bf16.msra.mxu0 0
        %970 = vmatprep.subr.bf16.mxu0 0
        %971 = vmatpush1.bf16.msra.mxu0 0
        %972 = vmatprep.mubr.bf16.mxu0 0
        %973 = vmatmul.mubr.bf16.gmra.mrb[0].mxu0 %v824
        %v974 = vpop.f32.mrb[0].mxu0
        %v975 = vadd.f32 0.0, %v974
        %v976 = vpop.f32.mrb[0].mxu0
        %v977 = vpop.f32.mrb[0].mxu0
        %v978 = vadd.f32 0.0, %v977
        %v979 = vpop.f32.mrb[0].mxu0
        %980 = vdwg.mxu0
        %v981 = vpack.c.bf16 %v861, %v861
        %v982 = vpack.c.bf16 %v864, %v864
        %v983 = vpack.c.bf16 %v918, %v918
        %v984 = vpack.c.bf16 %v921, %v921
        %v985 = vpack.c.bf16 %v975, %v975
        %v986 = vpack.c.bf16 %v978, %v978
        %vm987 = vcmask 64512
        %v989 = vsel %vm987, %v981, 0
        %v992 = vsel %vm987, %v983, 0
        %994 = vmatprep.subr.bf16.mxu0 0
        %995 = vmatpush1.bf16.xpose.msra.mxu0 %v992
        %996 = vmatprep.subr.bf16.mxu0 0
        %997 = vmatpush1.bf16.xpose.msra.mxu0 0
        %998 = vmatprep.subr.bf16.mxu0 0
        %999 = vmatpush1.bf16.xpose.msra.mxu0 0
        %1000 = vmatprep.subr.bf16.mxu0 0
        %1001 = vmatpush1.bf16.xpose.msra.mxu0 0
        %1002 = vmatprep.subr.bf16.mxu0 0
        %1003 = vmatpush1.bf16.xpose.msra.mxu0 0
        %1004 = vmatprep.subr.bf16.mxu0 0
        %1005 = vmatpush1.bf16.xpose.msra.mxu0 0
        %1006 = vmatprep.subr.bf16.mxu0 0
        %1007 = vmatpush1.bf16.xpose.msra.mxu0 0
        %1008 = vmatprep.subr.bf16.mxu0 0
        %1009 = vmatpush1.bf16.xpose.msra.mxu0 0
        %1010 = vmatprep.subr.bf16.mxu0 0
        %1011 = vmatpush1.bf16.xpose.msra.mxu0 0
        %1012 = vmatprep.subr.bf16.mxu0 0
        %1013 = vmatpush1.bf16.xpose.msra.mxu0 0
        %1014 = vmatprep.subr.bf16.mxu0 0
        %1015 = vmatpush1.bf16.xpose.msra.mxu0 0
        %1016 = vmatprep.subr.bf16.mxu0 0
        %1017 = vmatpush1.bf16.xpose.msra.mxu0 0
        %1018 = vmatprep.subr.bf16.mxu0 0
        %1019 = vmatpush1.bf16.xpose.msra.mxu0 0
        %1020 = vmatprep.subr.bf16.mxu0 0
        %1021 = vmatpush1.bf16.xpose.msra.mxu0 0
        %1022 = vmatprep.subr.bf16.mxu0 0
        %1023 = vmatpush1.bf16.xpose.msra.mxu0 0
        %1024 = vmatprep.subr.bf16.mxu0 0
        %1025 = vmatpush1.bf16.xpose.msra.mxu0 0
        %1026 = vmatprep.mubr.bf16.mxu0 0
        %1027 = vmatmul.mubr.bf16.gmra.mrb[0].mxu0 %v989
        %v1028 = vpop.f32.mrb[0].mxu0
        %v1029 = vadd.f32 %v806, %v1028
        %v1030 = vpop.f32.mrb[0].mxu0
        %v1031 = vpop.f32.mrb[0].mxu0
        %v1032 = vpop.f32.mrb[0].mxu0
        %1033 = vdwg.mxu0
        %v1035 = vsel %vm987, %v982, 0
        %v1038 = vsel %vm987, %v984, 0
        %1040 = vmatprep.subr.bf16.mxu0 0
        %1041 = vmatpush1.bf16.xpose.msra.mxu0 %v1038
        %1042 = vmatprep.subr.bf16.mxu0 0
        %1043 = vmatpush1.bf16.xpose.msra.mxu0 0
        %1044 = vmatprep.subr.bf16.mxu0 0
        %1045 = vmatpush1.bf16.xpose.msra.mxu0 0
        %1046 = vmatprep.subr.bf16.mxu0 0
        %1047 = vmatpush1.bf16.xpose.msra.mxu0 0
        %1048 = vmatprep.subr.bf16.mxu0 0
        %1049 = vmatpush1.bf16.xpose.msra.mxu0 0
        %1050 = vmatprep.subr.bf16.mxu0 0
        %1051 = vmatpush1.bf16.xpose.msra.mxu0 0
        %1052 = vmatprep.subr.bf16.mxu0 0
        %1053 = vmatpush1.bf16.xpose.msra.mxu0 0
        %1054 = vmatprep.subr.bf16.mxu0 0
        %1055 = vmatpush1.bf16.xpose.msra.mxu0 0
        %1056 = vmatprep.subr.bf16.mxu0 0
        %1057 = vmatpush1.bf16.xpose.msra.mxu0 0
        %1058 = vmatprep.subr.bf16.mxu0 0
        %1059 = vmatpush1.bf16.xpose.msra.mxu0 0
        %1060 = vmatprep.subr.bf16.mxu0 0
        %1061 = vmatpush1.bf16.xpose.msra.mxu0 0
        %1062 = vmatprep.subr.bf16.mxu0 0
        %1063 = vmatpush1.bf16.xpose.msra.mxu0 0
        %1064 = vmatprep.subr.bf16.mxu0 0
        %1065 = vmatpush1.bf16.xpose.msra.mxu0 0
        %1066 = vmatprep.subr.bf16.mxu0 0
        %1067 = vmatpush1.bf16.xpose.msra.mxu0 0
        %1068 = vmatprep.subr.bf16.mxu0 0
        %1069 = vmatpush1.bf16.xpose.msra.mxu0 0
        %1070 = vmatprep.subr.bf16.mxu0 0
        %1071 = vmatpush1.bf16.xpose.msra.mxu0 0
        %1072 = vmatprep.mubr.bf16.mxu0 0
        %1073 = vmatmul.mubr.bf16.gmra.mrb[0].mxu0 %v1035
        %v1074 = vpop.f32.mrb[0].mxu0
        %v1075 = vadd.f32 %v806, %v1074
        %v1076 = vpop.f32.mrb[0].mxu0
        %v1077 = vpop.f32.mrb[0].mxu0
        %v1078 = vpop.f32.mrb[0].mxu0
        %1079 = vdwg.mxu0
        %v1080 = vsel %vm987, %v1029, -inf
        %1081 = vmax.xlane.f32.xlu0 %v1080
        %v1082 = vpop.xlane.xlu0 %1081
        %v1083 = vsel %vm987, %v1075, -inf
        %1084 = vmax.xlane.f32.xlu0 %v1083
        %v1085 = vpop.xlane.xlu0 %1084
        %v1086 = vsub.f32 %v1029, %v1082
        %v1087 = vsub.f32 %v1075, %v1085
        %v1088 = vmul.f32 %v1086, 1.442695
        %v1089 = vpow.pop %v1088
        %v1090 = vmul.f32 %v1087, 1.442695
        %v1091 = vpow.pop %v1090
        %v1092 = vsel %vm987, %v1089, 0.0
        %1093 = vadd.xlane.f32.xlu0 %v1092
        %v1094 = vpop.xlane.xlu0 %1093
        %v1095 = vsel %vm987, %v1091, 0.0
        %1096 = vadd.xlane.f32.xlu0 %v1095
        %v1097 = vpop.xlane.xlu0 %1096
        %v1098 = vrcp.pop %v1094
        %v1099 = vrcp.pop %v1097
        %v1100 = vmul.f32 %v1089, %v1098
        %v1101 = vmul.f32 %v1091, %v1099
        %v1102 = vpack.c.bf16 %v1100, %v1100
        %v1103 = vpack.c.bf16 %v1101, %v1101
        %v1105 = vsel %vm987, %v1102, 0
        %vm1107 = vcmask 1043456
        %v1109 = vsel %vm1107, %v985, 0
        %1111 = vmatprep.subr.bf16.mxu0 0
        %1112 = vmatpush1.bf16.msra.mxu0 %v1109
        %1113 = vmatprep.subr.bf16.mxu0 0
        %1114 = vmatpush1.bf16.msra.mxu0 0
        %1115 = vmatprep.subr.bf16.mxu0 0
        %1116 = vmatpush1.bf16.msra.mxu0 0
        %1117 = vmatprep.subr.bf16.mxu0 0
        %1118 = vmatpush1.bf16.msra.mxu0 0
        %1119 = vmatprep.subr.bf16.mxu0 0
        %1120 = vmatpush1.bf16.msra.mxu0 0
        %1121 = vmatprep.subr.bf16.mxu0 0
        %1122 = vmatpush1.bf16.msra.mxu0 0
        %1123 = vmatprep.subr.bf16.mxu0 0
        %1124 = vmatpush1.bf16.msra.mxu0 0
        %1125 = vmatprep.subr.bf16.mxu0 0
        %1126 = vmatpush1.bf16.msra.mxu0 0
        %1127 = vmatprep.subr.bf16.mxu0 0
        %1128 = vmatpush1.bf16.msra.mxu0 0
        %1129 = vmatprep.subr.bf16.mxu0 0
        %1130 = vmatpush1.bf16.msra.mxu0 0
        %1131 = vmatprep.subr.bf16.mxu0 0
        %1132 = vmatpush1.bf16.msra.mxu0 0
        %1133 = vmatprep.subr.bf16.mxu0 0
        %1134 = vmatpush1.bf16.msra.mxu0 0
        %1135 = vmatprep.subr.bf16.mxu0 0
        %1136 = vmatpush1.bf16.msra.mxu0 0
        %1137 = vmatprep.subr.bf16.mxu0 0
        %1138 = vmatpush1.bf16.msra.mxu0 0
        %1139 = vmatprep.subr.bf16.mxu0 0
        %1140 = vmatpush1.bf16.msra.mxu0 0
        %1141 = vmatprep.subr.bf16.mxu0 0
        %1142 = vmatpush1.bf16.msra.mxu0 0
        %1143 = vmatprep.mubr.bf16.mxu0 0
        %1144 = vmatmul.mubr.bf16.gmra.mrb[0].mxu0 %v1105
        %v1145 = vpop.f32.mrb[0].mxu0
        %v1146 = vadd.f32 0.0, %v1145
        %v1147 = vpop.f32.mrb[0].mxu0
        %v1148 = vpop.f32.mrb[0].mxu0
        %v1149 = vpop.f32.mrb[0].mxu0
        %1150 = vdwg.mxu0
        %v1152 = vsel %vm987, %v1103, 0
        %v1155 = vsel %vm1107, %v986, 0
        %1157 = vmatprep.subr.bf16.mxu0 0
        %1158 = vmatpush1.bf16.msra.mxu0 %v1155
        %1159 = vmatprep.subr.bf16.mxu0 0
        %1160 = vmatpush1.bf16.msra.mxu0 0
        %1161 = vmatprep.subr.bf16.mxu0 0
        %1162 = vmatpush1.bf16.msra.mxu0 0
        %1163 = vmatprep.subr.bf16.mxu0 0
        %1164 = vmatpush1.bf16.msra.mxu0 0
        %1165 = vmatprep.subr.bf16.mxu0 0
        %1166 = vmatpush1.bf16.msra.mxu0 0
        %1167 = vmatprep.subr.bf16.mxu0 0
        %1168 = vmatpush1.bf16.msra.mxu0 0
        %1169 = vmatprep.subr.bf16.mxu0 0
        %1170 = vmatpush1.bf16.msra.mxu0 0
        %1171 = vmatprep.subr.bf16.mxu0 0
        %1172 = vmatpush1.bf16.msra.mxu0 0
        %1173 = vmatprep.subr.bf16.mxu0 0
        %1174 = vmatpush1.bf16.msra.mxu0 0
        %1175 = vmatprep.subr.bf16.mxu0 0
        %1176 = vmatpush1.bf16.msra.mxu0 0
        %1177 = vmatprep.subr.bf16.mxu0 0
        %1178 = vmatpush1.bf16.msra.mxu0 0
        %1179 = vmatprep.subr.bf16.mxu0 0
        %1180 = vmatpush1.bf16.msra.mxu0 0
        %1181 = vmatprep.subr.bf16.mxu0 0
        %1182 = vmatpush1.bf16.msra.mxu0 0
        %1183 = vmatprep.subr.bf16.mxu0 0
        %1184 = vmatpush1.bf16.msra.mxu0 0
        %1185 = vmatprep.subr.bf16.mxu0 0
        %1186 = vmatpush1.bf16.msra.mxu0 0
        %1187 = vmatprep.subr.bf16.mxu0 0
        %1188 = vmatpush1.bf16.msra.mxu0 0
        %1189 = vmatprep.mubr.bf16.mxu0 0
        %1190 = vmatmul.mubr.bf16.gmra.mrb[0].mxu0 %v1152
        %v1191 = vpop.f32.mrb[0].mxu0
        %v1192 = vadd.f32 0.0, %v1191
        %v1193 = vpop.f32.mrb[0].mxu0
        %v1194 = vpop.f32.mrb[0].mxu0
        %v1195 = vpop.f32.mrb[0].mxu0
        %1196 = vdwg.mxu0
        %v1197 = vpack.c.bf16 %v1192, %v1146
        %v1198 = vld [vmem:[%s732] sm:$0xf]
        %s1199 = scalar_lea.vmem %s717, 16
        %v1200 = vld [vmem:[%s1199] sm:$0xf]
        %v1201 = vld [vmem:[%s1199 + $0x4] sm:$0xf]
        %v1202 = vld [vmem:[%s1199 + $0x8] sm:$0xf]
        %v1203 = vld [vmem:[%s1199 + $0xc] sm:$0xf]
        %v1208 = vunpack.c.l.b16 %v1200
        %v1209 = vunpack.c.l.b16 %v1201
        %v1210 = vunpack.c.l.b16 %v1202
        %v1211 = vunpack.c.l.b16 %v1203
        %v1212 = vpack.c.b16 %v1209, %v1208
        %v1213 = vpack.c.b16 %v1211, %v1210
        %1216 = vmatprep.subr.bf16.mxu0 0
        %1217 = vmatpush1.bf16.msra.mxu0 %v1212
        %1218 = vmatprep.subr.bf16.mxu0 0
        %1219 = vmatpush1.bf16.msra.mxu0 %v1213
        %1220 = vmatprep.subr.bf16.mxu0 0
        %1221 = vmatpush1.bf16.msra.mxu0 0
        %1222 = vmatprep.subr.bf16.mxu0 0
        %1223 = vmatpush1.bf16.msra.mxu0 0
        %1224 = vmatprep.subr.bf16.mxu0 0
        %1225 = vmatpush1.bf16.msra.mxu0 0
        %1226 = vmatprep.subr.bf16.mxu0 0
        %1227 = vmatpush1.bf16.msra.mxu0 0
        %1228 = vmatprep.subr.bf16.mxu0 0
        %1229 = vmatpush1.bf16.msra.mxu0 0
        %1230 = vmatprep.subr.bf16.mxu0 0
        %1231 = vmatpush1.bf16.msra.mxu0 0
        %1232 = vmatprep.subr.bf16.mxu0 0
        %1233 = vmatpush1.bf16.msra.mxu0 0
        %1234 = vmatprep.subr.bf16.mxu0 0
        %1235 = vmatpush1.bf16.msra.mxu0 0
        %1236 = vmatprep.subr.bf16.mxu0 0
        %1237 = vmatpush1.bf16.msra.mxu0 0
        %1238 = vmatprep.subr.bf16.mxu0 0
        %1239 = vmatpush1.bf16.msra.mxu0 0
        %1240 = vmatprep.subr.bf16.mxu0 0
        %1241 = vmatpush1.bf16.msra.mxu0 0
        %1242 = vmatprep.subr.bf16.mxu0 0
        %1243 = vmatpush1.bf16.msra.mxu0 0
        %1244 = vmatprep.subr.bf16.mxu0 0
        %1245 = vmatpush1.bf16.msra.mxu0 0
        %1246 = vmatprep.subr.bf16.mxu0 0
        %1247 = vmatpush1.bf16.msra.mxu0 0
        %1248 = vmatprep.mubr.bf16.mxu0 0
        %1249 = vmatmul.mubr.bf16.gmra.mrb[0].mxu0 %v824
        %v1250 = vpop.f32.mrb[0].mxu0
        %v1251 = vadd.f32 0.0, %v1250
        %v1252 = vpop.f32.mrb[0].mxu0
        %v1253 = vpop.f32.mrb[0].mxu0
        %v1254 = vadd.f32 0.0, %v1253
        %v1255 = vpop.f32.mrb[0].mxu0
        %1256 = vdwg.mxu0
        %s1257 = scalar_lea.vmem %s722, 16
        %v1258 = vld [vmem:[%s1257] sm:$0xf]
        %v1259 = vld [vmem:[%s1257 + $0x4] sm:$0xf]
        %v1260 = vld [vmem:[%s1257 + $0x8] sm:$0xf]
        %v1261 = vld [vmem:[%s1257 + $0xc] sm:$0xf]
        %v1266 = vunpack.c.l.b16 %v1258
        %v1267 = vunpack.c.l.b16 %v1259
        %v1268 = vunpack.c.l.b16 %v1260
        %v1269 = vunpack.c.l.b16 %v1261
        %v1270 = vpack.c.b16 %v1267, %v1266
        %v1271 = vpack.c.b16 %v1269, %v1268
        %1274 = vmatprep.subr.bf16.mxu0 0
        %1275 = vmatpush1.bf16.msra.mxu0 %v1270
        %1276 = vmatprep.subr.bf16.mxu0 0
        %1277 = vmatpush1.bf16.msra.mxu0 %v1271
        %1278 = vmatprep.subr.bf16.mxu0 0
        %1279 = vmatpush1.bf16.msra.mxu0 0
        %1280 = vmatprep.subr.bf16.mxu0 0
        %1281 = vmatpush1.bf16.msra.mxu0 0
        %1282 = vmatprep.subr.bf16.mxu0 0
        %1283 = vmatpush1.bf16.msra.mxu0 0
        %1284 = vmatprep.subr.bf16.mxu0 0
        %1285 = vmatpush1.bf16.msra.mxu0 0
        %1286 = vmatprep.subr.bf16.mxu0 0
        %1287 = vmatpush1.bf16.msra.mxu0 0
        %1288 = vmatprep.subr.bf16.mxu0 0
        %1289 = vmatpush1.bf16.msra.mxu0 0
        %1290 = vmatprep.subr.bf16.mxu0 0
        %1291 = vmatpush1.bf16.msra.mxu0 0
        %1292 = vmatprep.subr.bf16.mxu0 0
        %1293 = vmatpush1.bf16.msra.mxu0 0
        %1294 = vmatprep.subr.bf16.mxu0 0
        %1295 = vmatpush1.bf16.msra.mxu0 0
        %1296 = vmatprep.subr.bf16.mxu0 0
        %1297 = vmatpush1.bf16.msra.mxu0 0
        %1298 = vmatprep.subr.bf16.mxu0 0
        %1299 = vmatpush1.bf16.msra.mxu0 0
        %1300 = vmatprep.subr.bf16.mxu0 0
        %1301 = vmatpush1.bf16.msra.mxu0 0
        %1302 = vmatprep.subr.bf16.mxu0 0
        %1303 = vmatpush1.bf16.msra.mxu0 0
        %1304 = vmatprep.subr.bf16.mxu0 0
        %1305 = vmatpush1.bf16.msra.mxu0 0
        %1306 = vmatprep.mubr.bf16.mxu0 0
        %1307 = vmatmul.mubr.bf16.gmra.mrb[0].mxu0 %v824
        %v1308 = vpop.f32.mrb[0].mxu0
        %v1309 = vadd.f32 0.0, %v1308
        %v1310 = vpop.f32.mrb[0].mxu0
        %v1311 = vpop.f32.mrb[0].mxu0
        %v1312 = vadd.f32 0.0, %v1311
        %v1313 = vpop.f32.mrb[0].mxu0
        %1314 = vdwg.mxu0
        %s1315 = scalar_lea.vmem %s727, 16
        %v1316 = vld [vmem:[%s1315] sm:$0xf]
        %v1317 = vld [vmem:[%s1315 + $0x4] sm:$0xf]
        %v1318 = vld [vmem:[%s1315 + $0x8] sm:$0xf]
        %v1319 = vld [vmem:[%s1315 + $0xc] sm:$0xf]
        %v1324 = vunpack.c.l.b16 %v1316
        %v1325 = vunpack.c.l.b16 %v1317
        %v1326 = vunpack.c.l.b16 %v1318
        %v1327 = vunpack.c.l.b16 %v1319
        %v1328 = vpack.c.b16 %v1325, %v1324
        %v1329 = vpack.c.b16 %v1327, %v1326
        %1332 = vmatprep.subr.bf16.mxu0 0
        %1333 = vmatpush1.bf16.msra.mxu0 %v1328
        %1334 = vmatprep.subr.bf16.mxu0 0
        %1335 = vmatpush1.bf16.msra.mxu0 %v1329
        %1336 = vmatprep.subr.bf16.mxu0 0
        %1337 = vmatpush1.bf16.msra.mxu0 0
        %1338 = vmatprep.subr.bf16.mxu0 0
        %1339 = vmatpush1.bf16.msra.mxu0 0
        %1340 = vmatprep.subr.bf16.mxu0 0
        %1341 = vmatpush1.bf16.msra.mxu0 0
        %1342 = vmatprep.subr.bf16.mxu0 0
        %1343 = vmatpush1.bf16.msra.mxu0 0
        %1344 = vmatprep.subr.bf16.mxu0 0
        %1345 = vmatpush1.bf16.msra.mxu0 0
        %1346 = vmatprep.subr.bf16.mxu0 0
        %1347 = vmatpush1.bf16.msra.mxu0 0
        %1348 = vmatprep.subr.bf16.mxu0 0
        %1349 = vmatpush1.bf16.msra.mxu0 0
        %1350 = vmatprep.subr.bf16.mxu0 0
        %1351 = vmatpush1.bf16.msra.mxu0 0
        %1352 = vmatprep.subr.bf16.mxu0 0
        %1353 = vmatpush1.bf16.msra.mxu0 0
        %1354 = vmatprep.subr.bf16.mxu0 0
        %1355 = vmatpush1.bf16.msra.mxu0 0
        %1356 = vmatprep.subr.bf16.mxu0 0
        %1357 = vmatpush1.bf16.msra.mxu0 0
        %1358 = vmatprep.subr.bf16.mxu0 0
        %1359 = vmatpush1.bf16.msra.mxu0 0
        %1360 = vmatprep.subr.bf16.mxu0 0
        %1361 = vmatpush1.bf16.msra.mxu0 0
        %1362 = vmatprep.subr.bf16.mxu0 0
        %1363 = vmatpush1.bf16.msra.mxu0 0
        %1364 = vmatprep.mubr.bf16.mxu0 0
        %1365 = vmatmul.mubr.bf16.gmra.mrb[0].mxu0 %v824
        %v1366 = vpop.f32.mrb[0].mxu0
        %v1367 = vadd.f32 0.0, %v1366
        %v1368 = vpop.f32.mrb[0].mxu0
        %v1369 = vpop.f32.mrb[0].mxu0
        %v1370 = vadd.f32 0.0, %v1369
        %v1371 = vpop.f32.mrb[0].mxu0
        %1372 = vdwg.mxu0
        %v1373 = vpack.c.bf16 %v1251, %v1251
        %v1374 = vpack.c.bf16 %v1254, %v1254
        %v1375 = vpack.c.bf16 %v1309, %v1309
        %v1376 = vpack.c.bf16 %v1312, %v1312
        %v1377 = vpack.c.bf16 %v1367, %v1367
        %v1378 = vpack.c.bf16 %v1370, %v1370
        %v1380 = vsel %vm987, %v1373, 0
        %v1383 = vsel %vm987, %v1375, 0
        %1385 = vmatprep.subr.bf16.mxu0 0
        %1386 = vmatpush1.bf16.xpose.msra.mxu0 %v1383
        %1387 = vmatprep.subr.bf16.mxu0 0
        %1388 = vmatpush1.bf16.xpose.msra.mxu0 0
        %1389 = vmatprep.subr.bf16.mxu0 0
        %1390 = vmatpush1.bf16.xpose.msra.mxu0 0
        %1391 = vmatprep.subr.bf16.mxu0 0
        %1392 = vmatpush1.bf16.xpose.msra.mxu0 0
        %1393 = vmatprep.subr.bf16.mxu0 0
        %1394 = vmatpush1.bf16.xpose.msra.mxu0 0
        %1395 = vmatprep.subr.bf16.mxu0 0
        %1396 = vmatpush1.bf16.xpose.msra.mxu0 0
        %1397 = vmatprep.subr.bf16.mxu0 0
        %1398 = vmatpush1.bf16.xpose.msra.mxu0 0
        %1399 = vmatprep.subr.bf16.mxu0 0
        %1400 = vmatpush1.bf16.xpose.msra.mxu0 0
        %1401 = vmatprep.subr.bf16.mxu0 0
        %1402 = vmatpush1.bf16.xpose.msra.mxu0 0
        %1403 = vmatprep.subr.bf16.mxu0 0
        %1404 = vmatpush1.bf16.xpose.msra.mxu0 0
        %1405 = vmatprep.subr.bf16.mxu0 0
        %1406 = vmatpush1.bf16.xpose.msra.mxu0 0
        %1407 = vmatprep.subr.bf16.mxu0 0
        %1408 = vmatpush1.bf16.xpose.msra.mxu0 0
        %1409 = vmatprep.subr.bf16.mxu0 0
        %1410 = vmatpush1.bf16.xpose.msra.mxu0 0
        %1411 = vmatprep.subr.bf16.mxu0 0
        %1412 = vmatpush1.bf16.xpose.msra.mxu0 0
        %1413 = vmatprep.subr.bf16.mxu0 0
        %1414 = vmatpush1.bf16.xpose.msra.mxu0 0
        %1415 = vmatprep.subr.bf16.mxu0 0
        %1416 = vmatpush1.bf16.xpose.msra.mxu0 0
        %1417 = vmatprep.mubr.bf16.mxu0 0
        %1418 = vmatmul.mubr.bf16.gmra.mrb[0].mxu0 %v1380
        %v1419 = vpop.f32.mrb[0].mxu0
        %v1420 = vadd.f32 %v806, %v1419
        %v1421 = vpop.f32.mrb[0].mxu0
        %v1422 = vpop.f32.mrb[0].mxu0
        %v1423 = vpop.f32.mrb[0].mxu0
        %1424 = vdwg.mxu0
        %v1426 = vsel %vm987, %v1374, 0
        %v1429 = vsel %vm987, %v1376, 0
        %1431 = vmatprep.subr.bf16.mxu0 0
        %1432 = vmatpush1.bf16.xpose.msra.mxu0 %v1429
        %1433 = vmatprep.subr.bf16.mxu0 0
        %1434 = vmatpush1.bf16.xpose.msra.mxu0 0
        %1435 = vmatprep.subr.bf16.mxu0 0
        %1436 = vmatpush1.bf16.xpose.msra.mxu0 0
        %1437 = vmatprep.subr.bf16.mxu0 0
        %1438 = vmatpush1.bf16.xpose.msra.mxu0 0
        %1439 = vmatprep.subr.bf16.mxu0 0
        %1440 = vmatpush1.bf16.xpose.msra.mxu0 0
        %1441 = vmatprep.subr.bf16.mxu0 0
        %1442 = vmatpush1.bf16.xpose.msra.mxu0 0
        %1443 = vmatprep.subr.bf16.mxu0 0
        %1444 = vmatpush1.bf16.xpose.msra.mxu0 0
        %1445 = vmatprep.subr.bf16.mxu0 0
        %1446 = vmatpush1.bf16.xpose.msra.mxu0 0
        %1447 = vmatprep.subr.bf16.mxu0 0
        %1448 = vmatpush1.bf16.xpose.msra.mxu0 0
        %1449 = vmatprep.subr.bf16.mxu0 0
        %1450 = vmatpush1.bf16.xpose.msra.mxu0 0
        %1451 = vmatprep.subr.bf16.mxu0 0
        %1452 = vmatpush1.bf16.xpose.msra.mxu0 0
        %1453 = vmatprep.subr.bf16.mxu0 0
        %1454 = vmatpush1.bf16.xpose.msra.mxu0 0
        %1455 = vmatprep.subr.bf16.mxu0 0
        %1456 = vmatpush1.bf16.xpose.msra.mxu0 0
        %1457 = vmatprep.subr.bf16.mxu0 0
        %1458 = vmatpush1.bf16.xpose.msra.mxu0 0
        %1459 = vmatprep.subr.bf16.mxu0 0
        %1460 = vmatpush1.bf16.xpose.msra.mxu0 0
        %1461 = vmatprep.subr.bf16.mxu0 0
        %1462 = vmatpush1.bf16.xpose.msra.mxu0 0
        %1463 = vmatprep.mubr.bf16.mxu0 0
        %1464 = vmatmul.mubr.bf16.gmra.mrb[0].mxu0 %v1426
        %v1465 = vpop.f32.mrb[0].mxu0
        %v1466 = vadd.f32 %v806, %v1465
        %v1467 = vpop.f32.mrb[0].mxu0
        %v1468 = vpop.f32.mrb[0].mxu0
        %v1469 = vpop.f32.mrb[0].mxu0
        %1470 = vdwg.mxu0
        %v1471 = vsel %vm987, %v1420, -inf
        %1472 = vmax.xlane.f32.xlu0 %v1471
        %v1473 = vpop.xlane.xlu0 %1472
        %v1474 = vsel %vm987, %v1466, -inf
        %1475 = vmax.xlane.f32.xlu0 %v1474
        %v1476 = vpop.xlane.xlu0 %1475
        %v1477 = vsub.f32 %v1420, %v1473
        %v1478 = vsub.f32 %v1466, %v1476
        %v1479 = vmul.f32 %v1477, 1.442695
        %v1480 = vpow.pop %v1479
        %v1481 = vmul.f32 %v1478, 1.442695
        %v1482 = vpow.pop %v1481
        %v1483 = vsel %vm987, %v1480, 0.0
        %1484 = vadd.xlane.f32.xlu0 %v1483
        %v1485 = vpop.xlane.xlu0 %1484
        %v1486 = vsel %vm987, %v1482, 0.0
        %1487 = vadd.xlane.f32.xlu0 %v1486
        %v1488 = vpop.xlane.xlu0 %1487
        %v1489 = vrcp.pop %v1485
        %v1490 = vrcp.pop %v1488
        %v1491 = vmul.f32 %v1480, %v1489
        %v1492 = vmul.f32 %v1482, %v1490
        %v1493 = vpack.c.bf16 %v1491, %v1491
        %v1494 = vpack.c.bf16 %v1492, %v1492
        %v1496 = vsel %vm987, %v1493, 0
        %v1499 = vsel %vm1107, %v1377, 0
        %1501 = vmatprep.subr.bf16.mxu0 0
        %1502 = vmatpush1.bf16.msra.mxu0 %v1499
        %1503 = vmatprep.subr.bf16.mxu0 0
        %1504 = vmatpush1.bf16.msra.mxu0 0
        %1505 = vmatprep.subr.bf16.mxu0 0
        %1506 = vmatpush1.bf16.msra.mxu0 0
        %1507 = vmatprep.subr.bf16.mxu0 0
        %1508 = vmatpush1.bf16.msra.mxu0 0
        %1509 = vmatprep.subr.bf16.mxu0 0
        %1510 = vmatpush1.bf16.msra.mxu0 0
        %1511 = vmatprep.subr.bf16.mxu0 0
        %1512 = vmatpush1.bf16.msra.mxu0 0
        %1513 = vmatprep.subr.bf16.mxu0 0
        %1514 = vmatpush1.bf16.msra.mxu0 0
        %1515 = vmatprep.subr.bf16.mxu0 0
        %1516 = vmatpush1.bf16.msra.mxu0 0
        %1517 = vmatprep.subr.bf16.mxu0 0
        %1518 = vmatpush1.bf16.msra.mxu0 0
        %1519 = vmatprep.subr.bf16.mxu0 0
        %1520 = vmatpush1.bf16.msra.mxu0 0
        %1521 = vmatprep.subr.bf16.mxu0 0
        %1522 = vmatpush1.bf16.msra.mxu0 0
        %1523 = vmatprep.subr.bf16.mxu0 0
        %1524 = vmatpush1.bf16.msra.mxu0 0
        %1525 = vmatprep.subr.bf16.mxu0 0
        %1526 = vmatpush1.bf16.msra.mxu0 0
        %1527 = vmatprep.subr.bf16.mxu0 0
        %1528 = vmatpush1.bf16.msra.mxu0 0
        %1529 = vmatprep.subr.bf16.mxu0 0
        %1530 = vmatpush1.bf16.msra.mxu0 0
        %1531 = vmatprep.subr.bf16.mxu0 0
        %1532 = vmatpush1.bf16.msra.mxu0 0
        %1533 = vmatprep.mubr.bf16.mxu0 0
        %1534 = vmatmul.mubr.bf16.gmra.mrb[0].mxu0 %v1496
        %v1535 = vpop.f32.mrb[0].mxu0
        %v1536 = vadd.f32 0.0, %v1535
        %v1537 = vpop.f32.mrb[0].mxu0
        %v1538 = vpop.f32.mrb[0].mxu0
        %v1539 = vpop.f32.mrb[0].mxu0
        %1540 = vdwg.mxu0
        %v1542 = vsel %vm987, %v1494, 0
        %v1545 = vsel %vm1107, %v1378, 0
        %1547 = vmatprep.subr.bf16.mxu0 0
        %1548 = vmatpush1.bf16.msra.mxu0 %v1545
        %1549 = vmatprep.subr.bf16.mxu0 0
        %1550 = vmatpush1.bf16.msra.mxu0 0
        %1551 = vmatprep.subr.bf16.mxu0 0
        %1552 = vmatpush1.bf16.msra.mxu0 0
        %1553 = vmatprep.subr.bf16.mxu0 0
        %1554 = vmatpush1.bf16.msra.mxu0 0
        %1555 = vmatprep.subr.bf16.mxu0 0
        %1556 = vmatpush1.bf16.msra.mxu0 0
        %1557 = vmatprep.subr.bf16.mxu0 0
        %1558 = vmatpush1.bf16.msra.mxu0 0
        %1559 = vmatprep.subr.bf16.mxu0 0
        %1560 = vmatpush1.bf16.msra.mxu0 0
        %1561 = vmatprep.subr.bf16.mxu0 0
        %1562 = vmatpush1.bf16.msra.mxu0 0
        %1563 = vmatprep.subr.bf16.mxu0 0
        %1564 = vmatpush1.bf16.msra.mxu0 0
        %1565 = vmatprep.subr.bf16.mxu0 0
        %1566 = vmatpush1.bf16.msra.mxu0 0
        %1567 = vmatprep.subr.bf16.mxu0 0
        %1568 = vmatpush1.bf16.msra.mxu0 0
        %1569 = vmatprep.subr.bf16.mxu0 0
        %1570 = vmatpush1.bf16.msra.mxu0 0
        %1571 = vmatprep.subr.bf16.mxu0 0
        %1572 = vmatpush1.bf16.msra.mxu0 0
        %1573 = vmatprep.subr.bf16.mxu0 0
        %1574 = vmatpush1.bf16.msra.mxu0 0
        %1575 = vmatprep.subr.bf16.mxu0 0
        %1576 = vmatpush1.bf16.msra.mxu0 0
        %1577 = vmatprep.subr.bf16.mxu0 0
        %1578 = vmatpush1.bf16.msra.mxu0 0
        %1579 = vmatprep.mubr.bf16.mxu0 0
        %1580 = vmatmul.mubr.bf16.gmra.mrb[0].mxu0 %v1542
        %v1581 = vpop.f32.mrb[0].mxu0
        %v1582 = vadd.f32 0.0, %v1581
        %v1583 = vpop.f32.mrb[0].mxu0
        %v1584 = vpop.f32.mrb[0].mxu0
        %v1585 = vpop.f32.mrb[0].mxu0
        %1586 = vdwg.mxu0
        %v1587 = vpack.c.bf16 %v1582, %v1536
        %s1588 = scalar_lea.vmem %s732, 4
        %v1589 = vld [vmem:[%s1588] sm:$0xf]
        %v1591 = vsel %vm987, %v1587, 0
        %v1594 = vsel %vm1107, %v1589, 0
        %1596 = vmatprep.subr.bf16.mxu0 0
        %1597 = vmatpush1.bf16.msra.mxu0 %v1594
        %1598 = vmatprep.subr.bf16.mxu0 0
        %1599 = vmatpush1.bf16.msra.mxu0 0
        %1600 = vmatprep.subr.bf16.mxu0 0
        %1601 = vmatpush1.bf16.msra.mxu0 0
        %1602 = vmatprep.subr.bf16.mxu0 0
        %1603 = vmatpush1.bf16.msra.mxu0 0
        %1604 = vmatprep.subr.bf16.mxu0 0
        %1605 = vmatpush1.bf16.msra.mxu0 0
        %1606 = vmatprep.subr.bf16.mxu0 0
        %1607 = vmatpush1.bf16.msra.mxu0 0
        %1608 = vmatprep.subr.bf16.mxu0 0
        %1609 = vmatpush1.bf16.msra.mxu0 0
        %1610 = vmatprep.subr.bf16.mxu0 0
        %1611 = vmatpush1.bf16.msra.mxu0 0
        %1612 = vmatprep.subr.bf16.mxu0 0
        %1613 = vmatpush1.bf16.msra.mxu0 0
        %1614 = vmatprep.subr.bf16.mxu0 0
        %1615 = vmatpush1.bf16.msra.mxu0 0
        %1616 = vmatprep.subr.bf16.mxu0 0
        %1617 = vmatpush1.bf16.msra.mxu0 0
        %1618 = vmatprep.subr.bf16.mxu0 0
        %1619 = vmatpush1.bf16.msra.mxu0 0
        %1620 = vmatprep.subr.bf16.mxu0 0
        %1621 = vmatpush1.bf16.msra.mxu0 0
        %1622 = vmatprep.subr.bf16.mxu0 0
        %1623 = vmatpush1.bf16.msra.mxu0 0
        %1624 = vmatprep.subr.bf16.mxu0 0
        %1625 = vmatpush1.bf16.msra.mxu0 0
        %1626 = vmatprep.subr.bf16.mxu0 0
        %1627 = vmatpush1.bf16.msra.mxu0 0
        %1628 = vmatprep.mubr.bf16.mxu0 0
        %1629 = vmatmul.mubr.bf16.gmra.mrb[0].mxu0 %v1591
        %v1630 = vpop.f32.mrb[0].mxu0
        %v1631 = vadd.f32 0.0, %v1630
        %v1632 = vpop.f32.mrb[0].mxu0
        %v1633 = vpop.f32.mrb[0].mxu0
        %v1634 = vadd.f32 0.0, %v1633
        %v1635 = vpop.f32.mrb[0].mxu0
        %1636 = vdwg.mxu0
        %v1638 = vsel %vm987, %v1197, 0
        %v1641 = vsel %vm1107, %v1198, 0
        %1643 = vmatprep.subr.bf16.mxu0 0
        %1644 = vmatpush1.bf16.msra.mxu0 %v1641
        %1645 = vmatprep.subr.bf16.mxu0 0
        %1646 = vmatpush1.bf16.msra.mxu0 0
        %1647 = vmatprep.subr.bf16.mxu0 0
        %1648 = vmatpush1.bf16.msra.mxu0 0
        %1649 = vmatprep.subr.bf16.mxu0 0
        %1650 = vmatpush1.bf16.msra.mxu0 0
        %1651 = vmatprep.subr.bf16.mxu0 0
        %1652 = vmatpush1.bf16.msra.mxu0 0
        %1653 = vmatprep.subr.bf16.mxu0 0
        %1654 = vmatpush1.bf16.msra.mxu0 0
        %1655 = vmatprep.subr.bf16.mxu0 0
        %1656 = vmatpush1.bf16.msra.mxu0 0
        %1657 = vmatprep.subr.bf16.mxu0 0
        %1658 = vmatpush1.bf16.msra.mxu0 0
        %1659 = vmatprep.subr.bf16.mxu0 0
        %1660 = vmatpush1.bf16.msra.mxu0 0
        %1661 = vmatprep.subr.bf16.mxu0 0
        %1662 = vmatpush1.bf16.msra.mxu0 0
        %1663 = vmatprep.subr.bf16.mxu0 0
        %1664 = vmatpush1.bf16.msra.mxu0 0
        %1665 = vmatprep.subr.bf16.mxu0 0
        %1666 = vmatpush1.bf16.msra.mxu0 0
        %1667 = vmatprep.subr.bf16.mxu0 0
        %1668 = vmatpush1.bf16.msra.mxu0 0
        %1669 = vmatprep.subr.bf16.mxu0 0
        %1670 = vmatpush1.bf16.msra.mxu0 0
        %1671 = vmatprep.subr.bf16.mxu0 0
        %1672 = vmatpush1.bf16.msra.mxu0 0
        %1673 = vmatprep.subr.bf16.mxu0 0
        %1674 = vmatpush1.bf16.msra.mxu0 0
        %1675 = vmatprep.mubr.bf16.mxu0 0
        %1676 = vmatmul.mubr.bf16.gmra.mrb[0].mxu0 %v1638
        %v1677 = vpop.f32.mrb[0].mxu0
        %v1678 = vadd.f32 %v1631, %v1677
        %v1679 = vpop.f32.mrb[0].mxu0
        %v1680 = vpop.f32.mrb[0].mxu0
        %v1681 = vadd.f32 %v1634, %v1680
        %v1682 = vpop.f32.mrb[0].mxu0
        %1683 = vdwg.mxu0
        %s1684 = scalar_lea.vmem %s717, 32
        %v1685 = vld [vmem:[%s1684] sm:$0xf]
        %v1686 = vld [vmem:[%s1684 + $0x4] sm:$0xf]
        %v1687 = vld [vmem:[%s1684 + $0x8] sm:$0xf]
        %v1688 = vld [vmem:[%s1684 + $0xc] sm:$0xf]
        %v1693 = vunpack.c.l.b16 %v1685
        %v1694 = vunpack.c.l.b16 %v1686
        %v1695 = vunpack.c.l.b16 %v1687
        %v1696 = vunpack.c.l.b16 %v1688
        %v1697 = vpack.c.b16 %v1694, %v1693
        %v1698 = vpack.c.b16 %v1696, %v1695
        %1701 = vmatprep.subr.bf16.mxu0 0
        %1702 = vmatpush1.bf16.msra.mxu0 %v1697
        %1703 = vmatprep.subr.bf16.mxu0 0
        %1704 = vmatpush1.bf16.msra.mxu0 %v1698
        %1705 = vmatprep.subr.bf16.mxu0 0
        %1706 = vmatpush1.bf16.msra.mxu0 0
        %1707 = vmatprep.subr.bf16.mxu0 0
        %1708 = vmatpush1.bf16.msra.mxu0 0
        %1709 = vmatprep.subr.bf16.mxu0 0
        %1710 = vmatpush1.bf16.msra.mxu0 0
        %1711 = vmatprep.subr.bf16.mxu0 0
        %1712 = vmatpush1.bf16.msra.mxu0 0
        %1713 = vmatprep.subr.bf16.mxu0 0
        %1714 = vmatpush1.bf16.msra.mxu0 0
        %1715 = vmatprep.subr.bf16.mxu0 0
        %1716 = vmatpush1.bf16.msra.mxu0 0
        %1717 = vmatprep.subr.bf16.mxu0 0
        %1718 = vmatpush1.bf16.msra.mxu0 0
        %1719 = vmatprep.subr.bf16.mxu0 0
        %1720 = vmatpush1.bf16.msra.mxu0 0
        %1721 = vmatprep.subr.bf16.mxu0 0
        %1722 = vmatpush1.bf16.msra.mxu0 0
        %1723 = vmatprep.subr.bf16.mxu0 0
        %1724 = vmatpush1.bf16.msra.mxu0 0
        %1725 = vmatprep.subr.bf16.mxu0 0
        %1726 = vmatpush1.bf16.msra.mxu0 0
        %1727 = vmatprep.subr.bf16.mxu0 0
        %1728 = vmatpush1.bf16.msra.mxu0 0
        %1729 = vmatprep.subr.bf16.mxu0 0
        %1730 = vmatpush1.bf16.msra.mxu0 0
        %1731 = vmatprep.subr.bf16.mxu0 0
        %1732 = vmatpush1.bf16.msra.mxu0 0
        %1733 = vmatprep.mubr.bf16.mxu0 0
        %1734 = vmatmul.mubr.bf16.gmra.mrb[0].mxu0 %v824
        %v1735 = vpop.f32.mrb[0].mxu0
        %v1736 = vadd.f32 0.0, %v1735
        %v1737 = vpop.f32.mrb[0].mxu0
        %v1738 = vpop.f32.mrb[0].mxu0
        %v1739 = vadd.f32 0.0, %v1738
        %v1740 = vpop.f32.mrb[0].mxu0
        %1741 = vdwg.mxu0
        %s1742 = scalar_lea.vmem %s722, 32
        %v1743 = vld [vmem:[%s1742] sm:$0xf]
        %v1744 = vld [vmem:[%s1742 + $0x4] sm:$0xf]
        %v1745 = vld [vmem:[%s1742 + $0x8] sm:$0xf]
        %v1746 = vld [vmem:[%s1742 + $0xc] sm:$0xf]
        %v1751 = vunpack.c.l.b16 %v1743
        %v1752 = vunpack.c.l.b16 %v1744
        %v1753 = vunpack.c.l.b16 %v1745
        %v1754 = vunpack.c.l.b16 %v1746
        %v1755 = vpack.c.b16 %v1752, %v1751
        %v1756 = vpack.c.b16 %v1754, %v1753
        %1759 = vmatprep.subr.bf16.mxu0 0
        %1760 = vmatpush1.bf16.msra.mxu0 %v1755
        %1761 = vmatprep.subr.bf16.mxu0 0
        %1762 = vmatpush1.bf16.msra.mxu0 %v1756
        %1763 = vmatprep.subr.bf16.mxu0 0
        %1764 = vmatpush1.bf16.msra.mxu0 0
        %1765 = vmatprep.subr.bf16.mxu0 0
        %1766 = vmatpush1.bf16.msra.mxu0 0
        %1767 = vmatprep.subr.bf16.mxu0 0
        %1768 = vmatpush1.bf16.msra.mxu0 0
        %1769 = vmatprep.subr.bf16.mxu0 0
        %1770 = vmatpush1.bf16.msra.mxu0 0
        %1771 = vmatprep.subr.bf16.mxu0 0
        %1772 = vmatpush1.bf16.msra.mxu0 0
        %1773 = vmatprep.subr.bf16.mxu0 0
        %1774 = vmatpush1.bf16.msra.mxu0 0
        %1775 = vmatprep.subr.bf16.mxu0 0
        %1776 = vmatpush1.bf16.msra.mxu0 0
        %1777 = vmatprep.subr.bf16.mxu0 0
        %1778 = vmatpush1.bf16.msra.mxu0 0
        %1779 = vmatprep.subr.bf16.mxu0 0
        %1780 = vmatpush1.bf16.msra.mxu0 0
        %1781 = vmatprep.subr.bf16.mxu0 0
        %1782 = vmatpush1.bf16.msra.mxu0 0
        %1783 = vmatprep.subr.bf16.mxu0 0
        %1784 = vmatpush1.bf16.msra.mxu0 0
        %1785 = vmatprep.subr.bf16.mxu0 0
        %1786 = vmatpush1.bf16.msra.mxu0 0
        %1787 = vmatprep.subr.bf16.mxu0 0
        %1788 = vmatpush1.bf16.msra.mxu0 0
        %1789 = vmatprep.subr.bf16.mxu0 0
        %1790 = vmatpush1.bf16.msra.mxu0 0
        %1791 = vmatprep.mubr.bf16.mxu0 0
        %1792 = vmatmul.mubr.bf16.gmra.mrb[0].mxu0 %v824
        %v1793 = vpop.f32.mrb[0].mxu0
        %v1794 = vadd.f32 0.0, %v1793
        %v1795 = vpop.f32.mrb[0].mxu0
        %v1796 = vpop.f32.mrb[0].mxu0
        %v1797 = vadd.f32 0.0, %v1796
        %v1798 = vpop.f32.mrb[0].mxu0
        %1799 = vdwg.mxu0
        %s1800 = scalar_lea.vmem %s727, 32
        %v1801 = vld [vmem:[%s1800] sm:$0xf]
        %v1802 = vld [vmem:[%s1800 + $0x4] sm:$0xf]
        %v1803 = vld [vmem:[%s1800 + $0x8] sm:$0xf]
        %v1804 = vld [vmem:[%s1800 + $0xc] sm:$0xf]
        %v1809 = vunpack.c.l.b16 %v1801
        %v1810 = vunpack.c.l.b16 %v1802
        %v1811 = vunpack.c.l.b16 %v1803
        %v1812 = vunpack.c.l.b16 %v1804
        %v1813 = vpack.c.b16 %v1810, %v1809
        %v1814 = vpack.c.b16 %v1812, %v1811
        %1817 = vmatprep.subr.bf16.mxu0 0
        %1818 = vmatpush1.bf16.msra.mxu0 %v1813
        %1819 = vmatprep.subr.bf16.mxu0 0
        %1820 = vmatpush1.bf16.msra.mxu0 %v1814
        %1821 = vmatprep.subr.bf16.mxu0 0
        %1822 = vmatpush1.bf16.msra.mxu0 0
        %1823 = vmatprep.subr.bf16.mxu0 0
        %1824 = vmatpush1.bf16.msra.mxu0 0
        %1825 = vmatprep.subr.bf16.mxu0 0
        %1826 = vmatpush1.bf16.msra.mxu0 0
        %1827 = vmatprep.subr.bf16.mxu0 0
        %1828 = vmatpush1.bf16.msra.mxu0 0
        %1829 = vmatprep.subr.bf16.mxu0 0
        %1830 = vmatpush1.bf16.msra.mxu0 0
        %1831 = vmatprep.subr.bf16.mxu0 0
        %1832 = vmatpush1.bf16.msra.mxu0 0
        %1833 = vmatprep.subr.bf16.mxu0 0
        %1834 = vmatpush1.bf16.msra.mxu0 0
        %1835 = vmatprep.subr.bf16.mxu0 0
        %1836 = vmatpush1.bf16.msra.mxu0 0
        %1837 = vmatprep.subr.bf16.mxu0 0
        %1838 = vmatpush1.bf16.msra.mxu0 0
        %1839 = vmatprep.subr.bf16.mxu0 0
        %1840 = vmatpush1.bf16.msra.mxu0 0
        %1841 = vmatprep.subr.bf16.mxu0 0
        %1842 = vmatpush1.bf16.msra.mxu0 0
        %1843 = vmatprep.subr.bf16.mxu0 0
        %1844 = vmatpush1.bf16.msra.mxu0 0
        %1845 = vmatprep.subr.bf16.mxu0 0
        %1846 = vmatpush1.bf16.msra.mxu0 0
        %1847 = vmatprep.subr.bf16.mxu0 0
        %1848 = vmatpush1.bf16.msra.mxu0 0
        %1849 = vmatprep.mubr.bf16.mxu0 0
        %1850 = vmatmul.mubr.bf16.gmra.mrb[0].mxu0 %v824
        %v1851 = vpop.f32.mrb[0].mxu0
        %v1852 = vadd.f32 0.0, %v1851
        %v1853 = vpop.f32.mrb[0].mxu0
        %v1854 = vpop.f32.mrb[0].mxu0
        %v1855 = vadd.f32 0.0, %v1854
        %v1856 = vpop.f32.mrb[0].mxu0
        %1857 = vdwg.mxu0
        %v1858 = vpack.c.bf16 %v1736, %v1736
        %v1859 = vpack.c.bf16 %v1739, %v1739
        %v1860 = vpack.c.bf16 %v1794, %v1794
        %v1861 = vpack.c.bf16 %v1797, %v1797
        %v1862 = vpack.c.bf16 %v1852, %v1852
        %v1863 = vpack.c.bf16 %v1855, %v1855
        %v1865 = vsel %vm987, %v1858, 0
        %v1868 = vsel %vm987, %v1860, 0
        %1870 = vmatprep.subr.bf16.mxu0 0
        %1871 = vmatpush1.bf16.xpose.msra.mxu0 %v1868
        %1872 = vmatprep.subr.bf16.mxu0 0
        %1873 = vmatpush1.bf16.xpose.msra.mxu0 0
        %1874 = vmatprep.subr.bf16.mxu0 0
        %1875 = vmatpush1.bf16.xpose.msra.mxu0 0
        %1876 = vmatprep.subr.bf16.mxu0 0
        %1877 = vmatpush1.bf16.xpose.msra.mxu0 0
        %1878 = vmatprep.subr.bf16.mxu0 0
        %1879 = vmatpush1.bf16.xpose.msra.mxu0 0
        %1880 = vmatprep.subr.bf16.mxu0 0
        %1881 = vmatpush1.bf16.xpose.msra.mxu0 0
        %1882 = vmatprep.subr.bf16.mxu0 0
        %1883 = vmatpush1.bf16.xpose.msra.mxu0 0
        %1884 = vmatprep.subr.bf16.mxu0 0
        %1885 = vmatpush1.bf16.xpose.msra.mxu0 0
        %1886 = vmatprep.subr.bf16.mxu0 0
        %1887 = vmatpush1.bf16.xpose.msra.mxu0 0
        %1888 = vmatprep.subr.bf16.mxu0 0
        %1889 = vmatpush1.bf16.xpose.msra.mxu0 0
        %1890 = vmatprep.subr.bf16.mxu0 0
        %1891 = vmatpush1.bf16.xpose.msra.mxu0 0
        %1892 = vmatprep.subr.bf16.mxu0 0
        %1893 = vmatpush1.bf16.xpose.msra.mxu0 0
        %1894 = vmatprep.subr.bf16.mxu0 0
        %1895 = vmatpush1.bf16.xpose.msra.mxu0 0
        %1896 = vmatprep.subr.bf16.mxu0 0
        %1897 = vmatpush1.bf16.xpose.msra.mxu0 0
        %1898 = vmatprep.subr.bf16.mxu0 0
        %1899 = vmatpush1.bf16.xpose.msra.mxu0 0
        %1900 = vmatprep.subr.bf16.mxu0 0
        %1901 = vmatpush1.bf16.xpose.msra.mxu0 0
        %1902 = vmatprep.mubr.bf16.mxu0 0
        %1903 = vmatmul.mubr.bf16.gmra.mrb[0].mxu0 %v1865
        %v1904 = vpop.f32.mrb[0].mxu0
        %v1905 = vadd.f32 %v806, %v1904
        %v1906 = vpop.f32.mrb[0].mxu0
        %v1907 = vpop.f32.mrb[0].mxu0
        %v1908 = vpop.f32.mrb[0].mxu0
        %1909 = vdwg.mxu0
        %v1911 = vsel %vm987, %v1859, 0
        %v1914 = vsel %vm987, %v1861, 0
        %1916 = vmatprep.subr.bf16.mxu0 0
        %1917 = vmatpush1.bf16.xpose.msra.mxu0 %v1914
        %1918 = vmatprep.subr.bf16.mxu0 0
        %1919 = vmatpush1.bf16.xpose.msra.mxu0 0
        %1920 = vmatprep.subr.bf16.mxu0 0
        %1921 = vmatpush1.bf16.xpose.msra.mxu0 0
        %1922 = vmatprep.subr.bf16.mxu0 0
        %1923 = vmatpush1.bf16.xpose.msra.mxu0 0
        %1924 = vmatprep.subr.bf16.mxu0 0
        %1925 = vmatpush1.bf16.xpose.msra.mxu0 0
        %1926 = vmatprep.subr.bf16.mxu0 0
        %1927 = vmatpush1.bf16.xpose.msra.mxu0 0
        %1928 = vmatprep.subr.bf16.mxu0 0
        %1929 = vmatpush1.bf16.xpose.msra.mxu0 0
        %1930 = vmatprep.subr.bf16.mxu0 0
        %1931 = vmatpush1.bf16.xpose.msra.mxu0 0
        %1932 = vmatprep.subr.bf16.mxu0 0
        %1933 = vmatpush1.bf16.xpose.msra.mxu0 0
        %1934 = vmatprep.subr.bf16.mxu0 0
        %1935 = vmatpush1.bf16.xpose.msra.mxu0 0
        %1936 = vmatprep.subr.bf16.mxu0 0
        %1937 = vmatpush1.bf16.xpose.msra.mxu0 0
        %1938 = vmatprep.subr.bf16.mxu0 0
        %1939 = vmatpush1.bf16.xpose.msra.mxu0 0
        %1940 = vmatprep.subr.bf16.mxu0 0
        %1941 = vmatpush1.bf16.xpose.msra.mxu0 0
        %1942 = vmatprep.subr.bf16.mxu0 0
        %1943 = vmatpush1.bf16.xpose.msra.mxu0 0
        %1944 = vmatprep.subr.bf16.mxu0 0
        %1945 = vmatpush1.bf16.xpose.msra.mxu0 0
        %1946 = vmatprep.subr.bf16.mxu0 0
        %1947 = vmatpush1.bf16.xpose.msra.mxu0 0
        %1948 = vmatprep.mubr.bf16.mxu0 0
        %1949 = vmatmul.mubr.bf16.gmra.mrb[0].mxu0 %v1911
        %v1950 = vpop.f32.mrb[0].mxu0
        %v1951 = vadd.f32 %v806, %v1950
        %v1952 = vpop.f32.mrb[0].mxu0
        %v1953 = vpop.f32.mrb[0].mxu0
        %v1954 = vpop.f32.mrb[0].mxu0
        %1955 = vdwg.mxu0
        %v1956 = vsel %vm987, %v1905, -inf
        %1957 = vmax.xlane.f32.xlu0 %v1956
        %v1958 = vpop.xlane.xlu0 %1957
        %v1959 = vsel %vm987, %v1951, -inf
        %1960 = vmax.xlane.f32.xlu0 %v1959
        %v1961 = vpop.xlane.xlu0 %1960
        %v1962 = vsub.f32 %v1905, %v1958
        %v1963 = vsub.f32 %v1951, %v1961
        %v1964 = vmul.f32 %v1962, 1.442695
        %v1965 = vpow.pop %v1964
        %v1966 = vmul.f32 %v1963, 1.442695
        %v1967 = vpow.pop %v1966
        %v1968 = vsel %vm987, %v1965, 0.0
        %1969 = vadd.xlane.f32.xlu0 %v1968
        %v1970 = vpop.xlane.xlu0 %1969
        %v1971 = vsel %vm987, %v1967, 0.0
        %1972 = vadd.xlane.f32.xlu0 %v1971
        %v1973 = vpop.xlane.xlu0 %1972
        %v1974 = vrcp.pop %v1970
        %v1975 = vrcp.pop %v1973
        %v1976 = vmul.f32 %v1965, %v1974
        %v1977 = vmul.f32 %v1967, %v1975
        %v1978 = vpack.c.bf16 %v1976, %v1976
        %v1979 = vpack.c.bf16 %v1977, %v1977
        %v1981 = vsel %vm987, %v1978, 0
        %v1984 = vsel %vm1107, %v1862, 0
        %1986 = vmatprep.subr.bf16.mxu0 0
        %1987 = vmatpush1.bf16.msra.mxu0 %v1984
        %1988 = vmatprep.subr.bf16.mxu0 0
        %1989 = vmatpush1.bf16.msra.mxu0 0
        %1990 = vmatprep.subr.bf16.mxu0 0
        %1991 = vmatpush1.bf16.msra.mxu0 0
        %1992 = vmatprep.subr.bf16.mxu0 0
        %1993 = vmatpush1.bf16.msra.mxu0 0
        %1994 = vmatprep.subr.bf16.mxu0 0
        %1995 = vmatpush1.bf16.msra.mxu0 0
        %1996 = vmatprep.subr.bf16.mxu0 0
        %1997 = vmatpush1.bf16.msra.mxu0 0
        %1998 = vmatprep.subr.bf16.mxu0 0
        %1999 = vmatpush1.bf16.msra.mxu0 0
        %2000 = vmatprep.subr.bf16.mxu0 0
        %2001 = vmatpush1.bf16.msra.mxu0 0
        %2002 = vmatprep.subr.bf16.mxu0 0
        %2003 = vmatpush1.bf16.msra.mxu0 0
        %2004 = vmatprep.subr.bf16.mxu0 0
        %2005 = vmatpush1.bf16.msra.mxu0 0
        %2006 = vmatprep.subr.bf16.mxu0 0
        %2007 = vmatpush1.bf16.msra.mxu0 0
        %2008 = vmatprep.subr.bf16.mxu0 0
        %2009 = vmatpush1.bf16.msra.mxu0 0
        %2010 = vmatprep.subr.bf16.mxu0 0
        %2011 = vmatpush1.bf16.msra.mxu0 0
        %2012 = vmatprep.subr.bf16.mxu0 0
        %2013 = vmatpush1.bf16.msra.mxu0 0
        %2014 = vmatprep.subr.bf16.mxu0 0
        %2015 = vmatpush1.bf16.msra.mxu0 0
        %2016 = vmatprep.subr.bf16.mxu0 0
        %2017 = vmatpush1.bf16.msra.mxu0 0
        %2018 = vmatprep.mubr.bf16.mxu0 0
        %2019 = vmatmul.mubr.bf16.gmra.mrb[0].mxu0 %v1981
        %v2020 = vpop.f32.mrb[0].mxu0
        %v2021 = vadd.f32 0.0, %v2020
        %v2022 = vpop.f32.mrb[0].mxu0
        %v2023 = vpop.f32.mrb[0].mxu0
        %v2024 = vpop.f32.mrb[0].mxu0
        %2025 = vdwg.mxu0
        %v2027 = vsel %vm987, %v1979, 0
        %v2030 = vsel %vm1107, %v1863, 0
        %2032 = vmatprep.subr.bf16.mxu0 0
        %2033 = vmatpush1.bf16.msra.mxu0 %v2030
        %2034 = vmatprep.subr.bf16.mxu0 0
        %2035 = vmatpush1.bf16.msra.mxu0 0
        %2036 = vmatprep.subr.bf16.mxu0 0
        %2037 = vmatpush1.bf16.msra.mxu0 0
        %2038 = vmatprep.subr.bf16.mxu0 0
        %2039 = vmatpush1.bf16.msra.mxu0 0
        %2040 = vmatprep.subr.bf16.mxu0 0
        %2041 = vmatpush1.bf16.msra.mxu0 0
        %2042 = vmatprep.subr.bf16.mxu0 0
        %2043 = vmatpush1.bf16.msra.mxu0 0
        %2044 = vmatprep.subr.bf16.mxu0 0
        %2045 = vmatpush1.bf16.msra.mxu0 0
        %2046 = vmatprep.subr.bf16.mxu0 0
        %2047 = vmatpush1.bf16.msra.mxu0 0
        %2048 = vmatprep.subr.bf16.mxu0 0
        %2049 = vmatpush1.bf16.msra.mxu0 0
        %2050 = vmatprep.subr.bf16.mxu0 0
        %2051 = vmatpush1.bf16.msra.mxu0 0
        %2052 = vmatprep.subr.bf16.mxu0 0
        %2053 = vmatpush1.bf16.msra.mxu0 0
        %2054 = vmatprep.subr.bf16.mxu0 0
        %2055 = vmatpush1.bf16.msra.mxu0 0
        %2056 = vmatprep.subr.bf16.mxu0 0
        %2057 = vmatpush1.bf16.msra.mxu0 0
        %2058 = vmatprep.subr.bf16.mxu0 0
        %2059 = vmatpush1.bf16.msra.mxu0 0
        %2060 = vmatprep.subr.bf16.mxu0 0
        %2061 = vmatpush1.bf16.msra.mxu0 0
        %2062 = vmatprep.subr.bf16.mxu0 0
        %2063 = vmatpush1.bf16.msra.mxu0 0
        %2064 = vmatprep.mubr.bf16.mxu0 0
        %2065 = vmatmul.mubr.bf16.gmra.mrb[0].mxu0 %v2027
        %v2066 = vpop.f32.mrb[0].mxu0
        %v2067 = vadd.f32 0.0, %v2066
        %v2068 = vpop.f32.mrb[0].mxu0
        %v2069 = vpop.f32.mrb[0].mxu0
        %v2070 = vpop.f32.mrb[0].mxu0
        %2071 = vdwg.mxu0
        %v2072 = vpack.c.bf16 %v2067, %v2021
        %s2073 = scalar_lea.vmem %s732, 8
        %v2074 = vld [vmem:[%s2073] sm:$0xf]
        %v2076 = vsel %vm987, %v2072, 0
        %v2079 = vsel %vm1107, %v2074, 0
        %2081 = vmatprep.subr.bf16.mxu0 0
        %2082 = vmatpush1.bf16.msra.mxu0 %v2079
        %2083 = vmatprep.subr.bf16.mxu0 0
        %2084 = vmatpush1.bf16.msra.mxu0 0
        %2085 = vmatprep.subr.bf16.mxu0 0
        %2086 = vmatpush1.bf16.msra.mxu0 0
        %2087 = vmatprep.subr.bf16.mxu0 0
        %2088 = vmatpush1.bf16.msra.mxu0 0
        %2089 = vmatprep.subr.bf16.mxu0 0
        %2090 = vmatpush1.bf16.msra.mxu0 0
        %2091 = vmatprep.subr.bf16.mxu0 0
        %2092 = vmatpush1.bf16.msra.mxu0 0
        %2093 = vmatprep.subr.bf16.mxu0 0
        %2094 = vmatpush1.bf16.msra.mxu0 0
        %2095 = vmatprep.subr.bf16.mxu0 0
        %2096 = vmatpush1.bf16.msra.mxu0 0
        %2097 = vmatprep.subr.bf16.mxu0 0
        %2098 = vmatpush1.bf16.msra.mxu0 0
        %2099 = vmatprep.subr.bf16.mxu0 0
        %2100 = vmatpush1.bf16.msra.mxu0 0
        %2101 = vmatprep.subr.bf16.mxu0 0
        %2102 = vmatpush1.bf16.msra.mxu0 0
        %2103 = vmatprep.subr.bf16.mxu0 0
        %2104 = vmatpush1.bf16.msra.mxu0 0
        %2105 = vmatprep.subr.bf16.mxu0 0
        %2106 = vmatpush1.bf16.msra.mxu0 0
        %2107 = vmatprep.subr.bf16.mxu0 0
        %2108 = vmatpush1.bf16.msra.mxu0 0
        %2109 = vmatprep.subr.bf16.mxu0 0
        %2110 = vmatpush1.bf16.msra.mxu0 0
        %2111 = vmatprep.subr.bf16.mxu0 0
        %2112 = vmatpush1.bf16.msra.mxu0 0
        %2113 = vmatprep.mubr.bf16.mxu0 0
        %2114 = vmatmul.mubr.bf16.gmra.mrb[0].mxu0 %v2076
        %v2115 = vpop.f32.mrb[0].mxu0
        %v2116 = vadd.f32 0.0, %v2115
        %v2117 = vpop.f32.mrb[0].mxu0
        %v2118 = vpop.f32.mrb[0].mxu0
        %v2119 = vadd.f32 0.0, %v2118
        %v2120 = vpop.f32.mrb[0].mxu0
        %2121 = vdwg.mxu0
        %v2122 = vadd.f32 %v1678, %v2116
        %v2123 = vadd.f32 %v1681, %v2119
        %s2124 = scalar_lea.vmem %s717, 48
        %v2125 = vld [vmem:[%s2124] sm:$0xf]
        %v2126 = vld [vmem:[%s2124 + $0x4] sm:$0xf]
        %v2127 = vld [vmem:[%s2124 + $0x8] sm:$0xf]
        %v2128 = vld [vmem:[%s2124 + $0xc] sm:$0xf]
        %v2133 = vunpack.c.l.b16 %v2125
        %v2134 = vunpack.c.l.b16 %v2126
        %v2135 = vunpack.c.l.b16 %v2127
        %v2136 = vunpack.c.l.b16 %v2128
        %v2137 = vpack.c.b16 %v2134, %v2133
        %v2138 = vpack.c.b16 %v2136, %v2135
        %2141 = vmatprep.subr.bf16.mxu0 0
        %2142 = vmatpush1.bf16.msra.mxu0 %v2137
        %2143 = vmatprep.subr.bf16.mxu0 0
        %2144 = vmatpush1.bf16.msra.mxu0 %v2138
        %2145 = vmatprep.subr.bf16.mxu0 0
        %2146 = vmatpush1.bf16.msra.mxu0 0
        %2147 = vmatprep.subr.bf16.mxu0 0
        %2148 = vmatpush1.bf16.msra.mxu0 0
        %2149 = vmatprep.subr.bf16.mxu0 0
        %2150 = vmatpush1.bf16.msra.mxu0 0
        %2151 = vmatprep.subr.bf16.mxu0 0
        %2152 = vmatpush1.bf16.msra.mxu0 0
        %2153 = vmatprep.subr.bf16.mxu0 0
        %2154 = vmatpush1.bf16.msra.mxu0 0
        %2155 = vmatprep.subr.bf16.mxu0 0
        %2156 = vmatpush1.bf16.msra.mxu0 0
        %2157 = vmatprep.subr.bf16.mxu0 0
        %2158 = vmatpush1.bf16.msra.mxu0 0
        %2159 = vmatprep.subr.bf16.mxu0 0
        %2160 = vmatpush1.bf16.msra.mxu0 0
        %2161 = vmatprep.subr.bf16.mxu0 0
        %2162 = vmatpush1.bf16.msra.mxu0 0
        %2163 = vmatprep.subr.bf16.mxu0 0
        %2164 = vmatpush1.bf16.msra.mxu0 0
        %2165 = vmatprep.subr.bf16.mxu0 0
        %2166 = vmatpush1.bf16.msra.mxu0 0
        %2167 = vmatprep.subr.bf16.mxu0 0
        %2168 = vmatpush1.bf16.msra.mxu0 0
        %2169 = vmatprep.subr.bf16.mxu0 0
        %2170 = vmatpush1.bf16.msra.mxu0 0
        %2171 = vmatprep.subr.bf16.mxu0 0
        %2172 = vmatpush1.bf16.msra.mxu0 0
        %2173 = vmatprep.mubr.bf16.mxu0 0
        %2174 = vmatmul.mubr.bf16.gmra.mrb[0].mxu0 %v824
        %v2175 = vpop.f32.mrb[0].mxu0
        %v2176 = vadd.f32 0.0, %v2175
        %v2177 = vpop.f32.mrb[0].mxu0
        %v2178 = vpop.f32.mrb[0].mxu0
        %v2179 = vadd.f32 0.0, %v2178
        %v2180 = vpop.f32.mrb[0].mxu0
        %2181 = vdwg.mxu0
        %s2182 = scalar_lea.vmem %s722, 48
        %v2183 = vld [vmem:[%s2182] sm:$0xf]
        %v2184 = vld [vmem:[%s2182 + $0x4] sm:$0xf]
        %v2185 = vld [vmem:[%s2182 + $0x8] sm:$0xf]
        %v2186 = vld [vmem:[%s2182 + $0xc] sm:$0xf]
        %v2191 = vunpack.c.l.b16 %v2183
        %v2192 = vunpack.c.l.b16 %v2184
        %v2193 = vunpack.c.l.b16 %v2185
        %v2194 = vunpack.c.l.b16 %v2186
        %v2195 = vpack.c.b16 %v2192, %v2191
        %v2196 = vpack.c.b16 %v2194, %v2193
        %2199 = vmatprep.subr.bf16.mxu0 0
        %2200 = vmatpush1.bf16.msra.mxu0 %v2195
        %2201 = vmatprep.subr.bf16.mxu0 0
        %2202 = vmatpush1.bf16.msra.mxu0 %v2196
        %2203 = vmatprep.subr.bf16.mxu0 0
        %2204 = vmatpush1.bf16.msra.mxu0 0
        %2205 = vmatprep.subr.bf16.mxu0 0
        %2206 = vmatpush1.bf16.msra.mxu0 0
        %2207 = vmatprep.subr.bf16.mxu0 0
        %2208 = vmatpush1.bf16.msra.mxu0 0
        %2209 = vmatprep.subr.bf16.mxu0 0
        %2210 = vmatpush1.bf16.msra.mxu0 0
        %2211 = vmatprep.subr.bf16.mxu0 0
        %2212 = vmatpush1.bf16.msra.mxu0 0
        %2213 = vmatprep.subr.bf16.mxu0 0
        %2214 = vmatpush1.bf16.msra.mxu0 0
        %2215 = vmatprep.subr.bf16.mxu0 0
        %2216 = vmatpush1.bf16.msra.mxu0 0
        %2217 = vmatprep.subr.bf16.mxu0 0
        %2218 = vmatpush1.bf16.msra.mxu0 0
        %2219 = vmatprep.subr.bf16.mxu0 0
        %2220 = vmatpush1.bf16.msra.mxu0 0
        %2221 = vmatprep.subr.bf16.mxu0 0
        %2222 = vmatpush1.bf16.msra.mxu0 0
        %2223 = vmatprep.subr.bf16.mxu0 0
        %2224 = vmatpush1.bf16.msra.mxu0 0
        %2225 = vmatprep.subr.bf16.mxu0 0
        %2226 = vmatpush1.bf16.msra.mxu0 0
        %2227 = vmatprep.subr.bf16.mxu0 0
        %2228 = vmatpush1.bf16.msra.mxu0 0
        %2229 = vmatprep.subr.bf16.mxu0 0
        %2230 = vmatpush1.bf16.msra.mxu0 0
        %2231 = vmatprep.mubr.bf16.mxu0 0
        %2232 = vmatmul.mubr.bf16.gmra.mrb[0].mxu0 %v824
        %v2233 = vpop.f32.mrb[0].mxu0
        %v2234 = vadd.f32 0.0, %v2233
        %v2235 = vpop.f32.mrb[0].mxu0
        %v2236 = vpop.f32.mrb[0].mxu0
        %v2237 = vadd.f32 0.0, %v2236
        %v2238 = vpop.f32.mrb[0].mxu0
        %2239 = vdwg.mxu0
        %s2240 = scalar_lea.vmem %s727, 48
        %v2241 = vld [vmem:[%s2240] sm:$0xf]
        %v2242 = vld [vmem:[%s2240 + $0x4] sm:$0xf]
        %v2243 = vld [vmem:[%s2240 + $0x8] sm:$0xf]
        %v2244 = vld [vmem:[%s2240 + $0xc] sm:$0xf]
        %v2249 = vunpack.c.l.b16 %v2241
        %v2250 = vunpack.c.l.b16 %v2242
        %v2251 = vunpack.c.l.b16 %v2243
        %v2252 = vunpack.c.l.b16 %v2244
        %v2253 = vpack.c.b16 %v2250, %v2249
        %v2254 = vpack.c.b16 %v2252, %v2251
        %2257 = vmatprep.subr.bf16.mxu0 0
        %2258 = vmatpush1.bf16.msra.mxu0 %v2253
        %2259 = vmatprep.subr.bf16.mxu0 0
        %2260 = vmatpush1.bf16.msra.mxu0 %v2254
        %2261 = vmatprep.subr.bf16.mxu0 0
        %2262 = vmatpush1.bf16.msra.mxu0 0
        %2263 = vmatprep.subr.bf16.mxu0 0
        %2264 = vmatpush1.bf16.msra.mxu0 0
        %2265 = vmatprep.subr.bf16.mxu0 0
        %2266 = vmatpush1.bf16.msra.mxu0 0
        %2267 = vmatprep.subr.bf16.mxu0 0
        %2268 = vmatpush1.bf16.msra.mxu0 0
        %2269 = vmatprep.subr.bf16.mxu0 0
        %2270 = vmatpush1.bf16.msra.mxu0 0
        %2271 = vmatprep.subr.bf16.mxu0 0
        %2272 = vmatpush1.bf16.msra.mxu0 0
        %2273 = vmatprep.subr.bf16.mxu0 0
        %2274 = vmatpush1.bf16.msra.mxu0 0
        %2275 = vmatprep.subr.bf16.mxu0 0
        %2276 = vmatpush1.bf16.msra.mxu0 0
        %2277 = vmatprep.subr.bf16.mxu0 0
        %2278 = vmatpush1.bf16.msra.mxu0 0
        %2279 = vmatprep.subr.bf16.mxu0 0
        %2280 = vmatpush1.bf16.msra.mxu0 0
        %2281 = vmatprep.subr.bf16.mxu0 0
        %2282 = vmatpush1.bf16.msra.mxu0 0
        %2283 = vmatprep.subr.bf16.mxu0 0
        %2284 = vmatpush1.bf16.msra.mxu0 0
        %2285 = vmatprep.subr.bf16.mxu0 0
        %2286 = vmatpush1.bf16.msra.mxu0 0
        %2287 = vmatprep.subr.bf16.mxu0 0
        %2288 = vmatpush1.bf16.msra.mxu0 0
        %2289 = vmatprep.mubr.bf16.mxu0 0
        %2290 = vmatmul.mubr.bf16.gmra.mrb[0].mxu0 %v824
        %v2291 = vpop.f32.mrb[0].mxu0
        %v2292 = vadd.f32 0.0, %v2291
        %v2293 = vpop.f32.mrb[0].mxu0
        %v2294 = vpop.f32.mrb[0].mxu0
        %v2295 = vadd.f32 0.0, %v2294
        %v2296 = vpop.f32.mrb[0].mxu0
        %2297 = vdwg.mxu0
        %v2298 = vpack.c.bf16 %v2176, %v2176
        %v2299 = vpack.c.bf16 %v2179, %v2179
        %v2300 = vpack.c.bf16 %v2234, %v2234
        %v2301 = vpack.c.bf16 %v2237, %v2237
        %v2302 = vpack.c.bf16 %v2292, %v2292
        %v2303 = vpack.c.bf16 %v2295, %v2295
        %v2305 = vsel %vm987, %v2298, 0
        %v2308 = vsel %vm987, %v2300, 0
        %2310 = vmatprep.subr.bf16.mxu0 0
        %2311 = vmatpush1.bf16.xpose.msra.mxu0 %v2308
        %2312 = vmatprep.subr.bf16.mxu0 0
        %2313 = vmatpush1.bf16.xpose.msra.mxu0 0
        %2314 = vmatprep.subr.bf16.mxu0 0
        %2315 = vmatpush1.bf16.xpose.msra.mxu0 0
        %2316 = vmatprep.subr.bf16.mxu0 0
        %2317 = vmatpush1.bf16.xpose.msra.mxu0 0
        %2318 = vmatprep.subr.bf16.mxu0 0
        %2319 = vmatpush1.bf16.xpose.msra.mxu0 0
        %2320 = vmatprep.subr.bf16.mxu0 0
        %2321 = vmatpush1.bf16.xpose.msra.mxu0 0
        %2322 = vmatprep.subr.bf16.mxu0 0
        %2323 = vmatpush1.bf16.xpose.msra.mxu0 0
        %2324 = vmatprep.subr.bf16.mxu0 0
        %2325 = vmatpush1.bf16.xpose.msra.mxu0 0
        %2326 = vmatprep.subr.bf16.mxu0 0
        %2327 = vmatpush1.bf16.xpose.msra.mxu0 0
        %2328 = vmatprep.subr.bf16.mxu0 0
        %2329 = vmatpush1.bf16.xpose.msra.mxu0 0
        %2330 = vmatprep.subr.bf16.mxu0 0
        %2331 = vmatpush1.bf16.xpose.msra.mxu0 0
        %2332 = vmatprep.subr.bf16.mxu0 0
        %2333 = vmatpush1.bf16.xpose.msra.mxu0 0
        %2334 = vmatprep.subr.bf16.mxu0 0
        %2335 = vmatpush1.bf16.xpose.msra.mxu0 0
        %2336 = vmatprep.subr.bf16.mxu0 0
        %2337 = vmatpush1.bf16.xpose.msra.mxu0 0
        %2338 = vmatprep.subr.bf16.mxu0 0
        %2339 = vmatpush1.bf16.xpose.msra.mxu0 0
        %2340 = vmatprep.subr.bf16.mxu0 0
        %2341 = vmatpush1.bf16.xpose.msra.mxu0 0
        %2342 = vmatprep.mubr.bf16.mxu0 0
        %2343 = vmatmul.mubr.bf16.gmra.mrb[0].mxu0 %v2305
        %v2344 = vpop.f32.mrb[0].mxu0
        %v2345 = vadd.f32 %v806, %v2344
        %v2346 = vpop.f32.mrb[0].mxu0
        %v2347 = vpop.f32.mrb[0].mxu0
        %v2348 = vpop.f32.mrb[0].mxu0
        %2349 = vdwg.mxu0
        %v2351 = vsel %vm987, %v2299, 0
        %v2354 = vsel %vm987, %v2301, 0
        %2356 = vmatprep.subr.bf16.mxu0 0
        %2357 = vmatpush1.bf16.xpose.msra.mxu0 %v2354
        %2358 = vmatprep.subr.bf16.mxu0 0
        %2359 = vmatpush1.bf16.xpose.msra.mxu0 0
        %2360 = vmatprep.subr.bf16.mxu0 0
        %2361 = vmatpush1.bf16.xpose.msra.mxu0 0
        %2362 = vmatprep.subr.bf16.mxu0 0
        %2363 = vmatpush1.bf16.xpose.msra.mxu0 0
        %2364 = vmatprep.subr.bf16.mxu0 0
        %2365 = vmatpush1.bf16.xpose.msra.mxu0 0
        %2366 = vmatprep.subr.bf16.mxu0 0
        %2367 = vmatpush1.bf16.xpose.msra.mxu0 0
        %2368 = vmatprep.subr.bf16.mxu0 0
        %2369 = vmatpush1.bf16.xpose.msra.mxu0 0
        %2370 = vmatprep.subr.bf16.mxu0 0
        %2371 = vmatpush1.bf16.xpose.msra.mxu0 0
        %2372 = vmatprep.subr.bf16.mxu0 0
        %2373 = vmatpush1.bf16.xpose.msra.mxu0 0
        %2374 = vmatprep.subr.bf16.mxu0 0
        %2375 = vmatpush1.bf16.xpose.msra.mxu0 0
        %2376 = vmatprep.subr.bf16.mxu0 0
        %2377 = vmatpush1.bf16.xpose.msra.mxu0 0
        %2378 = vmatprep.subr.bf16.mxu0 0
        %2379 = vmatpush1.bf16.xpose.msra.mxu0 0
        %2380 = vmatprep.subr.bf16.mxu0 0
        %2381 = vmatpush1.bf16.xpose.msra.mxu0 0
        %2382 = vmatprep.subr.bf16.mxu0 0
        %2383 = vmatpush1.bf16.xpose.msra.mxu0 0
        %2384 = vmatprep.subr.bf16.mxu0 0
        %2385 = vmatpush1.bf16.xpose.msra.mxu0 0
        %2386 = vmatprep.subr.bf16.mxu0 0
        %2387 = vmatpush1.bf16.xpose.msra.mxu0 0
        %2388 = vmatprep.mubr.bf16.mxu0 0
        %2389 = vmatmul.mubr.bf16.gmra.mrb[0].mxu0 %v2351
        %v2390 = vpop.f32.mrb[0].mxu0
        %v2391 = vadd.f32 %v806, %v2390
        %v2392 = vpop.f32.mrb[0].mxu0
        %v2393 = vpop.f32.mrb[0].mxu0
        %v2394 = vpop.f32.mrb[0].mxu0
        %2395 = vdwg.mxu0
        %v2396 = vsel %vm987, %v2345, -inf
        %2397 = vmax.xlane.f32.xlu0 %v2396
        %v2398 = vpop.xlane.xlu0 %2397
        %v2399 = vsel %vm987, %v2391, -inf
        %2400 = vmax.xlane.f32.xlu0 %v2399
        %v2401 = vpop.xlane.xlu0 %2400
        %v2402 = vsub.f32 %v2345, %v2398
        %v2403 = vsub.f32 %v2391, %v2401
        %v2404 = vmul.f32 %v2402, 1.442695
        %v2405 = vpow.pop %v2404
        %v2406 = vmul.f32 %v2403, 1.442695
        %v2407 = vpow.pop %v2406
        %v2408 = vsel %vm987, %v2405, 0.0
        %2409 = vadd.xlane.f32.xlu0 %v2408
        %v2410 = vpop.xlane.xlu0 %2409
        %v2411 = vsel %vm987, %v2407, 0.0
        %2412 = vadd.xlane.f32.xlu0 %v2411
        %v2413 = vpop.xlane.xlu0 %2412
        %v2414 = vrcp.pop %v2410
        %v2415 = vrcp.pop %v2413
        %v2416 = vmul.f32 %v2405, %v2414
        %v2417 = vmul.f32 %v2407, %v2415
        %v2418 = vpack.c.bf16 %v2416, %v2416
        %v2419 = vpack.c.bf16 %v2417, %v2417
        %v2421 = vsel %vm987, %v2418, 0
        %v2424 = vsel %vm1107, %v2302, 0
        %2426 = vmatprep.subr.bf16.mxu0 0
        %2427 = vmatpush1.bf16.msra.mxu0 %v2424
        %2428 = vmatprep.subr.bf16.mxu0 0
        %2429 = vmatpush1.bf16.msra.mxu0 0
        %2430 = vmatprep.subr.bf16.mxu0 0
        %2431 = vmatpush1.bf16.msra.mxu0 0
        %2432 = vmatprep.subr.bf16.mxu0 0
        %2433 = vmatpush1.bf16.msra.mxu0 0
        %2434 = vmatprep.subr.bf16.mxu0 0
        %2435 = vmatpush1.bf16.msra.mxu0 0
        %2436 = vmatprep.subr.bf16.mxu0 0
        %2437 = vmatpush1.bf16.msra.mxu0 0
        %2438 = vmatprep.subr.bf16.mxu0 0
        %2439 = vmatpush1.bf16.msra.mxu0 0
        %2440 = vmatprep.subr.bf16.mxu0 0
        %2441 = vmatpush1.bf16.msra.mxu0 0
        %2442 = vmatprep.subr.bf16.mxu0 0
        %2443 = vmatpush1.bf16.msra.mxu0 0
        %2444 = vmatprep.subr.bf16.mxu0 0
        %2445 = vmatpush1.bf16.msra.mxu0 0
        %2446 = vmatprep.subr.bf16.mxu0 0
        %2447 = vmatpush1.bf16.msra.mxu0 0
        %2448 = vmatprep.subr.bf16.mxu0 0
        %2449 = vmatpush1.bf16.msra.mxu0 0
        %2450 = vmatprep.subr.bf16.mxu0 0
        %2451 = vmatpush1.bf16.msra.mxu0 0
        %2452 = vmatprep.subr.bf16.mxu0 0
        %2453 = vmatpush1.bf16.msra.mxu0 0
        %2454 = vmatprep.subr.bf16.mxu0 0
        %2455 = vmatpush1.bf16.msra.mxu0 0
        %2456 = vmatprep.subr.bf16.mxu0 0
        %2457 = vmatpush1.bf16.msra.mxu0 0
        %2458 = vmatprep.mubr.bf16.mxu0 0
        %2459 = vmatmul.mubr.bf16.gmra.mrb[0].mxu0 %v2421
        %v2460 = vpop.f32.mrb[0].mxu0
        %v2461 = vadd.f32 0.0, %v2460
        %v2462 = vpop.f32.mrb[0].mxu0
        %v2463 = vpop.f32.mrb[0].mxu0
        %v2464 = vpop.f32.mrb[0].mxu0
        %2465 = vdwg.mxu0
        %v2467 = vsel %vm987, %v2419, 0
        %v2470 = vsel %vm1107, %v2303, 0
        %2472 = vmatprep.subr.bf16.mxu0 0
        %2473 = vmatpush1.bf16.msra.mxu0 %v2470
        %2474 = vmatprep.subr.bf16.mxu0 0
        %2475 = vmatpush1.bf16.msra.mxu0 0
        %2476 = vmatprep.subr.bf16.mxu0 0
        %2477 = vmatpush1.bf16.msra.mxu0 0
        %2478 = vmatprep.subr.bf16.mxu0 0
        %2479 = vmatpush1.bf16.msra.mxu0 0
        %2480 = vmatprep.subr.bf16.mxu0 0
        %2481 = vmatpush1.bf16.msra.mxu0 0
        %2482 = vmatprep.subr.bf16.mxu0 0
        %2483 = vmatpush1.bf16.msra.mxu0 0
        %2484 = vmatprep.subr.bf16.mxu0 0
        %2485 = vmatpush1.bf16.msra.mxu0 0
        %2486 = vmatprep.subr.bf16.mxu0 0
        %2487 = vmatpush1.bf16.msra.mxu0 0
        %2488 = vmatprep.subr.bf16.mxu0 0
        %2489 = vmatpush1.bf16.msra.mxu0 0
        %2490 = vmatprep.subr.bf16.mxu0 0
        %2491 = vmatpush1.bf16.msra.mxu0 0
        %2492 = vmatprep.subr.bf16.mxu0 0
        %2493 = vmatpush1.bf16.msra.mxu0 0
        %2494 = vmatprep.subr.bf16.mxu0 0
        %2495 = vmatpush1.bf16.msra.mxu0 0
        %2496 = vmatprep.subr.bf16.mxu0 0
        %2497 = vmatpush1.bf16.msra.mxu0 0
        %2498 = vmatprep.subr.bf16.mxu0 0
        %2499 = vmatpush1.bf16.msra.mxu0 0
        %2500 = vmatprep.subr.bf16.mxu0 0
        %2501 = vmatpush1.bf16.msra.mxu0 0
        %2502 = vmatprep.subr.bf16.mxu0 0
        %2503 = vmatpush1.bf16.msra.mxu0 0
        %2504 = vmatprep.mubr.bf16.mxu0 0
        %2505 = vmatmul.mubr.bf16.gmra.mrb[0].mxu0 %v2467
        %v2506 = vpop.f32.mrb[0].mxu0
        %v2507 = vadd.f32 0.0, %v2506
        %v2508 = vpop.f32.mrb[0].mxu0
        %v2509 = vpop.f32.mrb[0].mxu0
        %v2510 = vpop.f32.mrb[0].mxu0
        %2511 = vdwg.mxu0
        %v2512 = vpack.c.bf16 %v2507, %v2461
        %s2513 = scalar_lea.vmem %s732, 12
        %v2514 = vld [vmem:[%s2513] sm:$0xf]
        %v2516 = vsel %vm987, %v2512, 0
        %v2519 = vsel %vm1107, %v2514, 0
        %2521 = vmatprep.subr.bf16.mxu0 0
        %2522 = vmatpush1.bf16.msra.mxu0 %v2519
        %2523 = vmatprep.subr.bf16.mxu0 0
        %2524 = vmatpush1.bf16.msra.mxu0 0
        %2525 = vmatprep.subr.bf16.mxu0 0
        %2526 = vmatpush1.bf16.msra.mxu0 0
        %2527 = vmatprep.subr.bf16.mxu0 0
        %2528 = vmatpush1.bf16.msra.mxu0 0
        %2529 = vmatprep.subr.bf16.mxu0 0
        %2530 = vmatpush1.bf16.msra.mxu0 0
        %2531 = vmatprep.subr.bf16.mxu0 0
        %2532 = vmatpush1.bf16.msra.mxu0 0
        %2533 = vmatprep.subr.bf16.mxu0 0
        %2534 = vmatpush1.bf16.msra.mxu0 0
        %2535 = vmatprep.subr.bf16.mxu0 0
        %2536 = vmatpush1.bf16.msra.mxu0 0
        %2537 = vmatprep.subr.bf16.mxu0 0
        %2538 = vmatpush1.bf16.msra.mxu0 0
        %2539 = vmatprep.subr.bf16.mxu0 0
        %2540 = vmatpush1.bf16.msra.mxu0 0
        %2541 = vmatprep.subr.bf16.mxu0 0
        %2542 = vmatpush1.bf16.msra.mxu0 0
        %2543 = vmatprep.subr.bf16.mxu0 0
        %2544 = vmatpush1.bf16.msra.mxu0 0
        %2545 = vmatprep.subr.bf16.mxu0 0
        %2546 = vmatpush1.bf16.msra.mxu0 0
        %2547 = vmatprep.subr.bf16.mxu0 0
        %2548 = vmatpush1.bf16.msra.mxu0 0
        %2549 = vmatprep.subr.bf16.mxu0 0
        %2550 = vmatpush1.bf16.msra.mxu0 0
        %2551 = vmatprep.subr.bf16.mxu0 0
        %2552 = vmatpush1.bf16.msra.mxu0 0
        %2553 = vmatprep.mubr.bf16.mxu0 0
        %2554 = vmatmul.mubr.bf16.gmra.mrb[0].mxu0 %v2516
        %v2555 = vpop.f32.mrb[0].mxu0
        %v2556 = vadd.f32 0.0, %v2555
        %v2557 = vpop.f32.mrb[0].mxu0
        %v2558 = vpop.f32.mrb[0].mxu0
        %v2559 = vadd.f32 0.0, %v2558
        %v2560 = vpop.f32.mrb[0].mxu0
        %2561 = vdwg.mxu0
        %v2562 = vadd.f32 %v2122, %v2556
        %v2563 = vadd.f32 %v2123, %v2559
        %v2564 = vld [vmem:[%s735] sm:$0x1]
        %v2566 = vlaneseq
        %v2567 = vshrl.u32 %v2566, 7
        %v2568 = vsub.s32 0, %v2567
        %v2569 = vrot.slane %v2564, %v2568
        %v2571 = vadd.f32 %v2562, %v2569
        %v2572 = vadd.f32 %v2563, %v2569
        %v2573 = vadd.f32 %v2571, %v776
        %v2574 = vadd.f32 %v2572, %v777
        %v2575 = vpack.c.bf16 %v2574, %v2573
        %v2576 = vld [vmem:[%s740] sm:$0xf]
        %v2577 = vld [vmem:[%s740 + $0x4] sm:$0xf]
        %v2578 = vld [vmem:[%s740 + $0x8] sm:$0xf]
        %v2579 = vld [vmem:[%s740 + $0xc] sm:$0xf]
        %v2580 = vld [vmem:[%s743] sm:$0x1]
        %v2582 = vlaneseq
        %v2583 = vshrl.u32 %v2582, 7
        %v2584 = vsub.s32 0, %v2583
        %v2585 = vrot.slane %v2580, %v2584
        %v2591 = vunpack.c.l.b16 %v2576
        %v2592 = vunpack.c.l.b16 %v2577
        %v2593 = vunpack.c.l.b16 %v2578
        %v2594 = vunpack.c.l.b16 %v2579
        %v2595 = vpack.c.b16 %v2592, %v2591
        %v2596 = vpack.c.b16 %v2594, %v2593
        %v2600 = vsel %vm781, %v2575, 0
        %2602 = vmatprep.subr.bf16.mxu0 0
        %2603 = vmatpush1.bf16.msra.mxu0 %v2595
        %2604 = vmatprep.subr.bf16.mxu0 0
        %2605 = vmatpush1.bf16.msra.mxu0 %v2596
        %2606 = vmatprep.subr.bf16.mxu0 0
        %2607 = vmatpush1.bf16.msra.mxu0 0
        %2608 = vmatprep.subr.bf16.mxu0 0
        %2609 = vmatpush1.bf16.msra.mxu0 0
        %2610 = vmatprep.subr.bf16.mxu0 0
        %2611 = vmatpush1.bf16.msra.mxu0 0
        %2612 = vmatprep.subr.bf16.mxu0 0
        %2613 = vmatpush1.bf16.msra.mxu0 0
        %2614 = vmatprep.subr.bf16.mxu0 0
        %2615 = vmatpush1.bf16.msra.mxu0 0
        %2616 = vmatprep.subr.bf16.mxu0 0
        %2617 = vmatpush1.bf16.msra.mxu0 0
        %2618 = vmatprep.subr.bf16.mxu0 0
        %2619 = vmatpush1.bf16.msra.mxu0 0
        %2620 = vmatprep.subr.bf16.mxu0 0
        %2621 = vmatpush1.bf16.msra.mxu0 0
        %2622 = vmatprep.subr.bf16.mxu0 0
        %2623 = vmatpush1.bf16.msra.mxu0 0
        %2624 = vmatprep.subr.bf16.mxu0 0
        %2625 = vmatpush1.bf16.msra.mxu0 0
        %2626 = vmatprep.subr.bf16.mxu0 0
        %2627 = vmatpush1.bf16.msra.mxu0 0
        %2628 = vmatprep.subr.bf16.mxu0 0
        %2629 = vmatpush1.bf16.msra.mxu0 0
        %2630 = vmatprep.subr.bf16.mxu0 0
        %2631 = vmatpush1.bf16.msra.mxu0 0
        %2632 = vmatprep.subr.bf16.mxu0 0
        %2633 = vmatpush1.bf16.msra.mxu0 0
        %2634 = vmatprep.mubr.bf16.mxu0 0
        %2635 = vmatmul.mubr.bf16.gmra.mrb[0].mxu0 %v2600
        %v2636 = vpop.f32.mrb[0].mxu0
        %v2637 = vadd.f32 %v2585, %v2636
        %v2638 = vpop.f32.mrb[0].mxu0
        %v2639 = vpop.f32.mrb[0].mxu0
        %v2640 = vadd.f32 %v2585, %v2639
        %v2641 = vpop.f32.mrb[0].mxu0
        %2642 = vdwg.mxu0
        %v2643 = vld [vmem:[%s748] sm:$0xf]
        %v2644 = vld [vmem:[%s748 + $0x4] sm:$0xf]
        %v2645 = vld [vmem:[%s748 + $0x8] sm:$0xf]
        %v2646 = vld [vmem:[%s748 + $0xc] sm:$0xf]
        %v2647 = vld [vmem:[%s751] sm:$0x1]
        %v2649 = vlaneseq
        %v2650 = vshrl.u32 %v2649, 7
        %v2651 = vsub.s32 0, %v2650
        %v2652 = vrot.slane %v2647, %v2651
        %v2658 = vunpack.c.l.b16 %v2643
        %v2659 = vunpack.c.l.b16 %v2644
        %v2660 = vunpack.c.l.b16 %v2645
        %v2661 = vunpack.c.l.b16 %v2646
        %v2662 = vpack.c.b16 %v2659, %v2658
        %v2663 = vpack.c.b16 %v2661, %v2660
        %2666 = vmatprep.subr.bf16.mxu0 0
        %2667 = vmatpush1.bf16.msra.mxu0 %v2662
        %2668 = vmatprep.subr.bf16.mxu0 0
        %2669 = vmatpush1.bf16.msra.mxu0 %v2663
        %2670 = vmatprep.subr.bf16.mxu0 0
        %2671 = vmatpush1.bf16.msra.mxu0 0
        %2672 = vmatprep.subr.bf16.mxu0 0
        %2673 = vmatpush1.bf16.msra.mxu0 0
        %2674 = vmatprep.subr.bf16.mxu0 0
        %2675 = vmatpush1.bf16.msra.mxu0 0
        %2676 = vmatprep.subr.bf16.mxu0 0
        %2677 = vmatpush1.bf16.msra.mxu0 0
        %2678 = vmatprep.subr.bf16.mxu0 0
        %2679 = vmatpush1.bf16.msra.mxu0 0
        %2680 = vmatprep.subr.bf16.mxu0 0
        %2681 = vmatpush1.bf16.msra.mxu0 0
        %2682 = vmatprep.subr.bf16.mxu0 0
        %2683 = vmatpush1.bf16.msra.mxu0 0
        %2684 = vmatprep.subr.bf16.mxu0 0
        %2685 = vmatpush1.bf16.msra.mxu0 0
        %2686 = vmatprep.subr.bf16.mxu0 0
        %2687 = vmatpush1.bf16.msra.mxu0 0
        %2688 = vmatprep.subr.bf16.mxu0 0
        %2689 = vmatpush1.bf16.msra.mxu0 0
        %2690 = vmatprep.subr.bf16.mxu0 0
        %2691 = vmatpush1.bf16.msra.mxu0 0
        %2692 = vmatprep.subr.bf16.mxu0 0
        %2693 = vmatpush1.bf16.msra.mxu0 0
        %2694 = vmatprep.subr.bf16.mxu0 0
        %2695 = vmatpush1.bf16.msra.mxu0 0
        %2696 = vmatprep.subr.bf16.mxu0 0
        %2697 = vmatpush1.bf16.msra.mxu0 0
        %2698 = vmatprep.mubr.bf16.mxu0 0
        %2699 = vmatmul.mubr.bf16.gmra.mrb[0].mxu0 %v2600
        %v2700 = vpop.f32.mrb[0].mxu0
        %v2701 = vadd.f32 %v2652, %v2700
        %v2702 = vpop.f32.mrb[0].mxu0
        %v2703 = vpop.f32.mrb[0].mxu0
        %v2704 = vadd.f32 %v2652, %v2703
        %v2705 = vpop.f32.mrb[0].mxu0
        %2706 = vdwg.mxu0
        %v2707 = vsub.f32 0.0, %v2637
        %v2708 = vsub.f32 0.0, %v2640
        %v2709 = vmul.f32 %v2707, 1.442695
        %v2710 = vpow.pop %v2709
        %v2711 = vmul.f32 %v2708, 1.442695
        %v2712 = vpow.pop %v2711
        %v2713 = vadd.f32 %v2710, 1.0
        %v2714 = vadd.f32 %v2712, 1.0
        %v2715 = vrcp.pop %v2713
        %v2716 = vmul.f32 1.0, %v2715
        %v2717 = vrcp.pop %v2714
        %v2718 = vmul.f32 1.0, %v2717
        %v2719 = vmul.f32 %v2637, %v2716
        %v2720 = vmul.f32 %v2640, %v2718
        %v2721 = vmul.f32 %v2719, %v2701
        %v2722 = vmul.f32 %v2720, %v2704
        %v2723 = vpack.c.bf16 %v2722, %v2721
        %v2724 = vld [vmem:[%s756] sm:$0xf]
        %v2725 = vld [vmem:[%s756 + $0x4] sm:$0xf]
        %v2726 = vld [vmem:[%s756 + $0x8] sm:$0xf]
        %v2727 = vld [vmem:[%s756 + $0xc] sm:$0xf]
        %v2728 = vld [vmem:[%s756 + $0x10] sm:$0xf]
        %v2729 = vld [vmem:[%s756 + $0x14] sm:$0xf]
        %v2730 = vld [vmem:[%s756 + $0x18] sm:$0xf]
        %v2731 = vld [vmem:[%s756 + $0x1c] sm:$0xf]
        %v2732 = vld [vmem:[%s759] sm:$0x1]
        %v2734 = vlaneseq
        %v2735 = vshrl.u32 %v2734, 7
        %v2736 = vsub.s32 0, %v2735
        %v2737 = vrot.slane %v2732, %v2736
        %v2747 = vunpack.c.l.b16 %v2724
        %v2748 = vunpack.c.l.b16 %v2725
        %v2749 = vunpack.c.l.b16 %v2726
        %v2750 = vunpack.c.l.b16 %v2727
        %v2751 = vunpack.c.l.b16 %v2728
        %v2752 = vunpack.c.l.b16 %v2729
        %v2753 = vunpack.c.l.b16 %v2730
        %v2754 = vunpack.c.l.b16 %v2731
        %v2755 = vpack.c.b16 %v2748, %v2747
        %v2756 = vpack.c.b16 %v2750, %v2749
        %v2757 = vpack.c.b16 %v2752, %v2751
        %v2758 = vpack.c.b16 %v2754, %v2753
        %vm2763 = vcmask 523264
        %v2765 = vsel %vm2763, %v2723, 0
        %2767 = vmatprep.subr.bf16.mxu0 0
        %2768 = vmatpush1.bf16.msra.mxu0 %v2755
        %2769 = vmatprep.subr.bf16.mxu0 0
        %2770 = vmatpush1.bf16.msra.mxu0 %v2756
        %2771 = vmatprep.subr.bf16.mxu0 0
        %2772 = vmatpush1.bf16.msra.mxu0 %v2757
        %2773 = vmatprep.subr.bf16.mxu0 0
        %2774 = vmatpush1.bf16.msra.mxu0 %v2758
        %2775 = vmatprep.subr.bf16.mxu0 0
        %2776 = vmatpush1.bf16.msra.mxu0 0
        %2777 = vmatprep.subr.bf16.mxu0 0
        %2778 = vmatpush1.bf16.msra.mxu0 0
        %2779 = vmatprep.subr.bf16.mxu0 0
        %2780 = vmatpush1.bf16.msra.mxu0 0
        %2781 = vmatprep.subr.bf16.mxu0 0
        %2782 = vmatpush1.bf16.msra.mxu0 0
        %2783 = vmatprep.subr.bf16.mxu0 0
        %2784 = vmatpush1.bf16.msra.mxu0 0
        %2785 = vmatprep.subr.bf16.mxu0 0
        %2786 = vmatpush1.bf16.msra.mxu0 0
        %2787 = vmatprep.subr.bf16.mxu0 0
        %2788 = vmatpush1.bf16.msra.mxu0 0
        %2789 = vmatprep.subr.bf16.mxu0 0
        %2790 = vmatpush1.bf16.msra.mxu0 0
        %2791 = vmatprep.subr.bf16.mxu0 0
        %2792 = vmatpush1.bf16.msra.mxu0 0
        %2793 = vmatprep.subr.bf16.mxu0 0
        %2794 = vmatpush1.bf16.msra.mxu0 0
        %2795 = vmatprep.subr.bf16.mxu0 0
        %2796 = vmatpush1.bf16.msra.mxu0 0
        %2797 = vmatprep.subr.bf16.mxu0 0
        %2798 = vmatpush1.bf16.msra.mxu0 0
        %2799 = vmatprep.mubr.bf16.mxu0 0
        %2800 = vmatmul.mubr.bf16.gmra.mrb[0].mxu0 %v2765
        %v2801 = vpop.f32.mrb[0].mxu0
        %v2802 = vadd.f32 %v2737, %v2801
        %v2803 = vpop.f32.mrb[0].mxu0
        %v2804 = vpop.f32.mrb[0].mxu0
        %v2805 = vadd.f32 %v2737, %v2804
        %v2806 = vpop.f32.mrb[0].mxu0
        %2807 = vdwg.mxu0
        %v2808 = vadd.f32 %v2802, %v2573
        %v2809 = vadd.f32 %v2805, %v2574
        %v2810 = vld [vmem:[%s765] sm:$0x1]
        %v2811 = vmul.f32 %v2808, %v2808
        %v2812 = vmul.f32 %v2809, %v2809
        %v2813 = vsel %vm781, %v2811, 0.0
        %2814 = vadd.xlane.f32.xlu0 %v2813
        %v2815 = vpop.xlane.xlu0 %2814
        %v2816 = vsel %vm781, %v2812, 0.0
        %2817 = vadd.xlane.f32.xlu0 %v2816
        %v2818 = vpop.xlane.xlu0 %2817
        %v2819 = vmul.f32 %v2815, %v788
        %v2820 = vmul.f32 %v2818, %v788
        %v2821 = vadd.f32 %v2819, 1e-06
        %v2822 = vadd.f32 %v2820, 1e-06
        %v2823 = vrsqrt.pop %v2821
        %v2824 = vrsqrt.pop %v2822
        %v2825 = vmul.f32 %v2808, %v2823
        %v2826 = vmul.f32 %v2809, %v2824
        %v2828 = vlaneseq
        %v2829 = vshrl.u32 %v2828, 7
        %v2830 = vsub.s32 0, %v2829
        %v2831 = vrot.slane %v2810, %v2830
        %v2833 = vmul.f32 %v2825, %v2831
        %v2834 = vmul.f32 %v2826, %v2831
        %2835 = vst.msk [vmem:[#allocation2] sm:$0xff] %vm781, %v2833
        %2836 = vst.msk [vmem:[#allocation2 + $0x8] sm:$0xff] %vm781, %v2834
        %p2837 = scmp.eq.s32.totalorder %s30, 1
        // Predicated region
        $region97: #{tpu_custom_call.1} parent=91 // pred_check
          %p2838 = pneg %p2837
        $region98: #{tpu_custom_call.1} parent=91 // pred_check_branch
          %2840 = sbr.rel (%p2838) target = $region100
        $region99: #{tpu_custom_call.1} parent=91 // pred_region
          %v2841 = vld [vmem:[%s15] sm:$0x1]
          %v2842 = vmul.f32 %v2833, %v2833
          %v2843 = vmul.f32 %v2834, %v2834
          %v2844 = vsel %vm781, %v2842, 0.0
          %2845 = vadd.xlane.f32.xlu0 %v2844
          %v2846 = vpop.xlane.xlu0 %2845
          %v2847 = vsel %vm781, %v2843, 0.0
          %2848 = vadd.xlane.f32.xlu0 %v2847
          %v2849 = vpop.xlane.xlu0 %2848
          %v2850 = vmul.f32 %v2846, %v788
          %v2851 = vmul.f32 %v2849, %v788
          %v2852 = vadd.f32 %v2850, 1e-06
          %v2853 = vadd.f32 %v2851, 1e-06
          %v2854 = vrsqrt.pop %v2852
          %v2855 = vrsqrt.pop %v2853
          %v2856 = vmul.f32 %v2833, %v2854
          %v2857 = vmul.f32 %v2834, %v2855
          %v2859 = vlaneseq
          %v2860 = vshrl.u32 %v2859, 7
          %v2861 = vsub.s32 0, %v2860
          %v2862 = vrot.slane %v2841, %v2861
          %v2864 = vmul.f32 %v2856, %v2862
          %v2865 = vmul.f32 %v2857, %v2862
          %v2866 = vpack.c.bf16 %v2865, %v2864
          %v2867 = vld [vmem:[%s16] sm:$0xf]
          %v2868 = vld [vmem:[%s16 + $0x4] sm:$0xf]
          %v2869 = vld [vmem:[%s16 + $0x8] sm:$0xf]
          %v2870 = vld [vmem:[%s16 + $0xc] sm:$0xf]
          %v2871 = vld [vmem:[%s17] sm:$0x1]
          %v2873 = vlaneseq
          %v2874 = vshrl.u32 %v2873, 7
          %v2875 = vsub.s32 0, %v2874
          %v2876 = vrot.slane %v2871, %v2875
          %v2882 = vunpack.c.l.b16 %v2867
          %v2883 = vunpack.c.l.b16 %v2868
          %v2884 = vunpack.c.l.b16 %v2869
          %v2885 = vunpack.c.l.b16 %v2870
          %v2886 = vpack.c.b16 %v2883, %v2882
          %v2887 = vpack.c.b16 %v2885, %v2884
          %v2891 = vsel %vm781, %v2866, 0
          %2893 = vmatprep.subr.bf16.mxu0 0
          %2894 = vmatpush1.bf16.msra.mxu0 %v2886
          %2895 = vmatprep.subr.bf16.mxu0 0
          %2896 = vmatpush1.bf16.msra.mxu0 %v2887
          %2897 = vmatprep.subr.bf16.mxu0 0
          %2898 = vmatpush1.bf16.msra.mxu0 0
          %2899 = vmatprep.subr.bf16.mxu0 0
          %2900 = vmatpush1.bf16.msra.mxu0 0
          %2901 = vmatprep.subr.bf16.mxu0 0
          %2902 = vmatpush1.bf16.msra.mxu0 0
          %2903 = vmatprep.subr.bf16.mxu0 0
          %2904 = vmatpush1.bf16.msra.mxu0 0
          %2905 = vmatprep.subr.bf16.mxu0 0
          %2906 = vmatpush1.bf16.msra.mxu0 0
          %2907 = vmatprep.subr.bf16.mxu0 0
          %2908 = vmatpush1.bf16.msra.mxu0 0
          %2909 = vmatprep.subr.bf16.mxu0 0
          %2910 = vmatpush1.bf16.msra.mxu0 0
          %2911 = vmatprep.subr.bf16.mxu0 0
          %2912 = vmatpush1.bf16.msra.mxu0 0
          %2913 = vmatprep.subr.bf16.mxu0 0
          %2914 = vmatpush1.bf16.msra.mxu0 0
          %2915 = vmatprep.subr.bf16.mxu0 0
          %2916 = vmatpush1.bf16.msra.mxu0 0
          %2917 = vmatprep.subr.bf16.mxu0 0
          %2918 = vmatpush1.bf16.msra.mxu0 0
          %2919 = vmatprep.subr.bf16.mxu0 0
          %2920 = vmatpush1.bf16.msra.mxu0 0
          %2921 = vmatprep.subr.bf16.mxu0 0
          %2922 = vmatpush1.bf16.msra.mxu0 0
          %2923 = vmatprep.subr.bf16.mxu0 0
          %2924 = vmatpush1.bf16.msra.mxu0 0
          %2925 = vmatprep.mubr.bf16.mxu0 0
          %2926 = vmatmul.mubr.bf16.gmra.mrb[0].mxu0 %v2891
          %v2927 = vpop.f32.mrb[0].mxu0
          %v2928 = vadd.f32 %v2876, %v2927
          %v2929 = vpop.f32.mrb[0].mxu0
          %v2930 = vpop.f32.mrb[0].mxu0
          %v2931 = vadd.f32 %v2876, %v2930
          %v2932 = vpop.f32.mrb[0].mxu0
          %2933 = vdwg.mxu0
          %2934 = vst [vmem:[#allocation3] sm:$0xff] %v2928
          %2935 = vst [vmem:[#allocation3 + $0x8] sm:$0xff] %v2931
        $region100: #{tpu_custom_call.1} parent=91 // pred_fallthru
          _
        // Predicated region
        $region101: #{tpu_custom_call.1} parent=91 // pred_check
          %p2936 = pneg %p486
        $region102: #{tpu_custom_call.1} parent=91 // pred_check_branch
          %2938 = sbr.rel (%p2936) target = $region104
        $region103: #{tpu_custom_call.1} parent=91 // pred_region
          %s2940 = ssub.s32 256, 256
          %2941 = vsyncadd [#allocation4], %s2940
          %s2942 = sshll.u32 [#allocation3], 4
          %s2943 = int_to_ptr.vmem [resolvable:$true] %s2942
          %2948 = dma.vmem_to_hbm [thread:$0]  %s2943, 256, %s18, [#allocation4], 128, 128, 8
        $region104: #{tpu_custom_call.1} parent=91 // pred_fallthru
          _
        // Predicated region
        $region105: #{tpu_custom_call.1} parent=91 // pred_check
          %p2949 = pneg %p486
        $region106: #{tpu_custom_call.1} parent=91 // pred_check_branch
          %2951 = sbr.rel (%p2949) target = $region108
        $region107: #{tpu_custom_call.1} parent=91 // pred_region
          %2952 = dma.done [#allocation4], 256
        $region108: #{tpu_custom_call.1} parent=91 // pred_fallthru
          _
      $region92: #{tpu_custom_call.1} parent=5 // pred_fallthru
        _
      %p2953 = scmp.le.s32.totalorder 2, %s25
      // Predicated region
      $region109: #{tpu_custom_call.1} parent=5 // pred_check
        %p2954 = pneg %p2953
      $region110: #{tpu_custom_call.1} parent=5 // pred_check_branch
        %2956 = sbr.rel (%p2954) target = $region112
      $region111: #{tpu_custom_call.1} parent=5 // pred_region
        %s2957 = ssub.s32 %s25, 2
      $region112: #{tpu_custom_call.1} parent=5 // pred_fallthru
        _
    $region6: #{tpu_custom_call.1} parent=1 // loop_footer
      %s29 = sadd.s32 1, %s25
    $region7: #{tpu_custom_call.1} parent=1 // loop_footer_branch
      %24 = sbr.rel target = $region3
    $region8: #{tpu_custom_call.1} parent=1 // loop_exit
      _
    %2958 = vsyncpa [#allocation4], 1
    %s2959 = scalar_lea.sflag [#allocation4], 1
    %2960 = vsyncpa %s2959, 1

</llo_original>
